<compile_context>
chip_gen: v7x
topology: tpu7x:2x2x1
jax: 0.10.0
libtpu: 0.0.40
codegen_flags: <defaults>
</compile_context>

<pallas_src>
import math
from functools import partial

import jax
import jax.numpy as jnp
import numpy as np
from jax import lax
from jax.experimental import pallas as pl
from jax.experimental.pallas import tpu as pltpu


# ----------------------------- configuration -------------------------------
class Configs:
    pos_thresh = 0.1            # -> pos_margin
    neg_thresh = 1.4            # -> neg_margin
    max_points = 256
    safe_radius = 0.75
    matchability_radius = 0.3   # unused by forward()
    pos_radius = 0.21


LOG_SCALE = 16.0
POS_OPTIMAL = 0.1
NEG_OPTIMAL = 1.4

K_PAD = 256        # pinned: max_points == 256 -> one compile bucket
_XYZ_PAD = 8       # coordinate lane/sublane pad width
_OUT_LANES = 128   # lane-dense output row: [0]=circle_loss, [1]=recall
_BIG = 1.0e30


# ------------------------------- kernel -------------------------------------
def _metric_loss_kernel(n_ref, spts_ref, tptsT_ref, sf_ref, tfT_ref, out_ref,
                        *, log_scale, pos_optimal, neg_optimal,
                        pos_margin, neg_margin, safe_radius, pos_radius):
    f32 = jnp.float32
    k = spts_ref.shape[0]                         # K_PAD
    n = n_ref[0]                                  # number of valid rows/cols

    pos_sq = pos_radius * pos_radius
    safe_sq = safe_radius * safe_radius

    # ---- pairwise squared coordinate distance, exact f32 on the VPU --------
    # difference-then-square: no catastrophic cancellation near pos_radius^2,
    # and no dependence on MXU default matmul precision.
    sx = spts_ref[:, 0:1]
    sy = spts_ref[:, 1:2]
    sz = spts_ref[:, 2:3]                          # [K,1] each
    tx = tptsT_ref[0:1, :]
    ty = tptsT_ref[1:2, :]
    tz = tptsT_ref[2:3, :]                         # [1,K] each
    dx = sx - tx
    dy = sy - ty
    dz = sz - tz
    coords_sq = dx * dx + dy * dy + dz * dz        # [K,K]

    # ---- pairwise feature distance (normalised feats), one MXU matmul ------
    fdot = lax.dot_general(sf_ref[...], tfT_ref[...],
                           (((1,), (0,)), ((), ())),
                           preferred_element_type=f32)                 # [K,K]
    feats_dist = jnp.sqrt(jnp.maximum(2.0 - 2.0 * fdot, 1e-12))

    # ---- validity from thin iota vectors ------------------------------------
    row_ids = lax.broadcasted_iota(jnp.int32, (k, 1), 0)               # [K,1]
    col_ids = lax.broadcasted_iota(jnp.int32, (1, k), 1)               # [1,K]
    valid = jnp.logical_and(row_ids < n, col_ids < n)                  # [K,K]
    valid_f = valid.astype(f32)

    pos_mask = jnp.logical_and(coords_sq < pos_sq, valid)
    neg_mask = jnp.logical_and(coords_sq > safe_sq, valid)

    # ---- circle-loss weights: shared exp (pos/neg regions are disjoint) ----
    pos_w = jnp.where(pos_mask, jnp.maximum(feats_dist - pos_optimal, 0.0), 0.0)
    neg_w = jnp.where(neg_mask, jnp.maximum(neg_optimal - feats_dist, 0.0), 0.0)
    arg = log_scale * ((feats_dist - pos_margin) * pos_w
                       + (neg_margin - feats_dist) * neg_w)
    # |arg| <= LOG_SCALE*max((2-pos_margin)(2-pos_optimal), neg_margin*neg_optimal)
    # ~ 58 << 88 (f32 exp limit), and sums over K=256 stay far below f32 max,
    # so no max-shift is needed (static assert in the wrapper).
    e_comb = jnp.exp(arg)
    e_pos = jnp.where(pos_mask, e_comb, valid_f)   # exp(0)=1 on valid non-pos
    e_neg = jnp.where(neg_mask, e_comb, valid_f)

    # ---- row / column sums of the exponentials on the (otherwise idle) MXU --
    ones_col = jnp.ones((k, 1), f32)
    ones_row = jnp.ones((1, k), f32)
    dn = (((1,), (0,)), ((), ()))
    sum_epos_row = lax.dot_general(e_pos, ones_col, dn,
                                   preferred_element_type=f32)         # [K,1]
    sum_eneg_row = lax.dot_general(e_neg, ones_col, dn,
                                   preferred_element_type=f32)         # [K,1]
    sum_epos_col = lax.dot_general(ones_row, e_pos, dn,
                                   preferred_element_type=f32)         # [1,K]
    sum_eneg_col = lax.dot_general(ones_row, e_neg, dn,
                                   preferred_element_type=f32)         # [1,K]

    # ---- row/col selection predicates straight from coords_sq (XLU) --------
    big = jnp.float32(_BIG)
    csq_lo = jnp.where(valid, coords_sq, big)
    csq_hi = jnp.where(valid, coords_sq, -big)
    pos_row_has = jnp.min(csq_lo, axis=1, keepdims=True) < pos_sq      # [K,1]
    neg_row_has = jnp.max(csq_hi, axis=1, keepdims=True) > safe_sq     # [K,1]
    pos_col_has = jnp.min(csq_lo, axis=0, keepdims=True) < pos_sq      # [1,K]
    neg_col_has = jnp.max(csq_hi, axis=0, keepdims=True) > safe_sq     # [1,K]
    row_sel = jnp.logical_and(pos_row_has, neg_row_has)
    col_sel = jnp.logical_and(pos_col_has, neg_col_has)

    def _softplus(x):
        return jnp.maximum(x, 0.0) + jnp.log(1.0 + jnp.exp(-jnp.abs(x)))

    # invalid rows/cols give log(0) = -inf -> softplus -> 0 and are excluded
    # by row_sel/col_sel anyway (IEEE semantics keep this NaN-free).
    loss_row = _softplus(jnp.log(sum_epos_row) + jnp.log(sum_eneg_row)) / log_scale
    loss_col = _softplus(jnp.log(sum_epos_col) + jnp.log(sum_eneg_col)) / log_scale

    row_sum = jnp.sum(jnp.where(row_sel, loss_row, 0.0), axis=0, keepdims=True)
    row_cnt = jnp.sum(row_sel.astype(f32), axis=0, keepdims=True)
    col_sum = jnp.sum(jnp.where(col_sel, loss_col, 0.0), axis=1, keepdims=True)
    col_cnt = jnp.sum(col_sel.astype(f32), axis=1, keepdims=True)
    # maximum(cnt, 1): empty-selection degenerate case yields 0 instead of the
    # reference's NaN; identical whenever at least one row/col is selected.
    circle = (row_sum / jnp.maximum(row_cnt, 1.0)
              + col_sum / jnp.maximum(col_cnt, 1.0)) * 0.5              # [1,1]

    # ---- feature-match recall -----------------------------------------------
    feats_valid = jnp.where(valid, feats_dist, big)
    feats_in_pos = jnp.where(pos_mask, feats_dist, big)
    min_all = jnp.min(feats_valid, axis=1, keepdims=True)               # [K,1]
    min_pos = jnp.min(feats_in_pos, axis=1, keepdims=True)              # [K,1]
    # "some minimiser of feats_dist lies inside pos_radius": differs from the
    # reference's argmin-first only on exact f32 ties in feats_dist.
    pred_pos = jnp.logical_and(min_pos <= min_all, pos_row_has)
    n_gt = jnp.sum(pos_row_has.astype(f32), axis=0, keepdims=True)      # [1,1]
    n_pred = jnp.sum(pred_pos.astype(f32), axis=0, keepdims=True)       # [1,1]
    recall = n_pred / (n_gt + 1e-12)                                    # [1,1]

    # ---- pack both scalars into one lane-dense output row ------------------
    lane = lax.broadcasted_iota(jnp.int32, (1, out_ref.shape[1]), 1)
    out_ref[...] = jnp.where(lane == 0, circle,
                             jnp.where(lane == 1, recall, 0.0))


# ------------------------------ wrapper --------------------------------------
def metric_loss_pallas(src_pcd, tgt_pcd, src_feats, tgt_feats, n_valid, cfg):
    """Inputs already have K_PAD rows; rows >= n_valid are ignored via masking."""
    f32 = jnp.float32
    kpad = K_PAD
    c = src_feats.shape[1]

    # static guards for the kernel's assumptions
    assert float(cfg.pos_radius) < float(cfg.safe_radius), \
        "shared-exp trick requires disjoint pos/neg regions"
    max_arg = LOG_SCALE * max(
        (2.0 - float(cfg.pos_thresh)) * (2.0 - POS_OPTIMAL),
        float(cfg.neg_thresh) * NEG_OPTIMAL)
    assert max_arg + math.log(kpad) < 88.0, \
        "shift-free logsumexp would overflow f32 for these constants"

    sp = src_pcd.astype(f32)
    tp = tgt_pcd.astype(f32)
    sf = src_feats.astype(f32)
    tfT = tgt_feats.astype(f32).T                                # [C, K] dense lanes

    pad = jnp.zeros((kpad, _XYZ_PAD - 3), f32)
    spts = jnp.concatenate([sp, pad], axis=1)                    # [K, 8]
    tptsT = jnp.concatenate([tp, pad], axis=1).T                 # [8, K] dense lanes

    n_arr = jnp.reshape(n_valid, (1,)).astype(jnp.int32)

    kernel = partial(
        _metric_loss_kernel,
        log_scale=LOG_SCALE, pos_optimal=POS_OPTIMAL, neg_optimal=NEG_OPTIMAL,
        pos_margin=float(cfg.pos_thresh), neg_margin=float(cfg.neg_thresh),
        safe_radius=float(cfg.safe_radius), pos_radius=float(cfg.pos_radius))

    out = pl.pallas_call(
        kernel,
        out_shape=jax.ShapeDtypeStruct((1, _OUT_LANES), jnp.float32),
        grid_spec=pltpu.PrefetchScalarGridSpec(
            num_scalar_prefetch=1,
            grid=(1,),
            in_specs=[
                pl.BlockSpec((kpad, _XYZ_PAD), lambda i, n: (0, 0)),  # src xyz
                pl.BlockSpec((_XYZ_PAD, kpad), lambda i, n: (0, 0)),  # tgt xyz^T
                pl.BlockSpec((kpad, c), lambda i, n: (0, 0)),         # src feats
                pl.BlockSpec((c, kpad), lambda i, n: (0, 0)),         # tgt feats^T
            ],
            out_specs=pl.BlockSpec((1, _OUT_LANES), lambda i, n: (0, 0)),
        ),
        compiler_params=pltpu.CompilerParams(
            dimension_semantics=("arbitrary",)),
    )(n_arr, spts, tptsT, sf, tfT)
    return out[0, 0], out[0, 1]


def select_correspondences(src_pcd, tgt_pcd, src_feats, tgt_feats,
                           correspondence, rot, trans, cfg):
    """Fixed-shape JAX pruning: rigid transform, distance filter, pad to K_PAD."""
    src_t = (rot @ src_pcd.T + trans).T
    corr = correspondence.astype(jnp.int32)
    n_corr = corr.shape[0]
    d = src_t[corr[:, 0]] - tgt_pcd[corr[:, 1]]
    c_dist = jnp.sqrt(jnp.sum(d * d, axis=1))
    keep = c_dist < (float(cfg.pos_radius) - 0.001)
    # stable "valid first, original order" permutation (fixed shape)
    order_key = jnp.where(keep, 0, n_corr) + jnp.arange(n_corr)
    order = jnp.argsort(order_key)
    if n_corr >= K_PAD:
        sel = order[:K_PAD]
    else:
        sel = jnp.concatenate(
            [order, jnp.zeros((K_PAD - n_corr,), dtype=order.dtype)])
    # TODO(synk): PyTorch randomly (unseeded) subsamples when #valid > max_points;
    # here the first max_points valid correspondences are kept deterministically.
    n_valid = jnp.minimum(jnp.sum(keep.astype(jnp.int32)),
                          jnp.int32(cfg.max_points))
    src_idx = corr[sel, 0]
    tgt_idx = corr[sel, 1]
    return (src_t[src_idx], tgt_pcd[tgt_idx],
            src_feats[src_idx], tgt_feats[tgt_idx], n_valid)


def metric_loss_forward(src_pcd, tgt_pcd, src_feats, tgt_feats,
                        correspondence, rot, trans, cfg, scale=1):
    sp, tp, sf, tf, n_valid = select_correspondences(
        src_pcd, tgt_pcd, src_feats, tgt_feats, correspondence, rot, trans, cfg)
    circle, recall = metric_loss_pallas(sp, tp, sf, tf, n_valid, cfg)
    return {"circle_loss": circle, "recall": recall}


# ------------------------- pure-JAX reference (for checking) -----------------
def metric_loss_reference(sp, tp, sf, tf, cfg):
    hp = jax.lax.Precision.HIGHEST
    coords_sq = (jnp.sum(sp * sp, -1)[:, None] + jnp.sum(tp * tp, -1)[None, :]
                 - 2.0 * jnp.matmul(sp, tp.T, precision=hp))
    coords_dist = jnp.sqrt(jnp.maximum(coords_sq, 1e-12))
    feats_dist = jnp.sqrt(jnp.maximum(
        2.0 - 2.0 * jnp.matmul(sf, tf.T, precision=hp), 1e-12))

    pos_mask = coords_dist < cfg.pos_radius
    neg_mask = coords_dist > cfg.safe_radius
    row_sel = (pos_mask.sum(-1) > 0) & (neg_mask.sum(-1) > 0)
    col_sel = (pos_mask.sum(0) > 0) & (neg_mask.sum(0) > 0)

    pos_weight = jnp.maximum(
        feats_dist - 100000.0 * (~pos_mask).astype(jnp.float32) - POS_OPTIMAL, 0.0)
    neg_weight = jnp.maximum(
        NEG_OPTIMAL - (feats_dist + 100000.0 * (~neg_mask).astype(jnp.float32)), 0.0)
    arg_pos = LOG_SCALE * (feats_dist - cfg.pos_thresh) * pos_weight
    arg_neg = LOG_SCALE * (cfg.neg_thresh - feats_dist) * neg_weight
    lse = jax.scipy.special.logsumexp
    loss_row = jax.nn.softplus(lse(arg_pos, axis=-1) + lse(arg_neg, axis=-1)) / LOG_SCALE
    loss_col = jax.nn.softplus(lse(arg_pos, axis=0) + lse(arg_neg, axis=0)) / LOG_SCALE
    circle = (jnp.sum(jnp.where(row_sel, loss_row, 0.0)) / jnp.sum(row_sel) +
              jnp.sum(jnp.where(col_sel, loss_col, 0.0)) / jnp.sum(col_sel)) / 2.0

    has_pos = pos_mask.sum(-1) > 0
    n_gt = jnp.sum(has_pos.astype(jnp.float32)) + 1e-12
    sel_idx = jnp.argmin(feats_dist, axis=-1)
    sel_dist = jnp.take_along_axis(coords_dist, sel_idx[:, None], axis=-1)[:, 0]
    n_pred = jnp.sum(((sel_dist < cfg.pos_radius) & has_pos).astype(jnp.float32))
    return circle, n_pred / n_gt


# --------------------------------- main ---------------------------------------
if __name__ == "__main__":
    cfg = Configs()
    key = jax.random.PRNGKey(0)
    kp, kn, kf1, kf2 = jax.random.split(key, 4)

    N, C = 96, 32
    src_pcd = jax.random.uniform(kp, (N, 3), dtype=jnp.float32, minval=0.0, maxval=2.0)
    theta = jnp.float32(np.pi / 6.0)
    c, s = jnp.cos(theta), jnp.sin(theta)
    rot = jnp.array([[c, -s, 0.0], [s, c, 0.0], [0.0, 0.0, 1.0]], dtype=jnp.float32)
    trans = jnp.array([[0.1], [-0.05], [0.2]], dtype=jnp.float32)

    src_transformed = (rot @ src_pcd.T + trans).T
    noise = 0.05 * jax.random.uniform(kn, (N, 3), dtype=jnp.float32, minval=-1.0, maxval=1.0)
    tgt_pcd = src_transformed + noise                     # M == N target points

    src_feats = jax.random.normal(kf1, (N, C), dtype=jnp.float32)
    src_feats = src_feats / jnp.linalg.norm(src_feats, axis=1, keepdims=True)
    tgt_feats = jax.random.normal(kf2, (N, C), dtype=jnp.float32)
    tgt_feats = tgt_feats / jnp.linalg.norm(tgt_feats, axis=1, keepdims=True)

    diag = jnp.stack([jnp.arange(N), jnp.arange(N)], axis=1).astype(jnp.int32)
    far = jnp.array([[0, 50], [3, 70], [10, 90]], dtype=jnp.int32)  # mostly pruned
    correspondence = jnp.concatenate([diag, far], axis=0)

    loss_fn = jax.jit(partial(metric_loss_forward, cfg=cfg))
    stats = loss_fn(src_pcd, tgt_pcd, src_feats, tgt_feats,
                    correspondence, rot, trans)
    circle_k = jax.block_until_ready(stats["circle_loss"])
    recall_k = jax.block_until_ready(stats["recall"])

    # reference check on the same (unpadded) selected correspondences
    sp_all, tp_all, sf_all, tf_all, n_valid = select_correspondences(
        src_pcd, tgt_pcd, src_feats, tgt_feats, correspondence, rot, trans, cfg)
    n = int(n_valid)
    circle_r, recall_r = metric_loss_reference(
        sp_all[:n], tp_all[:n], sf_all[:n], tf_all[:n], cfg)

    np.testing.assert_allclose(np.asarray(circle_k), np.asarray(circle_r),
                               rtol=5e-3, atol=1e-3)
    np.testing.assert_allclose(np.asarray(recall_k), np.asarray(recall_r),
                               rtol=0.0, atol=2e-2)
    print("KERNEL_OK")
</pallas_src>

<mosaic_0001>
module attributes {stable_mosaic.version = 11 : i64} {
  func.func @_metric_loss_kernel(%arg0: i32, %arg1: memref<1xi32, #tpu.memory_space<smem>>, %arg2: memref<256x8xf32, #tpu.memory_space<vmem>>, %arg3: memref<8x256xf32, #tpu.memory_space<vmem>>, %arg4: memref<256x32xf32, #tpu.memory_space<vmem>>, %arg5: memref<32x256xf32, #tpu.memory_space<vmem>>, %arg6: memref<1x128xf32, #tpu.memory_space<vmem>>) attributes {dimension_semantics = [#tpu.dimension_semantics<arbitrary>], iteration_bounds = array<i64: 1>, scalar_prefetch = 1 : i64, scratch_operands = 0 : i64, tpu.core_type = #tpu.core_type<tc>, window_params = [{pipeline_mode = #tpu.pipeline_mode<synchronous>, transform_indices = @transform_0, window_bounds = array<i64: 256, 8>}, {pipeline_mode = #tpu.pipeline_mode<synchronous>, transform_indices = @transform_1, window_bounds = array<i64: 8, 256>}, {pipeline_mode = #tpu.pipeline_mode<synchronous>, transform_indices = @transform_2, window_bounds = array<i64: 256, 32>}, {pipeline_mode = #tpu.pipeline_mode<synchronous>, transform_indices = @transform_3, window_bounds = array<i64: 32, 256>}, {pipeline_mode = #tpu.pipeline_mode<synchronous>, transform_indices = @transform_4, window_bounds = array<i64: 1, 128>}]} {
    %c0 = arith.constant 0 : index
    %0 = memref.load %arg1[%c0] : memref<1xi32, #tpu.memory_space<smem>>
    %c0_0 = arith.constant 0 : index
    %c0_1 = arith.constant 0 : index
    %1 = vector.load %arg2[%c0_0, %c0_1] : memref<256x8xf32, #tpu.memory_space<vmem>>, vector<256x1xf32>
    %c0_2 = arith.constant 0 : index
    %c1 = arith.constant 1 : index
    %2 = vector.load %arg2[%c0_2, %c1] : memref<256x8xf32, #tpu.memory_space<vmem>>, vector<256x1xf32>
    %c0_3 = arith.constant 0 : index
    %c2 = arith.constant 2 : index
    %3 = vector.load %arg2[%c0_3, %c2] : memref<256x8xf32, #tpu.memory_space<vmem>>, vector<256x1xf32>
    %c0_4 = arith.constant 0 : index
    %c0_5 = arith.constant 0 : index
    %4 = vector.load %arg3[%c0_4, %c0_5] : memref<8x256xf32, #tpu.memory_space<vmem>>, vector<1x256xf32>
    %c1_6 = arith.constant 1 : index
    %c0_7 = arith.constant 0 : index
    %5 = vector.load %arg3[%c1_6, %c0_7] : memref<8x256xf32, #tpu.memory_space<vmem>>, vector<1x256xf32>
    %c2_8 = arith.constant 2 : index
    %c0_9 = arith.constant 0 : index
    %6 = vector.load %arg3[%c2_8, %c0_9] : memref<8x256xf32, #tpu.memory_space<vmem>>, vector<1x256xf32>
    %7 = vector.broadcast %1 : vector<256x1xf32> to vector<256x256xf32>
    %8 = vector.broadcast %4 : vector<1x256xf32> to vector<256x256xf32>
    %9 = arith.subf %7, %8 : vector<256x256xf32>
    %10 = vector.broadcast %2 : vector<256x1xf32> to vector<256x256xf32>
    %11 = vector.broadcast %5 : vector<1x256xf32> to vector<256x256xf32>
    %12 = arith.subf %10, %11 : vector<256x256xf32>
    %13 = vector.broadcast %3 : vector<256x1xf32> to vector<256x256xf32>
    %14 = vector.broadcast %6 : vector<1x256xf32> to vector<256x256xf32>
    %15 = arith.subf %13, %14 : vector<256x256xf32>
    %16 = arith.mulf %9, %9 : vector<256x256xf32>
    %17 = arith.mulf %12, %12 : vector<256x256xf32>
    %18 = arith.addf %16, %17 : vector<256x256xf32>
    %19 = arith.mulf %15, %15 : vector<256x256xf32>
    %20 = arith.addf %18, %19 : vector<256x256xf32>
    %c0_10 = arith.constant 0 : index
    %c0_11 = arith.constant 0 : index
    %21 = vector.load %arg4[%c0_10, %c0_11] : memref<256x32xf32, #tpu.memory_space<vmem>>, vector<256x32xf32>
    %c0_12 = arith.constant 0 : index
    %c0_13 = arith.constant 0 : index
    %22 = vector.load %arg5[%c0_12, %c0_13] : memref<32x256xf32, #tpu.memory_space<vmem>>, vector<32x256xf32>
    %cst = arith.constant dense<0.000000e+00> : vector<256x256xf32>
    %23 = tpu.matmul %21, %22, %cst {dimension_numbers = #tpu.dot_dimension_numbers<[1], [0], [0], [1], [0, 0, 1, 1], [], []>} : vector<256x32xf32>, vector<32x256xf32>, vector<256x256xf32> -> vector<256x256xf32>
    %cst_14 = arith.constant 2.000000e+00 : f32
    %24 = vector.broadcast %cst_14 : f32 to vector<256x256xf32>
    %25 = arith.mulf %24, %23 : vector<256x256xf32>
    %cst_15 = arith.constant 2.000000e+00 : f32
    %26 = vector.broadcast %cst_15 : f32 to vector<256x256xf32>
    %27 = arith.subf %26, %25 : vector<256x256xf32>
    %cst_16 = arith.constant 9.99999996E-13 : f32
    %28 = vector.broadcast %cst_16 : f32 to vector<256x256xf32>
    %29 = arith.maximumf %27, %28 : vector<256x256xf32>
    %30 = math.sqrt %29 : vector<256x256xf32>
    %31 = tpu.iota {dimensions = array<i32: 0>} : vector<256x1xi32>
    %32 = tpu.iota {dimensions = array<i32: 1>} : vector<1x256xi32>
    %33 = vector.broadcast %0 : i32 to vector<256x1xi32>
    %34 = arith.cmpi slt, %31, %33 : vector<256x1xi32>
    %35 = vector.broadcast %0 : i32 to vector<1x256xi32>
    %36 = arith.cmpi slt, %32, %35 : vector<1x256xi32>
    %37 = vector.broadcast %34 : vector<256x1xi1> to vector<256x256xi1>
    %38 = vector.broadcast %36 : vector<1x256xi1> to vector<256x256xi1>
    %39 = arith.andi %37, %38 : vector<256x256xi1>
    %40 = arith.extui %39 : vector<256x256xi1> to vector<256x256xi32>
    %41 = arith.sitofp %40 : vector<256x256xi32> to vector<256x256xf32>
    %cst_17 = arith.constant 4.410000e-02 : f32
    %42 = vector.broadcast %cst_17 : f32 to vector<256x256xf32>
    %43 = arith.cmpf olt, %20, %42 : vector<256x256xf32>
    %44 = arith.andi %43, %39 : vector<256x256xi1>
    %cst_18 = arith.constant 5.625000e-01 : f32
    %45 = vector.broadcast %cst_18 : f32 to vector<256x256xf32>
    %46 = arith.cmpf ogt, %20, %45 : vector<256x256xf32>
    %47 = arith.andi %46, %39 : vector<256x256xi1>
    %cst_19 = arith.constant 1.000000e-01 : f32
    %48 = vector.broadcast %cst_19 : f32 to vector<256x256xf32>
    %49 = arith.subf %30, %48 : vector<256x256xf32>
    %cst_20 = arith.constant 0.000000e+00 : f32
    %50 = vector.broadcast %cst_20 : f32 to vector<256x256xf32>
    %51 = arith.maximumf %49, %50 : vector<256x256xf32>
    %cst_21 = arith.constant 0.000000e+00 : f32
    %52 = vector.broadcast %cst_21 : f32 to vector<256x256xf32>
    %53 = arith.select %44, %51, %52 : vector<256x256xi1>, vector<256x256xf32>
    %cst_22 = arith.constant 1.400000e+00 : f32
    %54 = vector.broadcast %cst_22 : f32 to vector<256x256xf32>
    %55 = arith.subf %54, %30 : vector<256x256xf32>
    %cst_23 = arith.constant 0.000000e+00 : f32
    %56 = vector.broadcast %cst_23 : f32 to vector<256x256xf32>
    %57 = arith.maximumf %55, %56 : vector<256x256xf32>
    %cst_24 = arith.constant 0.000000e+00 : f32
    %58 = vector.broadcast %cst_24 : f32 to vector<256x256xf32>
    %59 = arith.select %47, %57, %58 : vector<256x256xi1>, vector<256x256xf32>
    %cst_25 = arith.constant 1.000000e-01 : f32
    %60 = vector.broadcast %cst_25 : f32 to vector<256x256xf32>
    %61 = arith.subf %30, %60 : vector<256x256xf32>
    %62 = arith.mulf %61, %53 : vector<256x256xf32>
    %cst_26 = arith.constant 1.400000e+00 : f32
    %63 = vector.broadcast %cst_26 : f32 to vector<256x256xf32>
    %64 = arith.subf %63, %30 : vector<256x256xf32>
    %65 = arith.mulf %64, %59 : vector<256x256xf32>
    %66 = arith.addf %62, %65 : vector<256x256xf32>
    %cst_27 = arith.constant 1.600000e+01 : f32
    %67 = vector.broadcast %cst_27 : f32 to vector<256x256xf32>
    %68 = arith.mulf %67, %66 : vector<256x256xf32>
    %69 = math.exp %68 : vector<256x256xf32>
    %70 = arith.select %44, %69, %41 : vector<256x256xi1>, vector<256x256xf32>
    %71 = arith.select %47, %69, %41 : vector<256x256xi1>, vector<256x256xf32>
    %cst_28 = arith.constant 1.000000e+00 : f32
    %72 = vector.broadcast %cst_28 : f32 to vector<256x1xf32>
    %cst_29 = arith.constant 1.000000e+00 : f32
    %73 = vector.broadcast %cst_29 : f32 to vector<1x256xf32>
    %cst_30 = arith.constant dense<0.000000e+00> : vector<256x1xf32>
    %74 = tpu.matmul %70, %72, %cst_30 {dimension_numbers = #tpu.dot_dimension_numbers<[1], [0], [0], [1], [0, 0, 1, 1], [], []>} : vector<256x256xf32>, vector<256x1xf32>, vector<256x1xf32> -> vector<256x1xf32>
    %cst_31 = arith.constant dense<0.000000e+00> : vector<256x1xf32>
    %75 = tpu.matmul %71, %72, %cst_31 {dimension_numbers = #tpu.dot_dimension_numbers<[1], [0], [0], [1], [0, 0, 1, 1], [], []>} : vector<256x256xf32>, vector<256x1xf32>, vector<256x1xf32> -> vector<256x1xf32>
    %cst_32 = arith.constant dense<0.000000e+00> : vector<1x256xf32>
    %76 = tpu.matmul %73, %70, %cst_32 {dimension_numbers = #tpu.dot_dimension_numbers<[1], [0], [0], [1], [0, 0, 1, 1], [], []>} : vector<1x256xf32>, vector<256x256xf32>, vector<1x256xf32> -> vector<1x256xf32>
    %cst_33 = arith.constant dense<0.000000e+00> : vector<1x256xf32>
    %77 = tpu.matmul %73, %71, %cst_33 {dimension_numbers = #tpu.dot_dimension_numbers<[1], [0], [0], [1], [0, 0, 1, 1], [], []>} : vector<1x256xf32>, vector<256x256xf32>, vector<1x256xf32> -> vector<1x256xf32>
    %cst_34 = arith.constant 1.000000e+30 : f32
    %78 = vector.broadcast %cst_34 : f32 to vector<256x256xf32>
    %79 = arith.select %39, %20, %78 : vector<256x256xi1>, vector<256x256xf32>
    %cst_35 = arith.constant 0.000000e+00 : f32
    %cst_36 = arith.constant 1.000000e+30 : f32
    %80 = arith.subf %cst_35, %cst_36 : f32
    %81 = vector.broadcast %80 : f32 to vector<256x256xf32>
    %82 = arith.select %39, %20, %81 : vector<256x256xi1>, vector<256x256xf32>
    %cst_37 = arith.constant dense<0x7F800000> : vector<256xf32>
    %83 = vector.multi_reduction <minimumf>, %79, %cst_37 [1] : vector<256x256xf32> to vector<256xf32>
    %84 = vector.shape_cast %83 : vector<256xf32> to vector<256x1xf32>
    %cst_38 = arith.constant 4.410000e-02 : f32
    %85 = vector.broadcast %cst_38 : f32 to vector<256x1xf32>
    %86 = arith.cmpf olt, %84, %85 : vector<256x1xf32>
    %cst_39 = arith.constant dense<0xFF800000> : vector<256xf32>
    %87 = vector.multi_reduction <maximumf>, %82, %cst_39 [1] : vector<256x256xf32> to vector<256xf32>
    %88 = vector.shape_cast %87 : vector<256xf32> to vector<256x1xf32>
    %cst_40 = arith.constant 5.625000e-01 : f32
    %89 = vector.broadcast %cst_40 : f32 to vector<256x1xf32>
    %90 = arith.cmpf ogt, %88, %89 : vector<256x1xf32>
    %cst_41 = arith.constant dense<0x7F800000> : vector<256xf32>
    %91 = vector.multi_reduction <minimumf>, %79, %cst_41 [0] : vector<256x256xf32> to vector<256xf32>
    %92 = vector.shape_cast %91 : vector<256xf32> to vector<1x256xf32>
    %cst_42 = arith.constant 4.410000e-02 : f32
    %93 = vector.broadcast %cst_42 : f32 to vector<1x256xf32>
    %94 = arith.cmpf olt, %92, %93 : vector<1x256xf32>
    %cst_43 = arith.constant dense<0xFF800000> : vector<256xf32>
    %95 = vector.multi_reduction <maximumf>, %82, %cst_43 [0] : vector<256x256xf32> to vector<256xf32>
    %96 = vector.shape_cast %95 : vector<256xf32> to vector<1x256xf32>
    %cst_44 = arith.constant 5.625000e-01 : f32
    %97 = vector.broadcast %cst_44 : f32 to vector<1x256xf32>
    %98 = arith.cmpf ogt, %96, %97 : vector<1x256xf32>
    %99 = arith.andi %86, %90 : vector<256x1xi1>
    %100 = arith.andi %94, %98 : vector<1x256xi1>
    %101 = math.log %74 : vector<256x1xf32>
    %102 = math.log %75 : vector<256x1xf32>
    %103 = arith.addf %101, %102 : vector<256x1xf32>
    %cst_45 = arith.constant 0.000000e+00 : f32
    %104 = vector.broadcast %cst_45 : f32 to vector<256x1xf32>
    %105 = arith.maximumf %103, %104 : vector<256x1xf32>
    %106 = math.absf %103 : vector<256x1xf32>
    %cst_46 = arith.constant 0.000000e+00 : f32
    %107 = vector.broadcast %cst_46 : f32 to vector<256x1xf32>
    %108 = arith.subf %107, %106 : vector<256x1xf32>
    %109 = math.exp %108 : vector<256x1xf32>
    %cst_47 = arith.constant 1.000000e+00 : f32
    %110 = vector.broadcast %cst_47 : f32 to vector<256x1xf32>
    %111 = arith.addf %110, %109 : vector<256x1xf32>
    %112 = math.log %111 : vector<256x1xf32>
    %113 = arith.addf %105, %112 : vector<256x1xf32>
    %cst_48 = arith.constant 1.600000e+01 : f32
    %114 = vector.broadcast %cst_48 : f32 to vector<256x1xf32>
    %115 = arith.divf %113, %114 : vector<256x1xf32>
    %116 = math.log %76 : vector<1x256xf32>
    %117 = math.log %77 : vector<1x256xf32>
    %118 = arith.addf %116, %117 : vector<1x256xf32>
    %cst_49 = arith.constant 0.000000e+00 : f32
    %119 = vector.broadcast %cst_49 : f32 to vector<1x256xf32>
    %120 = arith.maximumf %118, %119 : vector<1x256xf32>
    %121 = math.absf %118 : vector<1x256xf32>
    %cst_50 = arith.constant 0.000000e+00 : f32
    %122 = vector.broadcast %cst_50 : f32 to vector<1x256xf32>
    %123 = arith.subf %122, %121 : vector<1x256xf32>
    %124 = math.exp %123 : vector<1x256xf32>
    %cst_51 = arith.constant 1.000000e+00 : f32
    %125 = vector.broadcast %cst_51 : f32 to vector<1x256xf32>
    %126 = arith.addf %125, %124 : vector<1x256xf32>
    %127 = math.log %126 : vector<1x256xf32>
    %128 = arith.addf %120, %127 : vector<1x256xf32>
    %cst_52 = arith.constant 1.600000e+01 : f32
    %129 = vector.broadcast %cst_52 : f32 to vector<1x256xf32>
    %130 = arith.divf %128, %129 : vector<1x256xf32>
    %cst_53 = arith.constant 0.000000e+00 : f32
    %131 = vector.broadcast %cst_53 : f32 to vector<256x1xf32>
    %132 = arith.select %99, %115, %131 : vector<256x1xi1>, vector<256x1xf32>
    %cst_54 = arith.constant dense<0.000000e+00> : vector<1xf32>
    %133 = vector.multi_reduction <add>, %132, %cst_54 [0] : vector<256x1xf32> to vector<1xf32>
    %134 = vector.shape_cast %133 : vector<1xf32> to vector<1x1xf32>
    %135 = arith.extui %99 : vector<256x1xi1> to vector<256x1xi32>
    %136 = arith.sitofp %135 : vector<256x1xi32> to vector<256x1xf32>
    %cst_55 = arith.constant dense<0.000000e+00> : vector<1xf32>
    %137 = vector.multi_reduction <add>, %136, %cst_55 [0] : vector<256x1xf32> to vector<1xf32>
    %138 = vector.shape_cast %137 : vector<1xf32> to vector<1x1xf32>
    %cst_56 = arith.constant 0.000000e+00 : f32
    %139 = vector.broadcast %cst_56 : f32 to vector<1x256xf32>
    %140 = arith.select %100, %130, %139 : vector<1x256xi1>, vector<1x256xf32>
    %cst_57 = arith.constant dense<0.000000e+00> : vector<1xf32>
    %141 = vector.multi_reduction <add>, %140, %cst_57 [1] : vector<1x256xf32> to vector<1xf32>
    %142 = vector.shape_cast %141 : vector<1xf32> to vector<1x1xf32>
    %143 = arith.extui %100 : vector<1x256xi1> to vector<1x256xi32>
    %144 = arith.sitofp %143 : vector<1x256xi32> to vector<1x256xf32>
    %cst_58 = arith.constant dense<0.000000e+00> : vector<1xf32>
    %145 = vector.multi_reduction <add>, %144, %cst_58 [1] : vector<1x256xf32> to vector<1xf32>
    %146 = vector.shape_cast %145 : vector<1xf32> to vector<1x1xf32>
    %cst_59 = arith.constant 1.000000e+00 : f32
    %147 = vector.broadcast %cst_59 : f32 to vector<1x1xf32>
    %148 = arith.maximumf %138, %147 : vector<1x1xf32>
    %149 = arith.divf %134, %148 : vector<1x1xf32>
    %cst_60 = arith.constant 1.000000e+00 : f32
    %150 = vector.broadcast %cst_60 : f32 to vector<1x1xf32>
    %151 = arith.maximumf %146, %150 : vector<1x1xf32>
    %152 = arith.divf %142, %151 : vector<1x1xf32>
    %153 = arith.addf %149, %152 : vector<1x1xf32>
    %cst_61 = arith.constant 5.000000e-01 : f32
    %154 = vector.broadcast %cst_61 : f32 to vector<1x1xf32>
    %155 = arith.mulf %153, %154 : vector<1x1xf32>
    %cst_62 = arith.constant 1.000000e+30 : f32
    %156 = vector.broadcast %cst_62 : f32 to vector<256x256xf32>
    %157 = arith.select %39, %30, %156 : vector<256x256xi1>, vector<256x256xf32>
    %cst_63 = arith.constant 1.000000e+30 : f32
    %158 = vector.broadcast %cst_63 : f32 to vector<256x256xf32>
    %159 = arith.select %44, %30, %158 : vector<256x256xi1>, vector<256x256xf32>
    %cst_64 = arith.constant dense<0x7F800000> : vector<256xf32>
    %160 = vector.multi_reduction <minimumf>, %157, %cst_64 [1] : vector<256x256xf32> to vector<256xf32>
    %161 = vector.shape_cast %160 : vector<256xf32> to vector<256x1xf32>
    %cst_65 = arith.constant dense<0x7F800000> : vector<256xf32>
    %162 = vector.multi_reduction <minimumf>, %159, %cst_65 [1] : vector<256x256xf32> to vector<256xf32>
    %163 = vector.shape_cast %162 : vector<256xf32> to vector<256x1xf32>
    %164 = arith.cmpf ole, %163, %161 : vector<256x1xf32>
    %165 = arith.andi %164, %86 : vector<256x1xi1>
    %166 = arith.extui %86 : vector<256x1xi1> to vector<256x1xi32>
    %167 = arith.sitofp %166 : vector<256x1xi32> to vector<256x1xf32>
    %cst_66 = arith.constant dense<0.000000e+00> : vector<1xf32>
    %168 = vector.multi_reduction <add>, %167, %cst_66 [0] : vector<256x1xf32> to vector<1xf32>
    %169 = vector.shape_cast %168 : vector<1xf32> to vector<1x1xf32>
    %170 = arith.extui %165 : vector<256x1xi1> to vector<256x1xi32>
    %171 = arith.sitofp %170 : vector<256x1xi32> to vector<256x1xf32>
    %cst_67 = arith.constant dense<0.000000e+00> : vector<1xf32>
    %172 = vector.multi_reduction <add>, %171, %cst_67 [0] : vector<256x1xf32> to vector<1xf32>
    %173 = vector.shape_cast %172 : vector<1xf32> to vector<1x1xf32>
    %cst_68 = arith.constant 9.99999996E-13 : f32
    %174 = vector.broadcast %cst_68 : f32 to vector<1x1xf32>
    %175 = arith.addf %169, %174 : vector<1x1xf32>
    %176 = arith.divf %173, %175 : vector<1x1xf32>
    %177 = tpu.iota {dimensions = array<i32: 1>} : vector<1x128xi32>
    %c0_i32 = arith.constant 0 : i32
    %178 = vector.broadcast %c0_i32 : i32 to vector<1x128xi32>
    %179 = arith.cmpi eq, %177, %178 : vector<1x128xi32>
    %c1_i32 = arith.constant 1 : i32
    %180 = vector.broadcast %c1_i32 : i32 to vector<1x128xi32>
    %181 = arith.cmpi eq, %177, %180 : vector<1x128xi32>
    %cst_69 = arith.constant 0.000000e+00 : f32
    %182 = vector.shape_cast %176 : vector<1x1xf32> to vector<1x1xf32>
    %183 = vector.broadcast %182 : vector<1x1xf32> to vector<1x128xf32>
    %184 = vector.broadcast %cst_69 : f32 to vector<1x128xf32>
    %185 = arith.select %181, %183, %184 : vector<1x128xi1>, vector<1x128xf32>
    %186 = vector.shape_cast %155 : vector<1x1xf32> to vector<1x1xf32>
    %187 = vector.broadcast %186 : vector<1x1xf32> to vector<1x128xf32>
    %188 = arith.select %179, %187, %185 : vector<1x128xi1>, vector<1x128xf32>
    %c0_70 = arith.constant 0 : index
    %c0_71 = arith.constant 0 : index
    %189 = vector.load %arg6[%c0_70, %c0_71] : memref<1x128xf32, #tpu.memory_space<vmem>>, vector<1x128xf32>
    tpu.vector_store %arg6[%c0_70, %c0_71], %188 {strides = array<i32>} : memref<1x128xf32, #tpu.memory_space<vmem>>, vector<1x128xf32>,
    return
  }
  func.func @transform_0(%arg0: i32, %arg1: memref<1xi32, #tpu.memory_space<smem>>) -> (i32, i32) {
    %c0_i32 = arith.constant 0 : i32
    %c0_i32_0 = arith.constant 0 : i32
    %c0_i32_1 = arith.constant 0 : i32
    return %c0_i32, %c0_i32_0 : i32, i32
  }
  func.func @transform_1(%arg0: i32, %arg1: memref<1xi32, #tpu.memory_space<smem>>) -> (i32, i32) {
    %c0_i32 = arith.constant 0 : i32
    %c0_i32_0 = arith.constant 0 : i32
    %c0_i32_1 = arith.constant 0 : i32
    return %c0_i32, %c0_i32_0 : i32, i32
  }
  func.func @transform_2(%arg0: i32, %arg1: memref<1xi32, #tpu.memory_space<smem>>) -> (i32, i32) {
    %c0_i32 = arith.constant 0 : i32
    %c0_i32_0 = arith.constant 0 : i32
    %c0_i32_1 = arith.constant 0 : i32
    return %c0_i32, %c0_i32_0 : i32, i32
  }
  func.func @transform_3(%arg0: i32, %arg1: memref<1xi32, #tpu.memory_space<smem>>) -> (i32, i32) {
    %c0_i32 = arith.constant 0 : i32
    %c0_i32_0 = arith.constant 0 : i32
    %c0_i32_1 = arith.constant 0 : i32
    return %c0_i32, %c0_i32_0 : i32, i32
  }
  func.func @transform_4(%arg0: i32, %arg1: memref<1xi32, #tpu.memory_space<smem>>) -> (i32, i32) {
    %c0_i32 = arith.constant 0 : i32
    %c0_i32_0 = arith.constant 0 : i32
    %c0_i32_1 = arith.constant 0 : i32
    return %c0_i32, %c0_i32_0 : i32, i32
  }
}

</mosaic_0001>

<llo_original>
// kernel: metric_loss_forward.1
$region0: #{metric_loss_forward.1}
  #allocation0 [shape = 'u32[]', space=smem, size = 0x4, offset = 0x4, fixed_abs, tag = 'smem constant byte address 0x4 - core index']
  #allocation1 [shape = 'u32[144,128]{1,0:T(1,128)}', space=vmem, size = 0x12000, scoped, tag = 'internal scratch']
  #allocation2 [shape = 's32[1]{0}', space=sflag, size = 0x4, scoped, tag = 'scoped memory for metric_loss_forward.1']
  #allocation3 [shape = 's32[1]{0:T(128)S(6)}', space=smem, size = 0x200, scoped, tag = 'prefetched SMEM operand 0']
  %s0 = inlined_call_operand.<no memory space> [shape: s32[1], index: 0, kind: input, shape index: {}]
  %s1 = inlined_call_operand.vmem [shape: f32[256,8], index: 1, kind: input, shape index: {}]
  %s2 = inlined_call_operand.vmem [shape: f32[8,256], index: 2, kind: input, shape index: {}]
  %s3 = inlined_call_operand.vmem [shape: f32[256,32], index: 3, kind: input, shape index: {}]
  %s4 = inlined_call_operand.vmem [shape: f32[32,256], index: 4, kind: input, shape index: {}]
  %s5 = inlined_call_operand.vmem [shape: f32[1,128], index: 5, kind: output, shape index: {}]
  %s6 = sld [smem:[#allocation0]]
  $region26: #{metric_loss_forward.1} parent=0
    _
  %s8 = ssub.s32 1, %s6
  %s9 = scalar_select 0, %s8, %s6
  %10 = sst [smem:[#allocation3]] %s0
  // Predicated region
  $region2: #{metric_loss_forward.1} parent=0 // pred_check
    _
  $region3: #{metric_loss_forward.1} parent=0 // pred_check_branch
    %12 = sbr.rel (0) target = $region5
  $region4: #{metric_loss_forward.1} parent=0 // pred_region
    _
  $region5: #{metric_loss_forward.1} parent=0 // pred_fallthru
    _
  // Predicated region
  $region6: #{metric_loss_forward.1} parent=0 // pred_check
    _
  $region7: #{metric_loss_forward.1} parent=0 // pred_check_branch
    %14 = sbr.rel (0) target = $region9
  $region8: #{metric_loss_forward.1} parent=0 // pred_region
    _
  $region9: #{metric_loss_forward.1} parent=0 // pred_fallthru
    _
  // Predicated region
  $region10: #{metric_loss_forward.1} parent=0 // pred_check
    _
  $region11: #{metric_loss_forward.1} parent=0 // pred_check_branch
    %16 = sbr.rel (0) target = $region13
  $region12: #{metric_loss_forward.1} parent=0 // pred_region
    _
  $region13: #{metric_loss_forward.1} parent=0 // pred_fallthru
    _
  // Predicated region
  $region14: #{metric_loss_forward.1} parent=0 // pred_check
    _
  $region15: #{metric_loss_forward.1} parent=0 // pred_check_branch
    %18 = sbr.rel (0) target = $region17
  $region16: #{metric_loss_forward.1} parent=0 // pred_region
    _
  $region17: #{metric_loss_forward.1} parent=0 // pred_fallthru
    _
  %s19 = sld [smem:[#allocation3]]
  %v20 = vld [vmem:[%s1] sm:$0xff]
  %v21 = vld [vmem:[%s1 + $0x8] sm:$0xff]
  %v22 = vld [vmem:[%s1 + $0x10] sm:$0xff]
  %v23 = vld [vmem:[%s1 + $0x18] sm:$0xff]
  %v24 = vld [vmem:[%s1 + $0x20] sm:$0xff]
  %v25 = vld [vmem:[%s1 + $0x28] sm:$0xff]
  %v26 = vld [vmem:[%s1 + $0x30] sm:$0xff]
  %v27 = vld [vmem:[%s1 + $0x38] sm:$0xff]
  %v28 = vld [vmem:[%s1 + $0x40] sm:$0xff]
  %v29 = vld [vmem:[%s1 + $0x48] sm:$0xff]
  %v30 = vld [vmem:[%s1 + $0x50] sm:$0xff]
  %v31 = vld [vmem:[%s1 + $0x58] sm:$0xff]
  %v32 = vld [vmem:[%s1 + $0x60] sm:$0xff]
  %v33 = vld [vmem:[%s1 + $0x68] sm:$0xff]
  %v34 = vld [vmem:[%s1 + $0x70] sm:$0xff]
  %v35 = vld [vmem:[%s1 + $0x78] sm:$0xff]
  %v36 = vld [vmem:[%s1 + $0x80] sm:$0xff]
  %v37 = vld [vmem:[%s1 + $0x88] sm:$0xff]
  %v38 = vld [vmem:[%s1 + $0x90] sm:$0xff]
  %v39 = vld [vmem:[%s1 + $0x98] sm:$0xff]
  %v40 = vld [vmem:[%s1 + $0xa0] sm:$0xff]
  %v41 = vld [vmem:[%s1 + $0xa8] sm:$0xff]
  %v42 = vld [vmem:[%s1 + $0xb0] sm:$0xff]
  %v43 = vld [vmem:[%s1 + $0xb8] sm:$0xff]
  %v44 = vld [vmem:[%s1 + $0xc0] sm:$0xff]
  %v45 = vld [vmem:[%s1 + $0xc8] sm:$0xff]
  %v46 = vld [vmem:[%s1 + $0xd0] sm:$0xff]
  %v47 = vld [vmem:[%s1 + $0xd8] sm:$0xff]
  %v48 = vld [vmem:[%s1 + $0xe0] sm:$0xff]
  %v49 = vld [vmem:[%s1 + $0xe8] sm:$0xff]
  %v50 = vld [vmem:[%s1 + $0xf0] sm:$0xff]
  %v51 = vld [vmem:[%s1 + $0xf8] sm:$0xff]
  %v52 = vld [vmem:[%s2] ss:$8 sm:$0x3]
  %s53 = scalar_lea.vmem %s2, 1
  %v54 = vld [vmem:[%s53] ss:$8 sm:$0x3]
  %s55 = scalar_lea.vmem %s2, 2
  %v56 = vld [vmem:[%s55] ss:$8 sm:$0x3]
  %58 = vset.pattern.permute.xlu0 0
  %59 = vperm.xlu0 %58, %v20
  %v60 = vpop.permute.xlu0 %59
  %63 = vset.pattern.permute.xlu0 0
  %64 = vperm.xlu0 %63, %v21
  %v65 = vpop.permute.xlu0 %64
  %68 = vset.pattern.permute.xlu0 0
  %69 = vperm.xlu0 %68, %v22
  %v70 = vpop.permute.xlu0 %69
  %73 = vset.pattern.permute.xlu0 0
  %74 = vperm.xlu0 %73, %v23
  %v75 = vpop.permute.xlu0 %74
  %78 = vset.pattern.permute.xlu0 0
  %79 = vperm.xlu0 %78, %v24
  %v80 = vpop.permute.xlu0 %79
  %83 = vset.pattern.permute.xlu0 0
  %84 = vperm.xlu0 %83, %v25
  %v85 = vpop.permute.xlu0 %84
  %88 = vset.pattern.permute.xlu0 0
  %89 = vperm.xlu0 %88, %v26
  %v90 = vpop.permute.xlu0 %89
  %93 = vset.pattern.permute.xlu0 0
  %94 = vperm.xlu0 %93, %v27
  %v95 = vpop.permute.xlu0 %94
  %98 = vset.pattern.permute.xlu0 0
  %99 = vperm.xlu0 %98, %v28
  %v100 = vpop.permute.xlu0 %99
  %103 = vset.pattern.permute.xlu0 0
  %104 = vperm.xlu0 %103, %v29
  %v105 = vpop.permute.xlu0 %104
  %108 = vset.pattern.permute.xlu0 0
  %109 = vperm.xlu0 %108, %v30
  %v110 = vpop.permute.xlu0 %109
  %113 = vset.pattern.permute.xlu0 0
  %114 = vperm.xlu0 %113, %v31
  %v115 = vpop.permute.xlu0 %114
  %118 = vset.pattern.permute.xlu0 0
  %119 = vperm.xlu0 %118, %v32
  %v120 = vpop.permute.xlu0 %119
  %123 = vset.pattern.permute.xlu0 0
  %124 = vperm.xlu0 %123, %v33
  %v125 = vpop.permute.xlu0 %124
  %128 = vset.pattern.permute.xlu0 0
  %129 = vperm.xlu0 %128, %v34
  %v130 = vpop.permute.xlu0 %129
  %133 = vset.pattern.permute.xlu0 0
  %134 = vperm.xlu0 %133, %v35
  %v135 = vpop.permute.xlu0 %134
  %138 = vset.pattern.permute.xlu0 0
  %139 = vperm.xlu0 %138, %v36
  %v140 = vpop.permute.xlu0 %139
  %143 = vset.pattern.permute.xlu0 0
  %144 = vperm.xlu0 %143, %v37
  %v145 = vpop.permute.xlu0 %144
  %148 = vset.pattern.permute.xlu0 0
  %149 = vperm.xlu0 %148, %v38
  %v150 = vpop.permute.xlu0 %149
  %153 = vset.pattern.permute.xlu0 0
  %154 = vperm.xlu0 %153, %v39
  %v155 = vpop.permute.xlu0 %154
  %158 = vset.pattern.permute.xlu0 0
  %159 = vperm.xlu0 %158, %v40
  %v160 = vpop.permute.xlu0 %159
  %163 = vset.pattern.permute.xlu0 0
  %164 = vperm.xlu0 %163, %v41
  %v165 = vpop.permute.xlu0 %164
  %168 = vset.pattern.permute.xlu0 0
  %169 = vperm.xlu0 %168, %v42
  %v170 = vpop.permute.xlu0 %169
  %173 = vset.pattern.permute.xlu0 0
  %174 = vperm.xlu0 %173, %v43
  %v175 = vpop.permute.xlu0 %174
  %178 = vset.pattern.permute.xlu0 0
  %179 = vperm.xlu0 %178, %v44
  %v180 = vpop.permute.xlu0 %179
  %183 = vset.pattern.permute.xlu0 0
  %184 = vperm.xlu0 %183, %v45
  %v185 = vpop.permute.xlu0 %184
  %188 = vset.pattern.permute.xlu0 0
  %189 = vperm.xlu0 %188, %v46
  %v190 = vpop.permute.xlu0 %189
  %193 = vset.pattern.permute.xlu0 0
  %194 = vperm.xlu0 %193, %v47
  %v195 = vpop.permute.xlu0 %194
  %198 = vset.pattern.permute.xlu0 0
  %199 = vperm.xlu0 %198, %v48
  %v200 = vpop.permute.xlu0 %199
  %203 = vset.pattern.permute.xlu0 0
  %204 = vperm.xlu0 %203, %v49
  %v205 = vpop.permute.xlu0 %204
  %208 = vset.pattern.permute.xlu0 0
  %209 = vperm.xlu0 %208, %v50
  %v210 = vpop.permute.xlu0 %209
  %213 = vset.pattern.permute.xlu0 0
  %214 = vperm.xlu0 %213, %v51
  %v215 = vpop.permute.xlu0 %214
  %v218 = vlaneseq
  %v219 = vshrl.u32 %v218, 7
  %v220 = vsub.s32 0, %v219
  %v221 = vrot.slane %v52, %v220
  %v222 = vlaneseq
  %v223 = vshrl.u32 %v222, 7
  %v224 = vsub.s32 1, %v223
  %v225 = vrot.slane %v52, %v224
  %v228 = vsub.f32 %v60, %v221
  %v229 = vsub.f32 %v60, %v225
  %v230 = vsub.f32 %v65, %v221
  %v231 = vsub.f32 %v65, %v225
  %v232 = vsub.f32 %v70, %v221
  %v233 = vsub.f32 %v70, %v225
  %v234 = vsub.f32 %v75, %v221
  %v235 = vsub.f32 %v75, %v225
  %v236 = vsub.f32 %v80, %v221
  %v237 = vsub.f32 %v80, %v225
  %v238 = vsub.f32 %v85, %v221
  %v239 = vsub.f32 %v85, %v225
  %v240 = vsub.f32 %v90, %v221
  %v241 = vsub.f32 %v90, %v225
  %v242 = vsub.f32 %v95, %v221
  %v243 = vsub.f32 %v95, %v225
  %v244 = vsub.f32 %v100, %v221
  %v245 = vsub.f32 %v100, %v225
  %v246 = vsub.f32 %v105, %v221
  %v247 = vsub.f32 %v105, %v225
  %v248 = vsub.f32 %v110, %v221
  %v249 = vsub.f32 %v110, %v225
  %v250 = vsub.f32 %v115, %v221
  %v251 = vsub.f32 %v115, %v225
  %v252 = vsub.f32 %v120, %v221
  %v253 = vsub.f32 %v120, %v225
  %v254 = vsub.f32 %v125, %v221
  %v255 = vsub.f32 %v125, %v225
  %v256 = vsub.f32 %v130, %v221
  %v257 = vsub.f32 %v130, %v225
  %v258 = vsub.f32 %v135, %v221
  %v259 = vsub.f32 %v135, %v225
  %v260 = vsub.f32 %v140, %v221
  %v261 = vsub.f32 %v140, %v225
  %v262 = vsub.f32 %v145, %v221
  %v263 = vsub.f32 %v145, %v225
  %v264 = vsub.f32 %v150, %v221
  %v265 = vsub.f32 %v150, %v225
  %v266 = vsub.f32 %v155, %v221
  %v267 = vsub.f32 %v155, %v225
  %v268 = vsub.f32 %v160, %v221
  %v269 = vsub.f32 %v160, %v225
  %v270 = vsub.f32 %v165, %v221
  %v271 = vsub.f32 %v165, %v225
  %v272 = vsub.f32 %v170, %v221
  %v273 = vsub.f32 %v170, %v225
  %v274 = vsub.f32 %v175, %v221
  %v275 = vsub.f32 %v175, %v225
  %v276 = vsub.f32 %v180, %v221
  %v277 = vsub.f32 %v180, %v225
  %v278 = vsub.f32 %v185, %v221
  %v279 = vsub.f32 %v185, %v225
  %v280 = vsub.f32 %v190, %v221
  %v281 = vsub.f32 %v190, %v225
  %v282 = vsub.f32 %v195, %v221
  %v283 = vsub.f32 %v195, %v225
  %v284 = vsub.f32 %v200, %v221
  %v285 = vsub.f32 %v200, %v225
  %v286 = vsub.f32 %v205, %v221
  %v287 = vsub.f32 %v205, %v225
  %v288 = vsub.f32 %v210, %v221
  %v289 = vsub.f32 %v210, %v225
  %v290 = vsub.f32 %v215, %v221
  %v291 = vsub.f32 %v215, %v225
  %292 = vset.pattern.permute.xlu0 1
  %293 = vperm.xlu0 %292, %v20
  %v294 = vpop.permute.xlu0 %293
  %296 = vset.pattern.permute.xlu0 1
  %297 = vperm.xlu0 %296, %v21
  %v298 = vpop.permute.xlu0 %297
  %300 = vset.pattern.permute.xlu0 1
  %301 = vperm.xlu0 %300, %v22
  %v302 = vpop.permute.xlu0 %301
  %304 = vset.pattern.permute.xlu0 1
  %305 = vperm.xlu0 %304, %v23
  %v306 = vpop.permute.xlu0 %305
  %308 = vset.pattern.permute.xlu0 1
  %309 = vperm.xlu0 %308, %v24
  %v310 = vpop.permute.xlu0 %309
  %312 = vset.pattern.permute.xlu0 1
  %313 = vperm.xlu0 %312, %v25
  %v314 = vpop.permute.xlu0 %313
  %316 = vset.pattern.permute.xlu0 1
  %317 = vperm.xlu0 %316, %v26
  %v318 = vpop.permute.xlu0 %317
  %320 = vset.pattern.permute.xlu0 1
  %321 = vperm.xlu0 %320, %v27
  %v322 = vpop.permute.xlu0 %321
  %324 = vset.pattern.permute.xlu0 1
  %325 = vperm.xlu0 %324, %v28
  %v326 = vpop.permute.xlu0 %325
  %328 = vset.pattern.permute.xlu0 1
  %329 = vperm.xlu0 %328, %v29
  %v330 = vpop.permute.xlu0 %329
  %332 = vset.pattern.permute.xlu0 1
  %333 = vperm.xlu0 %332, %v30
  %v334 = vpop.permute.xlu0 %333
  %336 = vset.pattern.permute.xlu0 1
  %337 = vperm.xlu0 %336, %v31
  %v338 = vpop.permute.xlu0 %337
  %340 = vset.pattern.permute.xlu0 1
  %341 = vperm.xlu0 %340, %v32
  %v342 = vpop.permute.xlu0 %341
  %344 = vset.pattern.permute.xlu0 1
  %345 = vperm.xlu0 %344, %v33
  %v346 = vpop.permute.xlu0 %345
  %348 = vset.pattern.permute.xlu0 1
  %349 = vperm.xlu0 %348, %v34
  %v350 = vpop.permute.xlu0 %349
  %352 = vset.pattern.permute.xlu0 1
  %353 = vperm.xlu0 %352, %v35
  %v354 = vpop.permute.xlu0 %353
  %356 = vset.pattern.permute.xlu0 1
  %357 = vperm.xlu0 %356, %v36
  %v358 = vpop.permute.xlu0 %357
  %360 = vset.pattern.permute.xlu0 1
  %361 = vperm.xlu0 %360, %v37
  %v362 = vpop.permute.xlu0 %361
  %364 = vset.pattern.permute.xlu0 1
  %365 = vperm.xlu0 %364, %v38
  %v366 = vpop.permute.xlu0 %365
  %368 = vset.pattern.permute.xlu0 1
  %369 = vperm.xlu0 %368, %v39
  %v370 = vpop.permute.xlu0 %369
  %372 = vset.pattern.permute.xlu0 1
  %373 = vperm.xlu0 %372, %v40
  %v374 = vpop.permute.xlu0 %373
  %376 = vset.pattern.permute.xlu0 1
  %377 = vperm.xlu0 %376, %v41
  %v378 = vpop.permute.xlu0 %377
  %380 = vset.pattern.permute.xlu0 1
  %381 = vperm.xlu0 %380, %v42
  %v382 = vpop.permute.xlu0 %381
  %384 = vset.pattern.permute.xlu0 1
  %385 = vperm.xlu0 %384, %v43
  %v386 = vpop.permute.xlu0 %385
  %388 = vset.pattern.permute.xlu0 1
  %389 = vperm.xlu0 %388, %v44
  %v390 = vpop.permute.xlu0 %389
  %392 = vset.pattern.permute.xlu0 1
  %393 = vperm.xlu0 %392, %v45
  %v394 = vpop.permute.xlu0 %393
  %396 = vset.pattern.permute.xlu0 1
  %397 = vperm.xlu0 %396, %v46
  %v398 = vpop.permute.xlu0 %397
  %400 = vset.pattern.permute.xlu0 1
  %401 = vperm.xlu0 %400, %v47
  %v402 = vpop.permute.xlu0 %401
  %404 = vset.pattern.permute.xlu0 1
  %405 = vperm.xlu0 %404, %v48
  %v406 = vpop.permute.xlu0 %405
  %408 = vset.pattern.permute.xlu0 1
  %409 = vperm.xlu0 %408, %v49
  %v410 = vpop.permute.xlu0 %409
  %412 = vset.pattern.permute.xlu0 1
  %413 = vperm.xlu0 %412, %v50
  %v414 = vpop.permute.xlu0 %413
  %416 = vset.pattern.permute.xlu0 1
  %417 = vperm.xlu0 %416, %v51
  %v418 = vpop.permute.xlu0 %417
  %v421 = vlaneseq
  %v422 = vshrl.u32 %v421, 7
  %v423 = vsub.s32 0, %v422
  %v424 = vrot.slane %v54, %v423
  %v425 = vlaneseq
  %v426 = vshrl.u32 %v425, 7
  %v427 = vsub.s32 1, %v426
  %v428 = vrot.slane %v54, %v427
  %v431 = vsub.f32 %v294, %v424
  %v432 = vsub.f32 %v294, %v428
  %v433 = vsub.f32 %v298, %v424
  %v434 = vsub.f32 %v298, %v428
  %v435 = vsub.f32 %v302, %v424
  %v436 = vsub.f32 %v302, %v428
  %v437 = vsub.f32 %v306, %v424
  %v438 = vsub.f32 %v306, %v428
  %v439 = vsub.f32 %v310, %v424
  %v440 = vsub.f32 %v310, %v428
  %v441 = vsub.f32 %v314, %v424
  %v442 = vsub.f32 %v314, %v428
  %v443 = vsub.f32 %v318, %v424
  %v444 = vsub.f32 %v318, %v428
  %v445 = vsub.f32 %v322, %v424
  %v446 = vsub.f32 %v322, %v428
  %v447 = vsub.f32 %v326, %v424
  %v448 = vsub.f32 %v326, %v428
  %v449 = vsub.f32 %v330, %v424
  %v450 = vsub.f32 %v330, %v428
  %v451 = vsub.f32 %v334, %v424
  %v452 = vsub.f32 %v334, %v428
  %v453 = vsub.f32 %v338, %v424
  %v454 = vsub.f32 %v338, %v428
  %v455 = vsub.f32 %v342, %v424
  %v456 = vsub.f32 %v342, %v428
  %v457 = vsub.f32 %v346, %v424
  %v458 = vsub.f32 %v346, %v428
  %v459 = vsub.f32 %v350, %v424
  %v460 = vsub.f32 %v350, %v428
  %v461 = vsub.f32 %v354, %v424
  %v462 = vsub.f32 %v354, %v428
  %v463 = vsub.f32 %v358, %v424
  %v464 = vsub.f32 %v358, %v428
  %v465 = vsub.f32 %v362, %v424
  %v466 = vsub.f32 %v362, %v428
  %v467 = vsub.f32 %v366, %v424
  %v468 = vsub.f32 %v366, %v428
  %v469 = vsub.f32 %v370, %v424
  %v470 = vsub.f32 %v370, %v428
  %v471 = vsub.f32 %v374, %v424
  %v472 = vsub.f32 %v374, %v428
  %v473 = vsub.f32 %v378, %v424
  %v474 = vsub.f32 %v378, %v428
  %v475 = vsub.f32 %v382, %v424
  %v476 = vsub.f32 %v382, %v428
  %v477 = vsub.f32 %v386, %v424
  %v478 = vsub.f32 %v386, %v428
  %v479 = vsub.f32 %v390, %v424
  %v480 = vsub.f32 %v390, %v428
  %v481 = vsub.f32 %v394, %v424
  %v482 = vsub.f32 %v394, %v428
  %v483 = vsub.f32 %v398, %v424
  %v484 = vsub.f32 %v398, %v428
  %v485 = vsub.f32 %v402, %v424
  %v486 = vsub.f32 %v402, %v428
  %v487 = vsub.f32 %v406, %v424
  %v488 = vsub.f32 %v406, %v428
  %v489 = vsub.f32 %v410, %v424
  %v490 = vsub.f32 %v410, %v428
  %v491 = vsub.f32 %v414, %v424
  %v492 = vsub.f32 %v414, %v428
  %v493 = vsub.f32 %v418, %v424
  %v494 = vsub.f32 %v418, %v428
  %495 = vset.pattern.permute.xlu0 2
  %496 = vperm.xlu0 %495, %v20
  %v497 = vpop.permute.xlu0 %496
  %499 = vset.pattern.permute.xlu0 2
  %500 = vperm.xlu0 %499, %v21
  %v501 = vpop.permute.xlu0 %500
  %503 = vset.pattern.permute.xlu0 2
  %504 = vperm.xlu0 %503, %v22
  %v505 = vpop.permute.xlu0 %504
  %507 = vset.pattern.permute.xlu0 2
  %508 = vperm.xlu0 %507, %v23
  %v509 = vpop.permute.xlu0 %508
  %511 = vset.pattern.permute.xlu0 2
  %512 = vperm.xlu0 %511, %v24
  %v513 = vpop.permute.xlu0 %512
  %515 = vset.pattern.permute.xlu0 2
  %516 = vperm.xlu0 %515, %v25
  %v517 = vpop.permute.xlu0 %516
  %519 = vset.pattern.permute.xlu0 2
  %520 = vperm.xlu0 %519, %v26
  %v521 = vpop.permute.xlu0 %520
  %523 = vset.pattern.permute.xlu0 2
  %524 = vperm.xlu0 %523, %v27
  %v525 = vpop.permute.xlu0 %524
  %527 = vset.pattern.permute.xlu0 2
  %528 = vperm.xlu0 %527, %v28
  %v529 = vpop.permute.xlu0 %528
  %531 = vset.pattern.permute.xlu0 2
  %532 = vperm.xlu0 %531, %v29
  %v533 = vpop.permute.xlu0 %532
  %535 = vset.pattern.permute.xlu0 2
  %536 = vperm.xlu0 %535, %v30
  %v537 = vpop.permute.xlu0 %536
  %539 = vset.pattern.permute.xlu0 2
  %540 = vperm.xlu0 %539, %v31
  %v541 = vpop.permute.xlu0 %540
  %543 = vset.pattern.permute.xlu0 2
  %544 = vperm.xlu0 %543, %v32
  %v545 = vpop.permute.xlu0 %544
  %547 = vset.pattern.permute.xlu0 2
  %548 = vperm.xlu0 %547, %v33
  %v549 = vpop.permute.xlu0 %548
  %551 = vset.pattern.permute.xlu0 2
  %552 = vperm.xlu0 %551, %v34
  %v553 = vpop.permute.xlu0 %552
  %555 = vset.pattern.permute.xlu0 2
  %556 = vperm.xlu0 %555, %v35
  %v557 = vpop.permute.xlu0 %556
  %559 = vset.pattern.permute.xlu0 2
  %560 = vperm.xlu0 %559, %v36
  %v561 = vpop.permute.xlu0 %560
  %563 = vset.pattern.permute.xlu0 2
  %564 = vperm.xlu0 %563, %v37
  %v565 = vpop.permute.xlu0 %564
  %567 = vset.pattern.permute.xlu0 2
  %568 = vperm.xlu0 %567, %v38
  %v569 = vpop.permute.xlu0 %568
  %571 = vset.pattern.permute.xlu0 2
  %572 = vperm.xlu0 %571, %v39
  %v573 = vpop.permute.xlu0 %572
  %575 = vset.pattern.permute.xlu0 2
  %576 = vperm.xlu0 %575, %v40
  %v577 = vpop.permute.xlu0 %576
  %579 = vset.pattern.permute.xlu0 2
  %580 = vperm.xlu0 %579, %v41
  %v581 = vpop.permute.xlu0 %580
  %583 = vset.pattern.permute.xlu0 2
  %584 = vperm.xlu0 %583, %v42
  %v585 = vpop.permute.xlu0 %584
  %587 = vset.pattern.permute.xlu0 2
  %588 = vperm.xlu0 %587, %v43
  %v589 = vpop.permute.xlu0 %588
  %591 = vset.pattern.permute.xlu0 2
  %592 = vperm.xlu0 %591, %v44
  %v593 = vpop.permute.xlu0 %592
  %595 = vset.pattern.permute.xlu0 2
  %596 = vperm.xlu0 %595, %v45
  %v597 = vpop.permute.xlu0 %596
  %599 = vset.pattern.permute.xlu0 2
  %600 = vperm.xlu0 %599, %v46
  %v601 = vpop.permute.xlu0 %600
  %603 = vset.pattern.permute.xlu0 2
  %604 = vperm.xlu0 %603, %v47
  %v605 = vpop.permute.xlu0 %604
  %607 = vset.pattern.permute.xlu0 2
  %608 = vperm.xlu0 %607, %v48
  %v609 = vpop.permute.xlu0 %608
  %611 = vset.pattern.permute.xlu0 2
  %612 = vperm.xlu0 %611, %v49
  %v613 = vpop.permute.xlu0 %612
  %615 = vset.pattern.permute.xlu0 2
  %616 = vperm.xlu0 %615, %v50
  %v617 = vpop.permute.xlu0 %616
  %619 = vset.pattern.permute.xlu0 2
  %620 = vperm.xlu0 %619, %v51
  %v621 = vpop.permute.xlu0 %620
  %v624 = vlaneseq
  %v625 = vshrl.u32 %v624, 7
  %v626 = vsub.s32 0, %v625
  %v627 = vrot.slane %v56, %v626
  %v628 = vlaneseq
  %v629 = vshrl.u32 %v628, 7
  %v630 = vsub.s32 1, %v629
  %v631 = vrot.slane %v56, %v630
  %v634 = vsub.f32 %v497, %v627
  %v635 = vsub.f32 %v497, %v631
  %v636 = vsub.f32 %v501, %v627
  %v637 = vsub.f32 %v501, %v631
  %v638 = vsub.f32 %v505, %v627
  %v639 = vsub.f32 %v505, %v631
  %v640 = vsub.f32 %v509, %v627
  %v641 = vsub.f32 %v509, %v631
  %v642 = vsub.f32 %v513, %v627
  %v643 = vsub.f32 %v513, %v631
  %v644 = vsub.f32 %v517, %v627
  %v645 = vsub.f32 %v517, %v631
  %v646 = vsub.f32 %v521, %v627
  %v647 = vsub.f32 %v521, %v631
  %v648 = vsub.f32 %v525, %v627
  %v649 = vsub.f32 %v525, %v631
  %v650 = vsub.f32 %v529, %v627
  %v651 = vsub.f32 %v529, %v631
  %v652 = vsub.f32 %v533, %v627
  %v653 = vsub.f32 %v533, %v631
  %v654 = vsub.f32 %v537, %v627
  %v655 = vsub.f32 %v537, %v631
  %v656 = vsub.f32 %v541, %v627
  %v657 = vsub.f32 %v541, %v631
  %v658 = vsub.f32 %v545, %v627
  %v659 = vsub.f32 %v545, %v631
  %v660 = vsub.f32 %v549, %v627
  %v661 = vsub.f32 %v549, %v631
  %v662 = vsub.f32 %v553, %v627
  %v663 = vsub.f32 %v553, %v631
  %v664 = vsub.f32 %v557, %v627
  %v665 = vsub.f32 %v557, %v631
  %v666 = vsub.f32 %v561, %v627
  %v667 = vsub.f32 %v561, %v631
  %v668 = vsub.f32 %v565, %v627
  %v669 = vsub.f32 %v565, %v631
  %v670 = vsub.f32 %v569, %v627
  %v671 = vsub.f32 %v569, %v631
  %v672 = vsub.f32 %v573, %v627
  %v673 = vsub.f32 %v573, %v631
  %v674 = vsub.f32 %v577, %v627
  %v675 = vsub.f32 %v577, %v631
  %v676 = vsub.f32 %v581, %v627
  %v677 = vsub.f32 %v581, %v631
  %v678 = vsub.f32 %v585, %v627
  %v679 = vsub.f32 %v585, %v631
  %v680 = vsub.f32 %v589, %v627
  %v681 = vsub.f32 %v589, %v631
  %v682 = vsub.f32 %v593, %v627
  %v683 = vsub.f32 %v593, %v631
  %v684 = vsub.f32 %v597, %v627
  %v685 = vsub.f32 %v597, %v631
  %v686 = vsub.f32 %v601, %v627
  %v687 = vsub.f32 %v601, %v631
  %v688 = vsub.f32 %v605, %v627
  %v689 = vsub.f32 %v605, %v631
  %v690 = vsub.f32 %v609, %v627
  %v691 = vsub.f32 %v609, %v631
  %v692 = vsub.f32 %v613, %v627
  %v693 = vsub.f32 %v613, %v631
  %v694 = vsub.f32 %v617, %v627
  %v695 = vsub.f32 %v617, %v631
  %v696 = vsub.f32 %v621, %v627
  %v697 = vsub.f32 %v621, %v631
  %v698 = vmul.f32 %v228, %v228
  %v699 = vmul.f32 %v229, %v229
  %v700 = vmul.f32 %v230, %v230
  %v701 = vmul.f32 %v231, %v231
  %v702 = vmul.f32 %v232, %v232
  %v703 = vmul.f32 %v233, %v233
  %v704 = vmul.f32 %v234, %v234
  %v705 = vmul.f32 %v235, %v235
  %v706 = vmul.f32 %v236, %v236
  %v707 = vmul.f32 %v237, %v237
  %v708 = vmul.f32 %v238, %v238
  %v709 = vmul.f32 %v239, %v239
  %v710 = vmul.f32 %v240, %v240
  %v711 = vmul.f32 %v241, %v241
  %v712 = vmul.f32 %v242, %v242
  %v713 = vmul.f32 %v243, %v243
  %v714 = vmul.f32 %v244, %v244
  %v715 = vmul.f32 %v245, %v245
  %v716 = vmul.f32 %v246, %v246
  %v717 = vmul.f32 %v247, %v247
  %v718 = vmul.f32 %v248, %v248
  %v719 = vmul.f32 %v249, %v249
  %v720 = vmul.f32 %v250, %v250
  %v721 = vmul.f32 %v251, %v251
  %v722 = vmul.f32 %v252, %v252
  %v723 = vmul.f32 %v253, %v253
  %v724 = vmul.f32 %v254, %v254
  %v725 = vmul.f32 %v255, %v255
  %v726 = vmul.f32 %v256, %v256
  %v727 = vmul.f32 %v257, %v257
  %v728 = vmul.f32 %v258, %v258
  %v729 = vmul.f32 %v259, %v259
  %v730 = vmul.f32 %v260, %v260
  %v731 = vmul.f32 %v261, %v261
  %v732 = vmul.f32 %v262, %v262
  %v733 = vmul.f32 %v263, %v263
  %v734 = vmul.f32 %v264, %v264
  %v735 = vmul.f32 %v265, %v265
  %v736 = vmul.f32 %v266, %v266
  %v737 = vmul.f32 %v267, %v267
  %v738 = vmul.f32 %v268, %v268
  %v739 = vmul.f32 %v269, %v269
  %v740 = vmul.f32 %v270, %v270
  %v741 = vmul.f32 %v271, %v271
  %v742 = vmul.f32 %v272, %v272
  %v743 = vmul.f32 %v273, %v273
  %v744 = vmul.f32 %v274, %v274
  %v745 = vmul.f32 %v275, %v275
  %v746 = vmul.f32 %v276, %v276
  %v747 = vmul.f32 %v277, %v277
  %v748 = vmul.f32 %v278, %v278
  %v749 = vmul.f32 %v279, %v279
  %v750 = vmul.f32 %v280, %v280
  %v751 = vmul.f32 %v281, %v281
  %v752 = vmul.f32 %v282, %v282
  %v753 = vmul.f32 %v283, %v283
  %v754 = vmul.f32 %v284, %v284
  %v755 = vmul.f32 %v285, %v285
  %v756 = vmul.f32 %v286, %v286
  %v757 = vmul.f32 %v287, %v287
  %v758 = vmul.f32 %v288, %v288
  %v759 = vmul.f32 %v289, %v289
  %v760 = vmul.f32 %v290, %v290
  %v761 = vmul.f32 %v291, %v291
  %v762 = vmul.f32 %v431, %v431
  %v763 = vmul.f32 %v432, %v432
  %v764 = vmul.f32 %v433, %v433
  %v765 = vmul.f32 %v434, %v434
  %v766 = vmul.f32 %v435, %v435
  %v767 = vmul.f32 %v436, %v436
  %v768 = vmul.f32 %v437, %v437
  %v769 = vmul.f32 %v438, %v438
  %v770 = vmul.f32 %v439, %v439
  %v771 = vmul.f32 %v440, %v440
  %v772 = vmul.f32 %v441, %v441
  %v773 = vmul.f32 %v442, %v442
  %v774 = vmul.f32 %v443, %v443
  %v775 = vmul.f32 %v444, %v444
  %v776 = vmul.f32 %v445, %v445
  %v777 = vmul.f32 %v446, %v446
  %v778 = vmul.f32 %v447, %v447
  %v779 = vmul.f32 %v448, %v448
  %v780 = vmul.f32 %v449, %v449
  %v781 = vmul.f32 %v450, %v450
  %v782 = vmul.f32 %v451, %v451
  %v783 = vmul.f32 %v452, %v452
  %v784 = vmul.f32 %v453, %v453
  %v785 = vmul.f32 %v454, %v454
  %v786 = vmul.f32 %v455, %v455
  %v787 = vmul.f32 %v456, %v456
  %v788 = vmul.f32 %v457, %v457
  %v789 = vmul.f32 %v458, %v458
  %v790 = vmul.f32 %v459, %v459
  %v791 = vmul.f32 %v460, %v460
  %v792 = vmul.f32 %v461, %v461
  %v793 = vmul.f32 %v462, %v462
  %v794 = vmul.f32 %v463, %v463
  %v795 = vmul.f32 %v464, %v464
  %v796 = vmul.f32 %v465, %v465
  %v797 = vmul.f32 %v466, %v466
  %v798 = vmul.f32 %v467, %v467
  %v799 = vmul.f32 %v468, %v468
  %v800 = vmul.f32 %v469, %v469
  %v801 = vmul.f32 %v470, %v470
  %v802 = vmul.f32 %v471, %v471
  %v803 = vmul.f32 %v472, %v472
  %v804 = vmul.f32 %v473, %v473
  %v805 = vmul.f32 %v474, %v474
  %v806 = vmul.f32 %v475, %v475
  %v807 = vmul.f32 %v476, %v476
  %v808 = vmul.f32 %v477, %v477
  %v809 = vmul.f32 %v478, %v478
  %v810 = vmul.f32 %v479, %v479
  %v811 = vmul.f32 %v480, %v480
  %v812 = vmul.f32 %v481, %v481
  %v813 = vmul.f32 %v482, %v482
  %v814 = vmul.f32 %v483, %v483
  %v815 = vmul.f32 %v484, %v484
  %v816 = vmul.f32 %v485, %v485
  %v817 = vmul.f32 %v486, %v486
  %v818 = vmul.f32 %v487, %v487
  %v819 = vmul.f32 %v488, %v488
  %v820 = vmul.f32 %v489, %v489
  %v821 = vmul.f32 %v490, %v490
  %v822 = vmul.f32 %v491, %v491
  %v823 = vmul.f32 %v492, %v492
  %v824 = vmul.f32 %v493, %v493
  %v825 = vmul.f32 %v494, %v494
  %v826 = vadd.f32 %v698, %v762
  %v827 = vadd.f32 %v699, %v763
  %v828 = vadd.f32 %v700, %v764
  %v829 = vadd.f32 %v701, %v765
  %v830 = vadd.f32 %v702, %v766
  %v831 = vadd.f32 %v703, %v767
  %v832 = vadd.f32 %v704, %v768
  %v833 = vadd.f32 %v705, %v769
  %v834 = vadd.f32 %v706, %v770
  %v835 = vadd.f32 %v707, %v771
  %v836 = vadd.f32 %v708, %v772
  %v837 = vadd.f32 %v709, %v773
  %v838 = vadd.f32 %v710, %v774
  %v839 = vadd.f32 %v711, %v775
  %v840 = vadd.f32 %v712, %v776
  %v841 = vadd.f32 %v713, %v777
  %v842 = vadd.f32 %v714, %v778
  %v843 = vadd.f32 %v715, %v779
  %v844 = vadd.f32 %v716, %v780
  %v845 = vadd.f32 %v717, %v781
  %v846 = vadd.f32 %v718, %v782
  %v847 = vadd.f32 %v719, %v783
  %v848 = vadd.f32 %v720, %v784
  %v849 = vadd.f32 %v721, %v785
  %v850 = vadd.f32 %v722, %v786
  %v851 = vadd.f32 %v723, %v787
  %v852 = vadd.f32 %v724, %v788
  %v853 = vadd.f32 %v725, %v789
  %v854 = vadd.f32 %v726, %v790
  %v855 = vadd.f32 %v727, %v791
  %v856 = vadd.f32 %v728, %v792
  %v857 = vadd.f32 %v729, %v793
  %v858 = vadd.f32 %v730, %v794
  %v859 = vadd.f32 %v731, %v795
  %v860 = vadd.f32 %v732, %v796
  %v861 = vadd.f32 %v733, %v797
  %v862 = vadd.f32 %v734, %v798
  %v863 = vadd.f32 %v735, %v799
  %v864 = vadd.f32 %v736, %v800
  %v865 = vadd.f32 %v737, %v801
  %v866 = vadd.f32 %v738, %v802
  %v867 = vadd.f32 %v739, %v803
  %v868 = vadd.f32 %v740, %v804
  %v869 = vadd.f32 %v741, %v805
  %v870 = vadd.f32 %v742, %v806
  %v871 = vadd.f32 %v743, %v807
  %v872 = vadd.f32 %v744, %v808
  %v873 = vadd.f32 %v745, %v809
  %v874 = vadd.f32 %v746, %v810
  %v875 = vadd.f32 %v747, %v811
  %v876 = vadd.f32 %v748, %v812
  %v877 = vadd.f32 %v749, %v813
  %v878 = vadd.f32 %v750, %v814
  %v879 = vadd.f32 %v751, %v815
  %v880 = vadd.f32 %v752, %v816
  %v881 = vadd.f32 %v753, %v817
  %v882 = vadd.f32 %v754, %v818
  %v883 = vadd.f32 %v755, %v819
  %v884 = vadd.f32 %v756, %v820
  %v885 = vadd.f32 %v757, %v821
  %v886 = vadd.f32 %v758, %v822
  %v887 = vadd.f32 %v759, %v823
  %v888 = vadd.f32 %v760, %v824
  %v889 = vadd.f32 %v761, %v825
  %v890 = vmul.f32 %v634, %v634
  %v891 = vmul.f32 %v635, %v635
  %v892 = vmul.f32 %v636, %v636
  %v893 = vmul.f32 %v637, %v637
  %v894 = vmul.f32 %v638, %v638
  %v895 = vmul.f32 %v639, %v639
  %v896 = vmul.f32 %v640, %v640
  %v897 = vmul.f32 %v641, %v641
  %v898 = vmul.f32 %v642, %v642
  %v899 = vmul.f32 %v643, %v643
  %v900 = vmul.f32 %v644, %v644
  %v901 = vmul.f32 %v645, %v645
  %v902 = vmul.f32 %v646, %v646
  %v903 = vmul.f32 %v647, %v647
  %v904 = vmul.f32 %v648, %v648
  %v905 = vmul.f32 %v649, %v649
  %v906 = vmul.f32 %v650, %v650
  %v907 = vmul.f32 %v651, %v651
  %v908 = vmul.f32 %v652, %v652
  %v909 = vmul.f32 %v653, %v653
  %v910 = vmul.f32 %v654, %v654
  %v911 = vmul.f32 %v655, %v655
  %v912 = vmul.f32 %v656, %v656
  %v913 = vmul.f32 %v657, %v657
  %v914 = vmul.f32 %v658, %v658
  %v915 = vmul.f32 %v659, %v659
  %v916 = vmul.f32 %v660, %v660
  %v917 = vmul.f32 %v661, %v661
  %v918 = vmul.f32 %v662, %v662
  %v919 = vmul.f32 %v663, %v663
  %v920 = vmul.f32 %v664, %v664
  %v921 = vmul.f32 %v665, %v665
  %v922 = vmul.f32 %v666, %v666
  %v923 = vmul.f32 %v667, %v667
  %v924 = vmul.f32 %v668, %v668
  %v925 = vmul.f32 %v669, %v669
  %v926 = vmul.f32 %v670, %v670
  %v927 = vmul.f32 %v671, %v671
  %v928 = vmul.f32 %v672, %v672
  %v929 = vmul.f32 %v673, %v673
  %v930 = vmul.f32 %v674, %v674
  %v931 = vmul.f32 %v675, %v675
  %v932 = vmul.f32 %v676, %v676
  %v933 = vmul.f32 %v677, %v677
  %v934 = vmul.f32 %v678, %v678
  %v935 = vmul.f32 %v679, %v679
  %v936 = vmul.f32 %v680, %v680
  %v937 = vmul.f32 %v681, %v681
  %v938 = vmul.f32 %v682, %v682
  %v939 = vmul.f32 %v683, %v683
  %v940 = vmul.f32 %v684, %v684
  %v941 = vmul.f32 %v685, %v685
  %v942 = vmul.f32 %v686, %v686
  %v943 = vmul.f32 %v687, %v687
  %v944 = vmul.f32 %v688, %v688
  %v945 = vmul.f32 %v689, %v689
  %v946 = vmul.f32 %v690, %v690
  %v947 = vmul.f32 %v691, %v691
  %v948 = vmul.f32 %v692, %v692
  %v949 = vmul.f32 %v693, %v693
  %v950 = vmul.f32 %v694, %v694
  %v951 = vmul.f32 %v695, %v695
  %v952 = vmul.f32 %v696, %v696
  %v953 = vmul.f32 %v697, %v697
  %v954 = vadd.f32 %v826, %v890
  %v955 = vadd.f32 %v827, %v891
  %v956 = vadd.f32 %v828, %v892
  %v957 = vadd.f32 %v829, %v893
  %v958 = vadd.f32 %v830, %v894
  %v959 = vadd.f32 %v831, %v895
  %v960 = vadd.f32 %v832, %v896
  %v961 = vadd.f32 %v833, %v897
  %v962 = vadd.f32 %v834, %v898
  %v963 = vadd.f32 %v835, %v899
  %v964 = vadd.f32 %v836, %v900
  %v965 = vadd.f32 %v837, %v901
  %v966 = vadd.f32 %v838, %v902
  %v967 = vadd.f32 %v839, %v903
  %v968 = vadd.f32 %v840, %v904
  %v969 = vadd.f32 %v841, %v905
  %v970 = vadd.f32 %v842, %v906
  %v971 = vadd.f32 %v843, %v907
  %v972 = vadd.f32 %v844, %v908
  %v973 = vadd.f32 %v845, %v909
  %v974 = vadd.f32 %v846, %v910
  %v975 = vadd.f32 %v847, %v911
  %v976 = vadd.f32 %v848, %v912
  %v977 = vadd.f32 %v849, %v913
  %v978 = vadd.f32 %v850, %v914
  %v979 = vadd.f32 %v851, %v915
  %v980 = vadd.f32 %v852, %v916
  %v981 = vadd.f32 %v853, %v917
  %v982 = vadd.f32 %v854, %v918
  %v983 = vadd.f32 %v855, %v919
  %v984 = vadd.f32 %v856, %v920
  %v985 = vadd.f32 %v857, %v921
  %v986 = vadd.f32 %v858, %v922
  %v987 = vadd.f32 %v859, %v923
  %v988 = vadd.f32 %v860, %v924
  %v989 = vadd.f32 %v861, %v925
  %v990 = vadd.f32 %v862, %v926
  %v991 = vadd.f32 %v863, %v927
  %v992 = vadd.f32 %v864, %v928
  %v993 = vadd.f32 %v865, %v929
  %v994 = vadd.f32 %v866, %v930
  %v995 = vadd.f32 %v867, %v931
  %v996 = vadd.f32 %v868, %v932
  %v997 = vadd.f32 %v869, %v933
  %v998 = vadd.f32 %v870, %v934
  %v999 = vadd.f32 %v871, %v935
  %v1000 = vadd.f32 %v872, %v936
  %v1001 = vadd.f32 %v873, %v937
  %v1002 = vadd.f32 %v874, %v938
  %v1003 = vadd.f32 %v875, %v939
  %v1004 = vadd.f32 %v876, %v940
  %v1005 = vadd.f32 %v877, %v941
  %v1006 = vadd.f32 %v878, %v942
  %v1007 = vadd.f32 %v879, %v943
  %v1008 = vadd.f32 %v880, %v944
  %v1009 = vadd.f32 %v881, %v945
  %v1010 = vadd.f32 %v882, %v946
  %v1011 = vadd.f32 %v883, %v947
  %v1012 = vadd.f32 %v884, %v948
  %v1013 = vadd.f32 %v885, %v949
  %v1014 = vadd.f32 %v886, %v950
  %v1015 = vadd.f32 %v887, %v951
  %v1016 = vadd.f32 %v888, %v952
  %v1017 = vadd.f32 %v889, %v953
  %v1018 = vld [vmem:[%s3] sm:$0xff]
  %v1019 = vld [vmem:[%s3 + $0x8] sm:$0xff]
  %v1020 = vld [vmem:[%s3 + $0x10] sm:$0xff]
  %v1021 = vld [vmem:[%s3 + $0x18] sm:$0xff]
  %v1022 = vld [vmem:[%s3 + $0x20] sm:$0xff]
  %v1023 = vld [vmem:[%s3 + $0x28] sm:$0xff]
  %v1024 = vld [vmem:[%s3 + $0x30] sm:$0xff]
  %v1025 = vld [vmem:[%s3 + $0x38] sm:$0xff]
  %v1026 = vld [vmem:[%s3 + $0x40] sm:$0xff]
  %v1027 = vld [vmem:[%s3 + $0x48] sm:$0xff]
  %v1028 = vld [vmem:[%s3 + $0x50] sm:$0xff]
  %v1029 = vld [vmem:[%s3 + $0x58] sm:$0xff]
  %v1030 = vld [vmem:[%s3 + $0x60] sm:$0xff]
  %v1031 = vld [vmem:[%s3 + $0x68] sm:$0xff]
  %v1032 = vld [vmem:[%s3 + $0x70] sm:$0xff]
  %v1033 = vld [vmem:[%s3 + $0x78] sm:$0xff]
  %v1034 = vld [vmem:[%s3 + $0x80] sm:$0xff]
  %v1035 = vld [vmem:[%s3 + $0x88] sm:$0xff]
  %v1036 = vld [vmem:[%s3 + $0x90] sm:$0xff]
  %v1037 = vld [vmem:[%s3 + $0x98] sm:$0xff]
  %v1038 = vld [vmem:[%s3 + $0xa0] sm:$0xff]
  %v1039 = vld [vmem:[%s3 + $0xa8] sm:$0xff]
  %v1040 = vld [vmem:[%s3 + $0xb0] sm:$0xff]
  %v1041 = vld [vmem:[%s3 + $0xb8] sm:$0xff]
  %v1042 = vld [vmem:[%s3 + $0xc0] sm:$0xff]
  %v1043 = vld [vmem:[%s3 + $0xc8] sm:$0xff]
  %v1044 = vld [vmem:[%s3 + $0xd0] sm:$0xff]
  %v1045 = vld [vmem:[%s3 + $0xd8] sm:$0xff]
  %v1046 = vld [vmem:[%s3 + $0xe0] sm:$0xff]
  %v1047 = vld [vmem:[%s3 + $0xe8] sm:$0xff]
  %v1048 = vld [vmem:[%s3 + $0xf0] sm:$0xff]
  %v1049 = vld [vmem:[%s3 + $0xf8] sm:$0xff]
  %v1050 = vld [vmem:[%s4] sm:$0xff]
  %v1051 = vld [vmem:[%s4 + $0x8] sm:$0xff]
  %v1052 = vld [vmem:[%s4 + $0x10] sm:$0xff]
  %v1053 = vld [vmem:[%s4 + $0x18] sm:$0xff]
  %v1054 = vld [vmem:[%s4 + $0x20] sm:$0xff]
  %v1055 = vld [vmem:[%s4 + $0x28] sm:$0xff]
  %v1056 = vld [vmem:[%s4 + $0x30] sm:$0xff]
  %v1057 = vld [vmem:[%s4 + $0x38] sm:$0xff]
  %vm1058 = vcmask 261120
  %v1060 = vsel %vm1058, %v1018, 0
  %v1063 = vsel %vm1058, %v1019, 0
  %v1066 = vsel %vm1058, %v1020, 0
  %v1069 = vsel %vm1058, %v1021, 0
  %v1072 = vsel %vm1058, %v1022, 0
  %v1075 = vsel %vm1058, %v1023, 0
  %v1078 = vsel %vm1058, %v1024, 0
  %v1081 = vsel %vm1058, %v1025, 0
  %v1084 = vsel %vm1058, %v1026, 0
  %v1087 = vsel %vm1058, %v1027, 0
  %v1090 = vsel %vm1058, %v1028, 0
  %v1093 = vsel %vm1058, %v1029, 0
  %v1096 = vsel %vm1058, %v1030, 0
  %v1099 = vsel %vm1058, %v1031, 0
  %v1102 = vsel %vm1058, %v1032, 0
  %v1105 = vsel %vm1058, %v1033, 0
  %v1108 = vsel %vm1058, %v1034, 0
  %v1111 = vsel %vm1058, %v1035, 0
  %v1114 = vsel %vm1058, %v1036, 0
  %v1117 = vsel %vm1058, %v1037, 0
  %v1120 = vsel %vm1058, %v1038, 0
  %v1123 = vsel %vm1058, %v1039, 0
  %v1126 = vsel %vm1058, %v1040, 0
  %v1129 = vsel %vm1058, %v1041, 0
  %v1132 = vsel %vm1058, %v1042, 0
  %v1135 = vsel %vm1058, %v1043, 0
  %v1138 = vsel %vm1058, %v1044, 0
  %v1141 = vsel %vm1058, %v1045, 0
  %v1144 = vsel %vm1058, %v1046, 0
  %v1147 = vsel %vm1058, %v1047, 0
  %v1150 = vsel %vm1058, %v1048, 0
  %v1153 = vsel %vm1058, %v1049, 0
  %1155 = vmatprep.subr.mxu0 %v1051
  %1156 = vmatpush1.msra.mxu0 %v1050
  %1157 = vmatprep.subr.mxu0 %v1053
  %1158 = vmatpush1.msra.mxu0 %v1052
  %1159 = vmatprep.subr.mxu0 %v1055
  %1160 = vmatpush1.msra.mxu0 %v1054
  %1161 = vmatprep.subr.mxu0 %v1057
  %1162 = vmatpush1.msra.mxu0 %v1056
  %1163 = vmatprep.subr.mxu0 0.0
  %1164 = vmatpush1.msra.mxu0 0.0
  %1165 = vmatprep.subr.mxu0 0.0
  %1166 = vmatpush1.msra.mxu0 0.0
  %1167 = vmatprep.subr.mxu0 0.0
  %1168 = vmatpush1.msra.mxu0 0.0
  %1169 = vmatprep.subr.mxu0 0.0
  %1170 = vmatpush1.msra.mxu0 0.0
  %1171 = vmatprep.subr.mxu0 0.0
  %1172 = vmatpush1.msra.mxu0 0.0
  %1173 = vmatprep.subr.mxu0 0.0
  %1174 = vmatpush1.msra.mxu0 0.0
  %1175 = vmatprep.subr.mxu0 0.0
  %1176 = vmatpush1.msra.mxu0 0.0
  %1177 = vmatprep.subr.mxu0 0.0
  %1178 = vmatpush1.msra.mxu0 0.0
  %1179 = vmatprep.subr.mxu0 0.0
  %1180 = vmatpush1.msra.mxu0 0.0
  %1181 = vmatprep.subr.mxu0 0.0
  %1182 = vmatpush1.msra.mxu0 0.0
  %1183 = vmatprep.subr.mxu0 0.0
  %1184 = vmatpush1.msra.mxu0 0.0
  %1185 = vmatprep.subr.mxu0 0.0
  %1186 = vmatpush1.msra.mxu0 0.0
  %1187 = vmatprep.subr.mxu0 0.0
  %1188 = vmatpush1.msra.mxu0 0.0
  %1189 = vmatprep.subr.mxu0 0.0
  %1190 = vmatpush1.msra.mxu0 0.0
  %1191 = vmatprep.subr.mxu0 0.0
  %1192 = vmatpush1.msra.mxu0 0.0
  %1193 = vmatprep.subr.mxu0 0.0
  %1194 = vmatpush1.msra.mxu0 0.0
  %1195 = vmatprep.subr.mxu0 0.0
  %1196 = vmatpush1.msra.mxu0 0.0
  %1197 = vmatprep.subr.mxu0 0.0
  %1198 = vmatpush1.msra.mxu0 0.0
  %1199 = vmatprep.subr.mxu0 0.0
  %1200 = vmatpush1.msra.mxu0 0.0
  %1201 = vmatprep.subr.mxu0 0.0
  %1202 = vmatpush1.msra.mxu0 0.0
  %1203 = vmatprep.subr.mxu0 0.0
  %1204 = vmatpush1.msra.mxu0 0.0
  %1205 = vmatprep.subr.mxu0 0.0
  %1206 = vmatpush1.msra.mxu0 0.0
  %1207 = vmatprep.subr.mxu0 0.0
  %1208 = vmatpush1.msra.mxu0 0.0
  %1209 = vmatprep.subr.mxu0 0.0
  %1210 = vmatpush1.msra.mxu0 0.0
  %1211 = vmatprep.subr.mxu0 0.0
  %1212 = vmatpush1.msra.mxu0 0.0
  %1213 = vmatprep.subr.mxu0 0.0
  %1214 = vmatpush1.msra.mxu0 0.0
  %1215 = vmatprep.subr.mxu0 0.0
  %1216 = vmatpush1.msra.mxu0 0.0
  %1217 = vmatprep.subr.mxu0 0.0
  %1218 = vmatpush1.msra.mxu0 0.0
  %1219 = vmatprep.mubr.f32.mxu0 0.0
  %1220 = vmatmul.mubr.f32.gmra.mrb[0].mxu0 %v1060
  %v1221 = vpop.f32.mrb[0].mxu0
  %v1222 = vadd.f32 0.0, %v1221
  %v1223 = vpop.f32.mrb[0].mxu0
  %v1224 = vadd.f32 0.0, %v1223
  %1225 = vmatprep.mubr.f32.mxu0 0.0
  %1226 = vmatmul.mubr.f32.gmra.mrb[0].mxu0 %v1063
  %v1227 = vpop.f32.mrb[0].mxu0
  %v1228 = vadd.f32 0.0, %v1227
  %v1229 = vpop.f32.mrb[0].mxu0
  %v1230 = vadd.f32 0.0, %v1229
  %1231 = vmatprep.mubr.f32.mxu0 0.0
  %1232 = vmatmul.mubr.f32.gmra.mrb[0].mxu0 %v1066
  %v1233 = vpop.f32.mrb[0].mxu0
  %v1234 = vadd.f32 0.0, %v1233
  %v1235 = vpop.f32.mrb[0].mxu0
  %v1236 = vadd.f32 0.0, %v1235
  %1237 = vmatprep.mubr.f32.mxu0 0.0
  %1238 = vmatmul.mubr.f32.gmra.mrb[0].mxu0 %v1069
  %v1239 = vpop.f32.mrb[0].mxu0
  %v1240 = vadd.f32 0.0, %v1239
  %v1241 = vpop.f32.mrb[0].mxu0
  %v1242 = vadd.f32 0.0, %v1241
  %1243 = vmatprep.mubr.f32.mxu0 0.0
  %1244 = vmatmul.mubr.f32.gmra.mrb[0].mxu0 %v1072
  %v1245 = vpop.f32.mrb[0].mxu0
  %v1246 = vadd.f32 0.0, %v1245
  %v1247 = vpop.f32.mrb[0].mxu0
  %v1248 = vadd.f32 0.0, %v1247
  %1249 = vmatprep.mubr.f32.mxu0 0.0
  %1250 = vmatmul.mubr.f32.gmra.mrb[0].mxu0 %v1075
  %v1251 = vpop.f32.mrb[0].mxu0
  %v1252 = vadd.f32 0.0, %v1251
  %v1253 = vpop.f32.mrb[0].mxu0
  %v1254 = vadd.f32 0.0, %v1253
  %1255 = vmatprep.mubr.f32.mxu0 0.0
  %1256 = vmatmul.mubr.f32.gmra.mrb[0].mxu0 %v1078
  %v1257 = vpop.f32.mrb[0].mxu0
  %v1258 = vadd.f32 0.0, %v1257
  %v1259 = vpop.f32.mrb[0].mxu0
  %v1260 = vadd.f32 0.0, %v1259
  %1261 = vmatprep.mubr.f32.mxu0 0.0
  %1262 = vmatmul.mubr.f32.gmra.mrb[0].mxu0 %v1081
  %v1263 = vpop.f32.mrb[0].mxu0
  %v1264 = vadd.f32 0.0, %v1263
  %v1265 = vpop.f32.mrb[0].mxu0
  %v1266 = vadd.f32 0.0, %v1265
  %1267 = vmatprep.mubr.f32.mxu0 0.0
  %1268 = vmatmul.mubr.f32.gmra.mrb[0].mxu0 %v1084
  %v1269 = vpop.f32.mrb[0].mxu0
  %v1270 = vadd.f32 0.0, %v1269
  %v1271 = vpop.f32.mrb[0].mxu0
  %v1272 = vadd.f32 0.0, %v1271
  %1273 = vmatprep.mubr.f32.mxu0 0.0
  %1274 = vmatmul.mubr.f32.gmra.mrb[0].mxu0 %v1087
  %v1275 = vpop.f32.mrb[0].mxu0
  %v1276 = vadd.f32 0.0, %v1275
  %v1277 = vpop.f32.mrb[0].mxu0
  %v1278 = vadd.f32 0.0, %v1277
  %1279 = vmatprep.mubr.f32.mxu0 0.0
  %1280 = vmatmul.mubr.f32.gmra.mrb[0].mxu0 %v1090
  %v1281 = vpop.f32.mrb[0].mxu0
  %v1282 = vadd.f32 0.0, %v1281
  %v1283 = vpop.f32.mrb[0].mxu0
  %v1284 = vadd.f32 0.0, %v1283
  %1285 = vmatprep.mubr.f32.mxu0 0.0
  %1286 = vmatmul.mubr.f32.gmra.mrb[0].mxu0 %v1093
  %v1287 = vpop.f32.mrb[0].mxu0
  %v1288 = vadd.f32 0.0, %v1287
  %v1289 = vpop.f32.mrb[0].mxu0
  %v1290 = vadd.f32 0.0, %v1289
  %1291 = vmatprep.mubr.f32.mxu0 0.0
  %1292 = vmatmul.mubr.f32.gmra.mrb[0].mxu0 %v1096
  %v1293 = vpop.f32.mrb[0].mxu0
  %v1294 = vadd.f32 0.0, %v1293
  %v1295 = vpop.f32.mrb[0].mxu0
  %v1296 = vadd.f32 0.0, %v1295
  %1297 = vmatprep.mubr.f32.mxu0 0.0
  %1298 = vmatmul.mubr.f32.gmra.mrb[0].mxu0 %v1099
  %v1299 = vpop.f32.mrb[0].mxu0
  %v1300 = vadd.f32 0.0, %v1299
  %v1301 = vpop.f32.mrb[0].mxu0
  %v1302 = vadd.f32 0.0, %v1301
  %1303 = vmatprep.mubr.f32.mxu0 0.0
  %1304 = vmatmul.mubr.f32.gmra.mrb[0].mxu0 %v1102
  %v1305 = vpop.f32.mrb[0].mxu0
  %v1306 = vadd.f32 0.0, %v1305
  %v1307 = vpop.f32.mrb[0].mxu0
  %v1308 = vadd.f32 0.0, %v1307
  %1309 = vmatprep.mubr.f32.mxu0 0.0
  %1310 = vmatmul.mubr.f32.gmra.mrb[0].mxu0 %v1105
  %v1311 = vpop.f32.mrb[0].mxu0
  %v1312 = vadd.f32 0.0, %v1311
  %v1313 = vpop.f32.mrb[0].mxu0
  %v1314 = vadd.f32 0.0, %v1313
  %1315 = vmatprep.mubr.f32.mxu0 0.0
  %1316 = vmatmul.mubr.f32.gmra.mrb[0].mxu0 %v1108
  %v1317 = vpop.f32.mrb[0].mxu0
  %v1318 = vadd.f32 0.0, %v1317
  %v1319 = vpop.f32.mrb[0].mxu0
  %v1320 = vadd.f32 0.0, %v1319
  %1321 = vmatprep.mubr.f32.mxu0 0.0
  %1322 = vmatmul.mubr.f32.gmra.mrb[0].mxu0 %v1111
  %v1323 = vpop.f32.mrb[0].mxu0
  %v1324 = vadd.f32 0.0, %v1323
  %v1325 = vpop.f32.mrb[0].mxu0
  %v1326 = vadd.f32 0.0, %v1325
  %1327 = vmatprep.mubr.f32.mxu0 0.0
  %1328 = vmatmul.mubr.f32.gmra.mrb[0].mxu0 %v1114
  %v1329 = vpop.f32.mrb[0].mxu0
  %v1330 = vadd.f32 0.0, %v1329
  %v1331 = vpop.f32.mrb[0].mxu0
  %v1332 = vadd.f32 0.0, %v1331
  %1333 = vmatprep.mubr.f32.mxu0 0.0
  %1334 = vmatmul.mubr.f32.gmra.mrb[0].mxu0 %v1117
  %v1335 = vpop.f32.mrb[0].mxu0
  %v1336 = vadd.f32 0.0, %v1335
  %v1337 = vpop.f32.mrb[0].mxu0
  %v1338 = vadd.f32 0.0, %v1337
  %1339 = vmatprep.mubr.f32.mxu0 0.0
  %1340 = vmatmul.mubr.f32.gmra.mrb[0].mxu0 %v1120
  %v1341 = vpop.f32.mrb[0].mxu0
  %v1342 = vadd.f32 0.0, %v1341
  %v1343 = vpop.f32.mrb[0].mxu0
  %v1344 = vadd.f32 0.0, %v1343
  %1345 = vmatprep.mubr.f32.mxu0 0.0
  %1346 = vmatmul.mubr.f32.gmra.mrb[0].mxu0 %v1123
  %v1347 = vpop.f32.mrb[0].mxu0
  %v1348 = vadd.f32 0.0, %v1347
  %v1349 = vpop.f32.mrb[0].mxu0
  %v1350 = vadd.f32 0.0, %v1349
  %1351 = vmatprep.mubr.f32.mxu0 0.0
  %1352 = vmatmul.mubr.f32.gmra.mrb[0].mxu0 %v1126
  %v1353 = vpop.f32.mrb[0].mxu0
  %v1354 = vadd.f32 0.0, %v1353
  %v1355 = vpop.f32.mrb[0].mxu0
  %v1356 = vadd.f32 0.0, %v1355
  %1357 = vmatprep.mubr.f32.mxu0 0.0
  %1358 = vmatmul.mubr.f32.gmra.mrb[0].mxu0 %v1129
  %v1359 = vpop.f32.mrb[0].mxu0
  %v1360 = vadd.f32 0.0, %v1359
  %v1361 = vpop.f32.mrb[0].mxu0
  %v1362 = vadd.f32 0.0, %v1361
  %1363 = vmatprep.mubr.f32.mxu0 0.0
  %1364 = vmatmul.mubr.f32.gmra.mrb[0].mxu0 %v1132
  %v1365 = vpop.f32.mrb[0].mxu0
  %v1366 = vadd.f32 0.0, %v1365
  %v1367 = vpop.f32.mrb[0].mxu0
  %v1368 = vadd.f32 0.0, %v1367
  %1369 = vmatprep.mubr.f32.mxu0 0.0
  %1370 = vmatmul.mubr.f32.gmra.mrb[0].mxu0 %v1135
  %v1371 = vpop.f32.mrb[0].mxu0
  %v1372 = vadd.f32 0.0, %v1371
  %v1373 = vpop.f32.mrb[0].mxu0
  %v1374 = vadd.f32 0.0, %v1373
  %1375 = vmatprep.mubr.f32.mxu0 0.0
  %1376 = vmatmul.mubr.f32.gmra.mrb[0].mxu0 %v1138
  %v1377 = vpop.f32.mrb[0].mxu0
  %v1378 = vadd.f32 0.0, %v1377
  %v1379 = vpop.f32.mrb[0].mxu0
  %v1380 = vadd.f32 0.0, %v1379
  %1381 = vmatprep.mubr.f32.mxu0 0.0
  %1382 = vmatmul.mubr.f32.gmra.mrb[0].mxu0 %v1141
  %v1383 = vpop.f32.mrb[0].mxu0
  %v1384 = vadd.f32 0.0, %v1383
  %v1385 = vpop.f32.mrb[0].mxu0
  %v1386 = vadd.f32 0.0, %v1385
  %1387 = vmatprep.mubr.f32.mxu0 0.0
  %1388 = vmatmul.mubr.f32.gmra.mrb[0].mxu0 %v1144
  %v1389 = vpop.f32.mrb[0].mxu0
  %v1390 = vadd.f32 0.0, %v1389
  %v1391 = vpop.f32.mrb[0].mxu0
  %v1392 = vadd.f32 0.0, %v1391
  %1393 = vmatprep.mubr.f32.mxu0 0.0
  %1394 = vmatmul.mubr.f32.gmra.mrb[0].mxu0 %v1147
  %v1395 = vpop.f32.mrb[0].mxu0
  %v1396 = vadd.f32 0.0, %v1395
  %v1397 = vpop.f32.mrb[0].mxu0
  %v1398 = vadd.f32 0.0, %v1397
  %1399 = vmatprep.mubr.f32.mxu0 0.0
  %1400 = vmatmul.mubr.f32.gmra.mrb[0].mxu0 %v1150
  %v1401 = vpop.f32.mrb[0].mxu0
  %v1402 = vadd.f32 0.0, %v1401
  %v1403 = vpop.f32.mrb[0].mxu0
  %v1404 = vadd.f32 0.0, %v1403
  %1405 = vmatprep.mubr.f32.mxu0 0.0
  %1406 = vmatmul.mubr.f32.gmra.mrb[0].mxu0 %v1153
  %v1407 = vpop.f32.mrb[0].mxu0
  %v1408 = vadd.f32 0.0, %v1407
  %v1409 = vpop.f32.mrb[0].mxu0
  %v1410 = vadd.f32 0.0, %v1409
  %1411 = vdwg.mxu0
  %v1412 = vmul.f32 %v1222, 2.0
  %v1413 = vmul.f32 %v1224, 2.0
  %v1414 = vmul.f32 %v1228, 2.0
  %v1415 = vmul.f32 %v1230, 2.0
  %v1416 = vmul.f32 %v1234, 2.0
  %v1417 = vmul.f32 %v1236, 2.0
  %v1418 = vmul.f32 %v1240, 2.0
  %v1419 = vmul.f32 %v1242, 2.0
  %v1420 = vmul.f32 %v1246, 2.0
  %v1421 = vmul.f32 %v1248, 2.0
  %v1422 = vmul.f32 %v1252, 2.0
  %v1423 = vmul.f32 %v1254, 2.0
  %v1424 = vmul.f32 %v1258, 2.0
  %v1425 = vmul.f32 %v1260, 2.0
  %v1426 = vmul.f32 %v1264, 2.0
  %v1427 = vmul.f32 %v1266, 2.0
  %v1428 = vmul.f32 %v1270, 2.0
  %v1429 = vmul.f32 %v1272, 2.0
  %v1430 = vmul.f32 %v1276, 2.0
  %v1431 = vmul.f32 %v1278, 2.0
  %v1432 = vmul.f32 %v1282, 2.0
  %v1433 = vmul.f32 %v1284, 2.0
  %v1434 = vmul.f32 %v1288, 2.0
  %v1435 = vmul.f32 %v1290, 2.0
  %v1436 = vmul.f32 %v1294, 2.0
  %v1437 = vmul.f32 %v1296, 2.0
  %v1438 = vmul.f32 %v1300, 2.0
  %v1439 = vmul.f32 %v1302, 2.0
  %v1440 = vmul.f32 %v1306, 2.0
  %v1441 = vmul.f32 %v1308, 2.0
  %v1442 = vmul.f32 %v1312, 2.0
  %v1443 = vmul.f32 %v1314, 2.0
  %v1444 = vmul.f32 %v1318, 2.0
  %v1445 = vmul.f32 %v1320, 2.0
  %v1446 = vmul.f32 %v1324, 2.0
  %v1447 = vmul.f32 %v1326, 2.0
  %v1448 = vmul.f32 %v1330, 2.0
  %v1449 = vmul.f32 %v1332, 2.0
  %v1450 = vmul.f32 %v1336, 2.0
  %v1451 = vmul.f32 %v1338, 2.0
  %v1452 = vmul.f32 %v1342, 2.0
  %v1453 = vmul.f32 %v1344, 2.0
  %v1454 = vmul.f32 %v1348, 2.0
  %v1455 = vmul.f32 %v1350, 2.0
  %v1456 = vmul.f32 %v1354, 2.0
  %v1457 = vmul.f32 %v1356, 2.0
  %v1458 = vmul.f32 %v1360, 2.0
  %v1459 = vmul.f32 %v1362, 2.0
  %v1460 = vmul.f32 %v1366, 2.0
  %v1461 = vmul.f32 %v1368, 2.0
  %v1462 = vmul.f32 %v1372, 2.0
  %v1463 = vmul.f32 %v1374, 2.0
  %v1464 = vmul.f32 %v1378, 2.0
  %v1465 = vmul.f32 %v1380, 2.0
  %v1466 = vmul.f32 %v1384, 2.0
  %v1467 = vmul.f32 %v1386, 2.0
  %v1468 = vmul.f32 %v1390, 2.0
  %v1469 = vmul.f32 %v1392, 2.0
  %v1470 = vmul.f32 %v1396, 2.0
  %v1471 = vmul.f32 %v1398, 2.0
  %v1472 = vmul.f32 %v1402, 2.0
  %v1473 = vmul.f32 %v1404, 2.0
  %v1474 = vmul.f32 %v1408, 2.0
  %v1475 = vmul.f32 %v1410, 2.0
  %v1476 = vsub.f32 2.0, %v1412
  %v1477 = vsub.f32 2.0, %v1413
  %v1478 = vsub.f32 2.0, %v1414
  %v1479 = vsub.f32 2.0, %v1415
  %v1480 = vsub.f32 2.0, %v1416
  %v1481 = vsub.f32 2.0, %v1417
  %v1482 = vsub.f32 2.0, %v1418
  %v1483 = vsub.f32 2.0, %v1419
  %v1484 = vsub.f32 2.0, %v1420
  %v1485 = vsub.f32 2.0, %v1421
  %v1486 = vsub.f32 2.0, %v1422
  %v1487 = vsub.f32 2.0, %v1423
  %v1488 = vsub.f32 2.0, %v1424
  %v1489 = vsub.f32 2.0, %v1425
  %v1490 = vsub.f32 2.0, %v1426
  %v1491 = vsub.f32 2.0, %v1427
  %v1492 = vsub.f32 2.0, %v1428
  %v1493 = vsub.f32 2.0, %v1429
  %v1494 = vsub.f32 2.0, %v1430
  %v1495 = vsub.f32 2.0, %v1431
  %v1496 = vsub.f32 2.0, %v1432
  %v1497 = vsub.f32 2.0, %v1433
  %v1498 = vsub.f32 2.0, %v1434
  %v1499 = vsub.f32 2.0, %v1435
  %v1500 = vsub.f32 2.0, %v1436
  %v1501 = vsub.f32 2.0, %v1437
  %v1502 = vsub.f32 2.0, %v1438
  %v1503 = vsub.f32 2.0, %v1439
  %v1504 = vsub.f32 2.0, %v1440
  %v1505 = vsub.f32 2.0, %v1441
  %v1506 = vsub.f32 2.0, %v1442
  %v1507 = vsub.f32 2.0, %v1443
  %v1508 = vsub.f32 2.0, %v1444
  %v1509 = vsub.f32 2.0, %v1445
  %v1510 = vsub.f32 2.0, %v1446
  %v1511 = vsub.f32 2.0, %v1447
  %v1512 = vsub.f32 2.0, %v1448
  %v1513 = vsub.f32 2.0, %v1449
  %v1514 = vsub.f32 2.0, %v1450
  %v1515 = vsub.f32 2.0, %v1451
  %v1516 = vsub.f32 2.0, %v1452
  %v1517 = vsub.f32 2.0, %v1453
  %v1518 = vsub.f32 2.0, %v1454
  %v1519 = vsub.f32 2.0, %v1455
  %v1520 = vsub.f32 2.0, %v1456
  %v1521 = vsub.f32 2.0, %v1457
  %v1522 = vsub.f32 2.0, %v1458
  %v1523 = vsub.f32 2.0, %v1459
  %v1524 = vsub.f32 2.0, %v1460
  %v1525 = vsub.f32 2.0, %v1461
  %v1526 = vsub.f32 2.0, %v1462
  %v1527 = vsub.f32 2.0, %v1463
  %v1528 = vsub.f32 2.0, %v1464
  %v1529 = vsub.f32 2.0, %v1465
  %v1530 = vsub.f32 2.0, %v1466
  %v1531 = vsub.f32 2.0, %v1467
  %v1532 = vsub.f32 2.0, %v1468
  %v1533 = vsub.f32 2.0, %v1469
  %v1534 = vsub.f32 2.0, %v1470
  %v1535 = vsub.f32 2.0, %v1471
  %v1536 = vsub.f32 2.0, %v1472
  %v1537 = vsub.f32 2.0, %v1473
  %v1538 = vsub.f32 2.0, %v1474
  %v1539 = vsub.f32 2.0, %v1475
  %v1540 = vmax.f32 %v1476, 1e-12
  %v1541 = vmax.f32 %v1477, 1e-12
  %v1542 = vmax.f32 %v1478, 1e-12
  %v1543 = vmax.f32 %v1479, 1e-12
  %v1544 = vmax.f32 %v1480, 1e-12
  %v1545 = vmax.f32 %v1481, 1e-12
  %v1546 = vmax.f32 %v1482, 1e-12
  %v1547 = vmax.f32 %v1483, 1e-12
  %v1548 = vmax.f32 %v1484, 1e-12
  %v1549 = vmax.f32 %v1485, 1e-12
  %v1550 = vmax.f32 %v1486, 1e-12
  %v1551 = vmax.f32 %v1487, 1e-12
  %v1552 = vmax.f32 %v1488, 1e-12
  %v1553 = vmax.f32 %v1489, 1e-12
  %v1554 = vmax.f32 %v1490, 1e-12
  %v1555 = vmax.f32 %v1491, 1e-12
  %v1556 = vmax.f32 %v1492, 1e-12
  %v1557 = vmax.f32 %v1493, 1e-12
  %v1558 = vmax.f32 %v1494, 1e-12
  %v1559 = vmax.f32 %v1495, 1e-12
  %v1560 = vmax.f32 %v1496, 1e-12
  %v1561 = vmax.f32 %v1497, 1e-12
  %v1562 = vmax.f32 %v1498, 1e-12
  %v1563 = vmax.f32 %v1499, 1e-12
  %v1564 = vmax.f32 %v1500, 1e-12
  %v1565 = vmax.f32 %v1501, 1e-12
  %v1566 = vmax.f32 %v1502, 1e-12
  %v1567 = vmax.f32 %v1503, 1e-12
  %v1568 = vmax.f32 %v1504, 1e-12
  %v1569 = vmax.f32 %v1505, 1e-12
  %v1570 = vmax.f32 %v1506, 1e-12
  %v1571 = vmax.f32 %v1507, 1e-12
  %v1572 = vmax.f32 %v1508, 1e-12
  %v1573 = vmax.f32 %v1509, 1e-12
  %v1574 = vmax.f32 %v1510, 1e-12
  %v1575 = vmax.f32 %v1511, 1e-12
  %v1576 = vmax.f32 %v1512, 1e-12
  %v1577 = vmax.f32 %v1513, 1e-12
  %v1578 = vmax.f32 %v1514, 1e-12
  %v1579 = vmax.f32 %v1515, 1e-12
  %v1580 = vmax.f32 %v1516, 1e-12
  %v1581 = vmax.f32 %v1517, 1e-12
  %v1582 = vmax.f32 %v1518, 1e-12
  %v1583 = vmax.f32 %v1519, 1e-12
  %v1584 = vmax.f32 %v1520, 1e-12
  %v1585 = vmax.f32 %v1521, 1e-12
  %v1586 = vmax.f32 %v1522, 1e-12
  %v1587 = vmax.f32 %v1523, 1e-12
  %v1588 = vmax.f32 %v1524, 1e-12
  %v1589 = vmax.f32 %v1525, 1e-12
  %v1590 = vmax.f32 %v1526, 1e-12
  %v1591 = vmax.f32 %v1527, 1e-12
  %v1592 = vmax.f32 %v1528, 1e-12
  %v1593 = vmax.f32 %v1529, 1e-12
  %v1594 = vmax.f32 %v1530, 1e-12
  %v1595 = vmax.f32 %v1531, 1e-12
  %v1596 = vmax.f32 %v1532, 1e-12
  %v1597 = vmax.f32 %v1533, 1e-12
  %v1598 = vmax.f32 %v1534, 1e-12
  %v1599 = vmax.f32 %v1535, 1e-12
  %v1600 = vmax.f32 %v1536, 1e-12
  %v1601 = vmax.f32 %v1537, 1e-12
  %v1602 = vmax.f32 %v1538, 1e-12
  %v1603 = vmax.f32 %v1539, 1e-12
  %v1604 = vrsqrt.pop %v1540
  %v1605 = vmul.f32 %v1540, %v1604
  %vm1606 = vcmp.eq.f32.partialorder %v1540, inf
  %v1607 = vsel %vm1606, %v1540, %v1605
  %vm1608 = vcmp.eq.f32.partialorder %v1540, 0.0
  %v1609 = vand.u32 %v1540, 2147483648
  %v1610 = vsel %vm1608, %v1609, %v1607
  %v1611 = vrsqrt.pop %v1541
  %v1612 = vmul.f32 %v1541, %v1611
  %vm1613 = vcmp.eq.f32.partialorder %v1541, inf
  %v1614 = vsel %vm1613, %v1541, %v1612
  %vm1615 = vcmp.eq.f32.partialorder %v1541, 0.0
  %v1616 = vand.u32 %v1541, 2147483648
  %v1617 = vsel %vm1615, %v1616, %v1614
  %v1618 = vrsqrt.pop %v1542
  %v1619 = vmul.f32 %v1542, %v1618
  %vm1620 = vcmp.eq.f32.partialorder %v1542, inf
  %v1621 = vsel %vm1620, %v1542, %v1619
  %vm1622 = vcmp.eq.f32.partialorder %v1542, 0.0
  %v1623 = vand.u32 %v1542, 2147483648
  %v1624 = vsel %vm1622, %v1623, %v1621
  %v1625 = vrsqrt.pop %v1543
  %v1626 = vmul.f32 %v1543, %v1625
  %vm1627 = vcmp.eq.f32.partialorder %v1543, inf
  %v1628 = vsel %vm1627, %v1543, %v1626
  %vm1629 = vcmp.eq.f32.partialorder %v1543, 0.0
  %v1630 = vand.u32 %v1543, 2147483648
  %v1631 = vsel %vm1629, %v1630, %v1628
  %v1632 = vrsqrt.pop %v1544
  %v1633 = vmul.f32 %v1544, %v1632
  %vm1634 = vcmp.eq.f32.partialorder %v1544, inf
  %v1635 = vsel %vm1634, %v1544, %v1633
  %vm1636 = vcmp.eq.f32.partialorder %v1544, 0.0
  %v1637 = vand.u32 %v1544, 2147483648
  %v1638 = vsel %vm1636, %v1637, %v1635
  %v1639 = vrsqrt.pop %v1545
  %v1640 = vmul.f32 %v1545, %v1639
  %vm1641 = vcmp.eq.f32.partialorder %v1545, inf
  %v1642 = vsel %vm1641, %v1545, %v1640
  %vm1643 = vcmp.eq.f32.partialorder %v1545, 0.0
  %v1644 = vand.u32 %v1545, 2147483648
  %v1645 = vsel %vm1643, %v1644, %v1642
  %v1646 = vrsqrt.pop %v1546
  %v1647 = vmul.f32 %v1546, %v1646
  %vm1648 = vcmp.eq.f32.partialorder %v1546, inf
  %v1649 = vsel %vm1648, %v1546, %v1647
  %vm1650 = vcmp.eq.f32.partialorder %v1546, 0.0
  %v1651 = vand.u32 %v1546, 2147483648
  %v1652 = vsel %vm1650, %v1651, %v1649
  %v1653 = vrsqrt.pop %v1547
  %v1654 = vmul.f32 %v1547, %v1653
  %vm1655 = vcmp.eq.f32.partialorder %v1547, inf
  %v1656 = vsel %vm1655, %v1547, %v1654
  %vm1657 = vcmp.eq.f32.partialorder %v1547, 0.0
  %v1658 = vand.u32 %v1547, 2147483648
  %v1659 = vsel %vm1657, %v1658, %v1656
  %v1660 = vrsqrt.pop %v1548
  %v1661 = vmul.f32 %v1548, %v1660
  %vm1662 = vcmp.eq.f32.partialorder %v1548, inf
  %v1663 = vsel %vm1662, %v1548, %v1661
  %vm1664 = vcmp.eq.f32.partialorder %v1548, 0.0
  %v1665 = vand.u32 %v1548, 2147483648
  %v1666 = vsel %vm1664, %v1665, %v1663
  %v1667 = vrsqrt.pop %v1549
  %v1668 = vmul.f32 %v1549, %v1667
  %vm1669 = vcmp.eq.f32.partialorder %v1549, inf
  %v1670 = vsel %vm1669, %v1549, %v1668
  %vm1671 = vcmp.eq.f32.partialorder %v1549, 0.0
  %v1672 = vand.u32 %v1549, 2147483648
  %v1673 = vsel %vm1671, %v1672, %v1670
  %v1674 = vrsqrt.pop %v1550
  %v1675 = vmul.f32 %v1550, %v1674
  %vm1676 = vcmp.eq.f32.partialorder %v1550, inf
  %v1677 = vsel %vm1676, %v1550, %v1675
  %vm1678 = vcmp.eq.f32.partialorder %v1550, 0.0
  %v1679 = vand.u32 %v1550, 2147483648
  %v1680 = vsel %vm1678, %v1679, %v1677
  %v1681 = vrsqrt.pop %v1551
  %v1682 = vmul.f32 %v1551, %v1681
  %vm1683 = vcmp.eq.f32.partialorder %v1551, inf
  %v1684 = vsel %vm1683, %v1551, %v1682
  %vm1685 = vcmp.eq.f32.partialorder %v1551, 0.0
  %v1686 = vand.u32 %v1551, 2147483648
  %v1687 = vsel %vm1685, %v1686, %v1684
  %v1688 = vrsqrt.pop %v1552
  %v1689 = vmul.f32 %v1552, %v1688
  %vm1690 = vcmp.eq.f32.partialorder %v1552, inf
  %v1691 = vsel %vm1690, %v1552, %v1689
  %vm1692 = vcmp.eq.f32.partialorder %v1552, 0.0
  %v1693 = vand.u32 %v1552, 2147483648
  %v1694 = vsel %vm1692, %v1693, %v1691
  %v1695 = vrsqrt.pop %v1553
  %v1696 = vmul.f32 %v1553, %v1695
  %vm1697 = vcmp.eq.f32.partialorder %v1553, inf
  %v1698 = vsel %vm1697, %v1553, %v1696
  %vm1699 = vcmp.eq.f32.partialorder %v1553, 0.0
  %v1700 = vand.u32 %v1553, 2147483648
  %v1701 = vsel %vm1699, %v1700, %v1698
  %v1702 = vrsqrt.pop %v1554
  %v1703 = vmul.f32 %v1554, %v1702
  %vm1704 = vcmp.eq.f32.partialorder %v1554, inf
  %v1705 = vsel %vm1704, %v1554, %v1703
  %vm1706 = vcmp.eq.f32.partialorder %v1554, 0.0
  %v1707 = vand.u32 %v1554, 2147483648
  %v1708 = vsel %vm1706, %v1707, %v1705
  %v1709 = vrsqrt.pop %v1555
  %v1710 = vmul.f32 %v1555, %v1709
  %vm1711 = vcmp.eq.f32.partialorder %v1555, inf
  %v1712 = vsel %vm1711, %v1555, %v1710
  %vm1713 = vcmp.eq.f32.partialorder %v1555, 0.0
  %v1714 = vand.u32 %v1555, 2147483648
  %v1715 = vsel %vm1713, %v1714, %v1712
  %v1716 = vrsqrt.pop %v1556
  %v1717 = vmul.f32 %v1556, %v1716
  %vm1718 = vcmp.eq.f32.partialorder %v1556, inf
  %v1719 = vsel %vm1718, %v1556, %v1717
  %vm1720 = vcmp.eq.f32.partialorder %v1556, 0.0
  %v1721 = vand.u32 %v1556, 2147483648
  %v1722 = vsel %vm1720, %v1721, %v1719
  %v1723 = vrsqrt.pop %v1557
  %v1724 = vmul.f32 %v1557, %v1723
  %vm1725 = vcmp.eq.f32.partialorder %v1557, inf
  %v1726 = vsel %vm1725, %v1557, %v1724
  %vm1727 = vcmp.eq.f32.partialorder %v1557, 0.0
  %v1728 = vand.u32 %v1557, 2147483648
  %v1729 = vsel %vm1727, %v1728, %v1726
  %v1730 = vrsqrt.pop %v1558
  %v1731 = vmul.f32 %v1558, %v1730
  %vm1732 = vcmp.eq.f32.partialorder %v1558, inf
  %v1733 = vsel %vm1732, %v1558, %v1731
  %vm1734 = vcmp.eq.f32.partialorder %v1558, 0.0
  %v1735 = vand.u32 %v1558, 2147483648
  %v1736 = vsel %vm1734, %v1735, %v1733
  %v1737 = vrsqrt.pop %v1559
  %v1738 = vmul.f32 %v1559, %v1737
  %vm1739 = vcmp.eq.f32.partialorder %v1559, inf
  %v1740 = vsel %vm1739, %v1559, %v1738
  %vm1741 = vcmp.eq.f32.partialorder %v1559, 0.0
  %v1742 = vand.u32 %v1559, 2147483648
  %v1743 = vsel %vm1741, %v1742, %v1740
  %v1744 = vrsqrt.pop %v1560
  %v1745 = vmul.f32 %v1560, %v1744
  %vm1746 = vcmp.eq.f32.partialorder %v1560, inf
  %v1747 = vsel %vm1746, %v1560, %v1745
  %vm1748 = vcmp.eq.f32.partialorder %v1560, 0.0
  %v1749 = vand.u32 %v1560, 2147483648
  %v1750 = vsel %vm1748, %v1749, %v1747
  %v1751 = vrsqrt.pop %v1561
  %v1752 = vmul.f32 %v1561, %v1751
  %vm1753 = vcmp.eq.f32.partialorder %v1561, inf
  %v1754 = vsel %vm1753, %v1561, %v1752
  %vm1755 = vcmp.eq.f32.partialorder %v1561, 0.0
  %v1756 = vand.u32 %v1561, 2147483648
  %v1757 = vsel %vm1755, %v1756, %v1754
  %v1758 = vrsqrt.pop %v1562
  %v1759 = vmul.f32 %v1562, %v1758
  %vm1760 = vcmp.eq.f32.partialorder %v1562, inf
  %v1761 = vsel %vm1760, %v1562, %v1759
  %vm1762 = vcmp.eq.f32.partialorder %v1562, 0.0
  %v1763 = vand.u32 %v1562, 2147483648
  %v1764 = vsel %vm1762, %v1763, %v1761
  %v1765 = vrsqrt.pop %v1563
  %v1766 = vmul.f32 %v1563, %v1765
  %vm1767 = vcmp.eq.f32.partialorder %v1563, inf
  %v1768 = vsel %vm1767, %v1563, %v1766
  %vm1769 = vcmp.eq.f32.partialorder %v1563, 0.0
  %v1770 = vand.u32 %v1563, 2147483648
  %v1771 = vsel %vm1769, %v1770, %v1768
  %v1772 = vrsqrt.pop %v1564
  %v1773 = vmul.f32 %v1564, %v1772
  %vm1774 = vcmp.eq.f32.partialorder %v1564, inf
  %v1775 = vsel %vm1774, %v1564, %v1773
  %vm1776 = vcmp.eq.f32.partialorder %v1564, 0.0
  %v1777 = vand.u32 %v1564, 2147483648
  %v1778 = vsel %vm1776, %v1777, %v1775
  %v1779 = vrsqrt.pop %v1565
  %v1780 = vmul.f32 %v1565, %v1779
  %vm1781 = vcmp.eq.f32.partialorder %v1565, inf
  %v1782 = vsel %vm1781, %v1565, %v1780
  %vm1783 = vcmp.eq.f32.partialorder %v1565, 0.0
  %v1784 = vand.u32 %v1565, 2147483648
  %v1785 = vsel %vm1783, %v1784, %v1782
  %v1786 = vrsqrt.pop %v1566
  %v1787 = vmul.f32 %v1566, %v1786
  %vm1788 = vcmp.eq.f32.partialorder %v1566, inf
  %v1789 = vsel %vm1788, %v1566, %v1787
  %vm1790 = vcmp.eq.f32.partialorder %v1566, 0.0
  %v1791 = vand.u32 %v1566, 2147483648
  %v1792 = vsel %vm1790, %v1791, %v1789
  %v1793 = vrsqrt.pop %v1567
  %v1794 = vmul.f32 %v1567, %v1793
  %vm1795 = vcmp.eq.f32.partialorder %v1567, inf
  %v1796 = vsel %vm1795, %v1567, %v1794
  %vm1797 = vcmp.eq.f32.partialorder %v1567, 0.0
  %v1798 = vand.u32 %v1567, 2147483648
  %v1799 = vsel %vm1797, %v1798, %v1796
  %v1800 = vrsqrt.pop %v1568
  %v1801 = vmul.f32 %v1568, %v1800
  %vm1802 = vcmp.eq.f32.partialorder %v1568, inf
  %v1803 = vsel %vm1802, %v1568, %v1801
  %vm1804 = vcmp.eq.f32.partialorder %v1568, 0.0
  %v1805 = vand.u32 %v1568, 2147483648
  %v1806 = vsel %vm1804, %v1805, %v1803
  %v1807 = vrsqrt.pop %v1569
  %v1808 = vmul.f32 %v1569, %v1807
  %vm1809 = vcmp.eq.f32.partialorder %v1569, inf
  %v1810 = vsel %vm1809, %v1569, %v1808
  %vm1811 = vcmp.eq.f32.partialorder %v1569, 0.0
  %v1812 = vand.u32 %v1569, 2147483648
  %v1813 = vsel %vm1811, %v1812, %v1810
  %v1814 = vrsqrt.pop %v1570
  %v1815 = vmul.f32 %v1570, %v1814
  %vm1816 = vcmp.eq.f32.partialorder %v1570, inf
  %v1817 = vsel %vm1816, %v1570, %v1815
  %vm1818 = vcmp.eq.f32.partialorder %v1570, 0.0
  %v1819 = vand.u32 %v1570, 2147483648
  %v1820 = vsel %vm1818, %v1819, %v1817
  %v1821 = vrsqrt.pop %v1571
  %v1822 = vmul.f32 %v1571, %v1821
  %vm1823 = vcmp.eq.f32.partialorder %v1571, inf
  %v1824 = vsel %vm1823, %v1571, %v1822
  %vm1825 = vcmp.eq.f32.partialorder %v1571, 0.0
  %v1826 = vand.u32 %v1571, 2147483648
  %v1827 = vsel %vm1825, %v1826, %v1824
  %v1828 = vrsqrt.pop %v1572
  %v1829 = vmul.f32 %v1572, %v1828
  %vm1830 = vcmp.eq.f32.partialorder %v1572, inf
  %v1831 = vsel %vm1830, %v1572, %v1829
  %vm1832 = vcmp.eq.f32.partialorder %v1572, 0.0
  %v1833 = vand.u32 %v1572, 2147483648
  %v1834 = vsel %vm1832, %v1833, %v1831
  %v1835 = vrsqrt.pop %v1573
  %v1836 = vmul.f32 %v1573, %v1835
  %vm1837 = vcmp.eq.f32.partialorder %v1573, inf
  %v1838 = vsel %vm1837, %v1573, %v1836
  %vm1839 = vcmp.eq.f32.partialorder %v1573, 0.0
  %v1840 = vand.u32 %v1573, 2147483648
  %v1841 = vsel %vm1839, %v1840, %v1838
  %v1842 = vrsqrt.pop %v1574
  %v1843 = vmul.f32 %v1574, %v1842
  %vm1844 = vcmp.eq.f32.partialorder %v1574, inf
  %v1845 = vsel %vm1844, %v1574, %v1843
  %vm1846 = vcmp.eq.f32.partialorder %v1574, 0.0
  %v1847 = vand.u32 %v1574, 2147483648
  %v1848 = vsel %vm1846, %v1847, %v1845
  %v1849 = vrsqrt.pop %v1575
  %v1850 = vmul.f32 %v1575, %v1849
  %vm1851 = vcmp.eq.f32.partialorder %v1575, inf
  %v1852 = vsel %vm1851, %v1575, %v1850
  %vm1853 = vcmp.eq.f32.partialorder %v1575, 0.0
  %v1854 = vand.u32 %v1575, 2147483648
  %v1855 = vsel %vm1853, %v1854, %v1852
  %v1856 = vrsqrt.pop %v1576
  %v1857 = vmul.f32 %v1576, %v1856
  %vm1858 = vcmp.eq.f32.partialorder %v1576, inf
  %v1859 = vsel %vm1858, %v1576, %v1857
  %vm1860 = vcmp.eq.f32.partialorder %v1576, 0.0
  %v1861 = vand.u32 %v1576, 2147483648
  %v1862 = vsel %vm1860, %v1861, %v1859
  %v1863 = vrsqrt.pop %v1577
  %v1864 = vmul.f32 %v1577, %v1863
  %vm1865 = vcmp.eq.f32.partialorder %v1577, inf
  %v1866 = vsel %vm1865, %v1577, %v1864
  %vm1867 = vcmp.eq.f32.partialorder %v1577, 0.0
  %v1868 = vand.u32 %v1577, 2147483648
  %v1869 = vsel %vm1867, %v1868, %v1866
  %v1870 = vrsqrt.pop %v1578
  %v1871 = vmul.f32 %v1578, %v1870
  %vm1872 = vcmp.eq.f32.partialorder %v1578, inf
  %v1873 = vsel %vm1872, %v1578, %v1871
  %vm1874 = vcmp.eq.f32.partialorder %v1578, 0.0
  %v1875 = vand.u32 %v1578, 2147483648
  %v1876 = vsel %vm1874, %v1875, %v1873
  %v1877 = vrsqrt.pop %v1579
  %v1878 = vmul.f32 %v1579, %v1877
  %vm1879 = vcmp.eq.f32.partialorder %v1579, inf
  %v1880 = vsel %vm1879, %v1579, %v1878
  %vm1881 = vcmp.eq.f32.partialorder %v1579, 0.0
  %v1882 = vand.u32 %v1579, 2147483648
  %v1883 = vsel %vm1881, %v1882, %v1880
  %v1884 = vrsqrt.pop %v1580
  %v1885 = vmul.f32 %v1580, %v1884
  %vm1886 = vcmp.eq.f32.partialorder %v1580, inf
  %v1887 = vsel %vm1886, %v1580, %v1885
  %vm1888 = vcmp.eq.f32.partialorder %v1580, 0.0
  %v1889 = vand.u32 %v1580, 2147483648
  %v1890 = vsel %vm1888, %v1889, %v1887
  %v1891 = vrsqrt.pop %v1581
  %v1892 = vmul.f32 %v1581, %v1891
  %vm1893 = vcmp.eq.f32.partialorder %v1581, inf
  %v1894 = vsel %vm1893, %v1581, %v1892
  %vm1895 = vcmp.eq.f32.partialorder %v1581, 0.0
  %v1896 = vand.u32 %v1581, 2147483648
  %v1897 = vsel %vm1895, %v1896, %v1894
  %v1898 = vrsqrt.pop %v1582
  %v1899 = vmul.f32 %v1582, %v1898
  %vm1900 = vcmp.eq.f32.partialorder %v1582, inf
  %v1901 = vsel %vm1900, %v1582, %v1899
  %vm1902 = vcmp.eq.f32.partialorder %v1582, 0.0
  %v1903 = vand.u32 %v1582, 2147483648
  %v1904 = vsel %vm1902, %v1903, %v1901
  %v1905 = vrsqrt.pop %v1583
  %v1906 = vmul.f32 %v1583, %v1905
  %vm1907 = vcmp.eq.f32.partialorder %v1583, inf
  %v1908 = vsel %vm1907, %v1583, %v1906
  %vm1909 = vcmp.eq.f32.partialorder %v1583, 0.0
  %v1910 = vand.u32 %v1583, 2147483648
  %v1911 = vsel %vm1909, %v1910, %v1908
  %v1912 = vrsqrt.pop %v1584
  %v1913 = vmul.f32 %v1584, %v1912
  %vm1914 = vcmp.eq.f32.partialorder %v1584, inf
  %v1915 = vsel %vm1914, %v1584, %v1913
  %vm1916 = vcmp.eq.f32.partialorder %v1584, 0.0
  %v1917 = vand.u32 %v1584, 2147483648
  %v1918 = vsel %vm1916, %v1917, %v1915
  %v1919 = vrsqrt.pop %v1585
  %v1920 = vmul.f32 %v1585, %v1919
  %vm1921 = vcmp.eq.f32.partialorder %v1585, inf
  %v1922 = vsel %vm1921, %v1585, %v1920
  %vm1923 = vcmp.eq.f32.partialorder %v1585, 0.0
  %v1924 = vand.u32 %v1585, 2147483648
  %v1925 = vsel %vm1923, %v1924, %v1922
  %v1926 = vrsqrt.pop %v1586
  %v1927 = vmul.f32 %v1586, %v1926
  %vm1928 = vcmp.eq.f32.partialorder %v1586, inf
  %v1929 = vsel %vm1928, %v1586, %v1927
  %vm1930 = vcmp.eq.f32.partialorder %v1586, 0.0
  %v1931 = vand.u32 %v1586, 2147483648
  %v1932 = vsel %vm1930, %v1931, %v1929
  %v1933 = vrsqrt.pop %v1587
  %v1934 = vmul.f32 %v1587, %v1933
  %vm1935 = vcmp.eq.f32.partialorder %v1587, inf
  %v1936 = vsel %vm1935, %v1587, %v1934
  %vm1937 = vcmp.eq.f32.partialorder %v1587, 0.0
  %v1938 = vand.u32 %v1587, 2147483648
  %v1939 = vsel %vm1937, %v1938, %v1936
  %v1940 = vrsqrt.pop %v1588
  %v1941 = vmul.f32 %v1588, %v1940
  %vm1942 = vcmp.eq.f32.partialorder %v1588, inf
  %v1943 = vsel %vm1942, %v1588, %v1941
  %vm1944 = vcmp.eq.f32.partialorder %v1588, 0.0
  %v1945 = vand.u32 %v1588, 2147483648
  %v1946 = vsel %vm1944, %v1945, %v1943
  %v1947 = vrsqrt.pop %v1589
  %v1948 = vmul.f32 %v1589, %v1947
  %vm1949 = vcmp.eq.f32.partialorder %v1589, inf
  %v1950 = vsel %vm1949, %v1589, %v1948
  %vm1951 = vcmp.eq.f32.partialorder %v1589, 0.0
  %v1952 = vand.u32 %v1589, 2147483648
  %v1953 = vsel %vm1951, %v1952, %v1950
  %v1954 = vrsqrt.pop %v1590
  %v1955 = vmul.f32 %v1590, %v1954
  %vm1956 = vcmp.eq.f32.partialorder %v1590, inf
  %v1957 = vsel %vm1956, %v1590, %v1955
  %vm1958 = vcmp.eq.f32.partialorder %v1590, 0.0
  %v1959 = vand.u32 %v1590, 2147483648
  %v1960 = vsel %vm1958, %v1959, %v1957
  %v1961 = vrsqrt.pop %v1591
  %v1962 = vmul.f32 %v1591, %v1961
  %vm1963 = vcmp.eq.f32.partialorder %v1591, inf
  %v1964 = vsel %vm1963, %v1591, %v1962
  %vm1965 = vcmp.eq.f32.partialorder %v1591, 0.0
  %v1966 = vand.u32 %v1591, 2147483648
  %v1967 = vsel %vm1965, %v1966, %v1964
  %v1968 = vrsqrt.pop %v1592
  %v1969 = vmul.f32 %v1592, %v1968
  %vm1970 = vcmp.eq.f32.partialorder %v1592, inf
  %v1971 = vsel %vm1970, %v1592, %v1969
  %vm1972 = vcmp.eq.f32.partialorder %v1592, 0.0
  %v1973 = vand.u32 %v1592, 2147483648
  %v1974 = vsel %vm1972, %v1973, %v1971
  %v1975 = vrsqrt.pop %v1593
  %v1976 = vmul.f32 %v1593, %v1975
  %vm1977 = vcmp.eq.f32.partialorder %v1593, inf
  %v1978 = vsel %vm1977, %v1593, %v1976
  %vm1979 = vcmp.eq.f32.partialorder %v1593, 0.0
  %v1980 = vand.u32 %v1593, 2147483648
  %v1981 = vsel %vm1979, %v1980, %v1978
  %v1982 = vrsqrt.pop %v1594
  %v1983 = vmul.f32 %v1594, %v1982
  %vm1984 = vcmp.eq.f32.partialorder %v1594, inf
  %v1985 = vsel %vm1984, %v1594, %v1983
  %vm1986 = vcmp.eq.f32.partialorder %v1594, 0.0
  %v1987 = vand.u32 %v1594, 2147483648
  %v1988 = vsel %vm1986, %v1987, %v1985
  %v1989 = vrsqrt.pop %v1595
  %v1990 = vmul.f32 %v1595, %v1989
  %vm1991 = vcmp.eq.f32.partialorder %v1595, inf
  %v1992 = vsel %vm1991, %v1595, %v1990
  %vm1993 = vcmp.eq.f32.partialorder %v1595, 0.0
  %v1994 = vand.u32 %v1595, 2147483648
  %v1995 = vsel %vm1993, %v1994, %v1992
  %v1996 = vrsqrt.pop %v1596
  %v1997 = vmul.f32 %v1596, %v1996
  %vm1998 = vcmp.eq.f32.partialorder %v1596, inf
  %v1999 = vsel %vm1998, %v1596, %v1997
  %vm2000 = vcmp.eq.f32.partialorder %v1596, 0.0
  %v2001 = vand.u32 %v1596, 2147483648
  %v2002 = vsel %vm2000, %v2001, %v1999
  %v2003 = vrsqrt.pop %v1597
  %v2004 = vmul.f32 %v1597, %v2003
  %vm2005 = vcmp.eq.f32.partialorder %v1597, inf
  %v2006 = vsel %vm2005, %v1597, %v2004
  %vm2007 = vcmp.eq.f32.partialorder %v1597, 0.0
  %v2008 = vand.u32 %v1597, 2147483648
  %v2009 = vsel %vm2007, %v2008, %v2006
  %v2010 = vrsqrt.pop %v1598
  %v2011 = vmul.f32 %v1598, %v2010
  %vm2012 = vcmp.eq.f32.partialorder %v1598, inf
  %v2013 = vsel %vm2012, %v1598, %v2011
  %vm2014 = vcmp.eq.f32.partialorder %v1598, 0.0
  %v2015 = vand.u32 %v1598, 2147483648
  %v2016 = vsel %vm2014, %v2015, %v2013
  %v2017 = vrsqrt.pop %v1599
  %v2018 = vmul.f32 %v1599, %v2017
  %vm2019 = vcmp.eq.f32.partialorder %v1599, inf
  %v2020 = vsel %vm2019, %v1599, %v2018
  %vm2021 = vcmp.eq.f32.partialorder %v1599, 0.0
  %v2022 = vand.u32 %v1599, 2147483648
  %v2023 = vsel %vm2021, %v2022, %v2020
  %v2024 = vrsqrt.pop %v1600
  %v2025 = vmul.f32 %v1600, %v2024
  %vm2026 = vcmp.eq.f32.partialorder %v1600, inf
  %v2027 = vsel %vm2026, %v1600, %v2025
  %vm2028 = vcmp.eq.f32.partialorder %v1600, 0.0
  %v2029 = vand.u32 %v1600, 2147483648
  %v2030 = vsel %vm2028, %v2029, %v2027
  %v2031 = vrsqrt.pop %v1601
  %v2032 = vmul.f32 %v1601, %v2031
  %vm2033 = vcmp.eq.f32.partialorder %v1601, inf
  %v2034 = vsel %vm2033, %v1601, %v2032
  %vm2035 = vcmp.eq.f32.partialorder %v1601, 0.0
  %v2036 = vand.u32 %v1601, 2147483648
  %v2037 = vsel %vm2035, %v2036, %v2034
  %v2038 = vrsqrt.pop %v1602
  %v2039 = vmul.f32 %v1602, %v2038
  %vm2040 = vcmp.eq.f32.partialorder %v1602, inf
  %v2041 = vsel %vm2040, %v1602, %v2039
  %vm2042 = vcmp.eq.f32.partialorder %v1602, 0.0
  %v2043 = vand.u32 %v1602, 2147483648
  %v2044 = vsel %vm2042, %v2043, %v2041
  %v2045 = vrsqrt.pop %v1603
  %v2046 = vmul.f32 %v1603, %v2045
  %vm2047 = vcmp.eq.f32.partialorder %v1603, inf
  %v2048 = vsel %vm2047, %v1603, %v2046
  %vm2049 = vcmp.eq.f32.partialorder %v1603, 0.0
  %v2050 = vand.u32 %v1603, 2147483648
  %v2051 = vsel %vm2049, %v2050, %v2048
  %v2052 = vlaneseq
  %v2053 = vshrl.u32 %v2052, 7
  %v2054 = vadd.s32 %v2053, 8
  %v2055 = vadd.s32 %v2053, 16
  %v2056 = vadd.s32 %v2053, 24
  %v2057 = vadd.s32 %v2053, 32
  %v2058 = vadd.s32 %v2053, 40
  %v2059 = vadd.s32 %v2053, 48
  %v2060 = vadd.s32 %v2053, 56
  %v2061 = vadd.s32 %v2053, 64
  %v2062 = vadd.s32 %v2053, 72
  %v2063 = vadd.s32 %v2053, 80
  %v2064 = vadd.s32 %v2053, 88
  %v2065 = vadd.s32 %v2053, 96
  %v2066 = vadd.s32 %v2053, 104
  %v2067 = vadd.s32 %v2053, 112
  %v2068 = vadd.s32 %v2053, 120
  %v2069 = vadd.s32 %v2053, 128
  %v2070 = vadd.s32 %v2053, 136
  %v2071 = vadd.s32 %v2053, 144
  %v2072 = vadd.s32 %v2053, 152
  %v2073 = vadd.s32 %v2053, 160
  %v2074 = vadd.s32 %v2053, 168
  %v2075 = vadd.s32 %v2053, 176
  %v2076 = vadd.s32 %v2053, 184
  %v2077 = vadd.s32 %v2053, 192
  %v2078 = vadd.s32 %v2053, 200
  %v2079 = vadd.s32 %v2053, 208
  %v2080 = vadd.s32 %v2053, 216
  %v2081 = vadd.s32 %v2053, 224
  %v2082 = vadd.s32 %v2053, 232
  %v2083 = vadd.s32 %v2053, 240
  %v2084 = vadd.s32 %v2053, 248
  %v2085 = vlaneseq
  %v2086 = vand.u32 %v2085, 127
  %v2087 = vadd.s32 %v2086, 128
  %v2088 = vstv %s19
  %vm2089 = vcmp.lt.s32.totalorder %v2053, %v2088
  %vm2090 = vcmp.lt.s32.totalorder %v2054, %v2088
  %vm2091 = vcmp.lt.s32.totalorder %v2055, %v2088
  %vm2092 = vcmp.lt.s32.totalorder %v2056, %v2088
  %vm2093 = vcmp.lt.s32.totalorder %v2057, %v2088
  %vm2094 = vcmp.lt.s32.totalorder %v2058, %v2088
  %vm2095 = vcmp.lt.s32.totalorder %v2059, %v2088
  %vm2096 = vcmp.lt.s32.totalorder %v2060, %v2088
  %vm2097 = vcmp.lt.s32.totalorder %v2061, %v2088
  %vm2098 = vcmp.lt.s32.totalorder %v2062, %v2088
  %vm2099 = vcmp.lt.s32.totalorder %v2063, %v2088
  %vm2100 = vcmp.lt.s32.totalorder %v2064, %v2088
  %vm2101 = vcmp.lt.s32.totalorder %v2065, %v2088
  %vm2102 = vcmp.lt.s32.totalorder %v2066, %v2088
  %vm2103 = vcmp.lt.s32.totalorder %v2067, %v2088
  %vm2104 = vcmp.lt.s32.totalorder %v2068, %v2088
  %vm2105 = vcmp.lt.s32.totalorder %v2069, %v2088
  %vm2106 = vcmp.lt.s32.totalorder %v2070, %v2088
  %vm2107 = vcmp.lt.s32.totalorder %v2071, %v2088
  %vm2108 = vcmp.lt.s32.totalorder %v2072, %v2088
  %vm2109 = vcmp.lt.s32.totalorder %v2073, %v2088
  %vm2110 = vcmp.lt.s32.totalorder %v2074, %v2088
  %vm2111 = vcmp.lt.s32.totalorder %v2075, %v2088
  %vm2112 = vcmp.lt.s32.totalorder %v2076, %v2088
  %vm2113 = vcmp.lt.s32.totalorder %v2077, %v2088
  %vm2114 = vcmp.lt.s32.totalorder %v2078, %v2088
  %vm2115 = vcmp.lt.s32.totalorder %v2079, %v2088
  %vm2116 = vcmp.lt.s32.totalorder %v2080, %v2088
  %vm2117 = vcmp.lt.s32.totalorder %v2081, %v2088
  %vm2118 = vcmp.lt.s32.totalorder %v2082, %v2088
  %vm2119 = vcmp.lt.s32.totalorder %v2083, %v2088
  %vm2120 = vcmp.lt.s32.totalorder %v2084, %v2088
  %vm2121 = vcmp.lt.s32.totalorder %v2086, %v2088
  %vm2122 = vcmp.lt.s32.totalorder %v2087, %v2088
  %v2123 = vsel %vm2089, 1, 0
  %v2124 = vsel %vm2090, 1, 0
  %v2125 = vsel %vm2091, 1, 0
  %v2126 = vsel %vm2092, 1, 0
  %v2127 = vsel %vm2093, 1, 0
  %v2128 = vsel %vm2094, 1, 0
  %v2129 = vsel %vm2095, 1, 0
  %v2130 = vsel %vm2096, 1, 0
  %v2131 = vsel %vm2097, 1, 0
  %v2132 = vsel %vm2098, 1, 0
  %v2133 = vsel %vm2099, 1, 0
  %v2134 = vsel %vm2100, 1, 0
  %v2135 = vsel %vm2101, 1, 0
  %v2136 = vsel %vm2102, 1, 0
  %v2137 = vsel %vm2103, 1, 0
  %v2138 = vsel %vm2104, 1, 0
  %v2139 = vsel %vm2105, 1, 0
  %v2140 = vsel %vm2106, 1, 0
  %v2141 = vsel %vm2107, 1, 0
  %v2142 = vsel %vm2108, 1, 0
  %v2143 = vsel %vm2109, 1, 0
  %v2144 = vsel %vm2110, 1, 0
  %v2145 = vsel %vm2111, 1, 0
  %v2146 = vsel %vm2112, 1, 0
  %v2147 = vsel %vm2113, 1, 0
  %v2148 = vsel %vm2114, 1, 0
  %v2149 = vsel %vm2115, 1, 0
  %v2150 = vsel %vm2116, 1, 0
  %v2151 = vsel %vm2117, 1, 0
  %v2152 = vsel %vm2118, 1, 0
  %v2153 = vsel %vm2119, 1, 0
  %v2154 = vsel %vm2120, 1, 0
  %vm2155 = vcmp.eq.s32.totalorder %v2123, 1
  %vm2156 = vcmp.eq.s32.totalorder %v2124, 1
  %vm2157 = vcmp.eq.s32.totalorder %v2125, 1
  %vm2158 = vcmp.eq.s32.totalorder %v2126, 1
  %vm2159 = vcmp.eq.s32.totalorder %v2127, 1
  %vm2160 = vcmp.eq.s32.totalorder %v2128, 1
  %vm2161 = vcmp.eq.s32.totalorder %v2129, 1
  %vm2162 = vcmp.eq.s32.totalorder %v2130, 1
  %vm2163 = vcmp.eq.s32.totalorder %v2131, 1
  %vm2164 = vcmp.eq.s32.totalorder %v2132, 1
  %vm2165 = vcmp.eq.s32.totalorder %v2133, 1
  %vm2166 = vcmp.eq.s32.totalorder %v2134, 1
  %vm2167 = vcmp.eq.s32.totalorder %v2135, 1
  %vm2168 = vcmp.eq.s32.totalorder %v2136, 1
  %vm2169 = vcmp.eq.s32.totalorder %v2137, 1
  %vm2170 = vcmp.eq.s32.totalorder %v2138, 1
  %vm2171 = vcmp.eq.s32.totalorder %v2139, 1
  %vm2172 = vcmp.eq.s32.totalorder %v2140, 1
  %vm2173 = vcmp.eq.s32.totalorder %v2141, 1
  %vm2174 = vcmp.eq.s32.totalorder %v2142, 1
  %vm2175 = vcmp.eq.s32.totalorder %v2143, 1
  %vm2176 = vcmp.eq.s32.totalorder %v2144, 1
  %vm2177 = vcmp.eq.s32.totalorder %v2145, 1
  %vm2178 = vcmp.eq.s32.totalorder %v2146, 1
  %vm2179 = vcmp.eq.s32.totalorder %v2147, 1
  %vm2180 = vcmp.eq.s32.totalorder %v2148, 1
  %vm2181 = vcmp.eq.s32.totalorder %v2149, 1
  %vm2182 = vcmp.eq.s32.totalorder %v2150, 1
  %vm2183 = vcmp.eq.s32.totalorder %v2151, 1
  %vm2184 = vcmp.eq.s32.totalorder %v2152, 1
  %vm2185 = vcmp.eq.s32.totalorder %v2153, 1
  %vm2186 = vcmp.eq.s32.totalorder %v2154, 1
  %v2187 = vsel %vm2121, 1, 0
  %v2188 = vsel %vm2122, 1, 0
  %vm2189 = vcmp.eq.s32.totalorder %v2187, 1
  %vm2190 = vcmp.eq.s32.totalorder %v2188, 1
  %vm2191 = vmand %vm2155, %vm2189
  %vm2192 = vmand %vm2155, %vm2190
  %vm2193 = vmand %vm2156, %vm2189
  %vm2194 = vmand %vm2156, %vm2190
  %vm2195 = vmand %vm2157, %vm2189
  %vm2196 = vmand %vm2157, %vm2190
  %vm2197 = vmand %vm2158, %vm2189
  %vm2198 = vmand %vm2158, %vm2190
  %vm2199 = vmand %vm2159, %vm2189
  %vm2200 = vmand %vm2159, %vm2190
  %vm2201 = vmand %vm2160, %vm2189
  %vm2202 = vmand %vm2160, %vm2190
  %vm2203 = vmand %vm2161, %vm2189
  %vm2204 = vmand %vm2161, %vm2190
  %vm2205 = vmand %vm2162, %vm2189
  %vm2206 = vmand %vm2162, %vm2190
  %vm2207 = vmand %vm2163, %vm2189
  %vm2208 = vmand %vm2163, %vm2190
  %vm2209 = vmand %vm2164, %vm2189
  %vm2210 = vmand %vm2164, %vm2190
  %vm2211 = vmand %vm2165, %vm2189
  %vm2212 = vmand %vm2165, %vm2190
  %vm2213 = vmand %vm2166, %vm2189
  %vm2214 = vmand %vm2166, %vm2190
  %vm2215 = vmand %vm2167, %vm2189
  %vm2216 = vmand %vm2167, %vm2190
  %vm2217 = vmand %vm2168, %vm2189
  %vm2218 = vmand %vm2168, %vm2190
  %vm2219 = vmand %vm2169, %vm2189
  %vm2220 = vmand %vm2169, %vm2190
  %vm2221 = vmand %vm2170, %vm2189
  %vm2222 = vmand %vm2170, %vm2190
  %vm2223 = vmand %vm2171, %vm2189
  %vm2224 = vmand %vm2171, %vm2190
  %vm2225 = vmand %vm2172, %vm2189
  %vm2226 = vmand %vm2172, %vm2190
  %vm2227 = vmand %vm2173, %vm2189
  %vm2228 = vmand %vm2173, %vm2190
  %vm2229 = vmand %vm2174, %vm2189
  %vm2230 = vmand %vm2174, %vm2190
  %vm2231 = vmand %vm2175, %vm2189
  %vm2232 = vmand %vm2175, %vm2190
  %vm2233 = vmand %vm2176, %vm2189
  %vm2234 = vmand %vm2176, %vm2190
  %vm2235 = vmand %vm2177, %vm2189
  %vm2236 = vmand %vm2177, %vm2190
  %vm2237 = vmand %vm2178, %vm2189
  %vm2238 = vmand %vm2178, %vm2190
  %vm2239 = vmand %vm2179, %vm2189
  %vm2240 = vmand %vm2179, %vm2190
  %vm2241 = vmand %vm2180, %vm2189
  %vm2242 = vmand %vm2180, %vm2190
  %vm2243 = vmand %vm2181, %vm2189
  %vm2244 = vmand %vm2181, %vm2190
  %vm2245 = vmand %vm2182, %vm2189
  %vm2246 = vmand %vm2182, %vm2190
  %vm2247 = vmand %vm2183, %vm2189
  %vm2248 = vmand %vm2183, %vm2190
  %vm2249 = vmand %vm2184, %vm2189
  %vm2250 = vmand %vm2184, %vm2190
  %vm2251 = vmand %vm2185, %vm2189
  %vm2252 = vmand %vm2185, %vm2190
  %vm2253 = vmand %vm2186, %vm2189
  %vm2254 = vmand %vm2186, %vm2190
  %v2255 = vsel %vm2191, 1, 0
  %v2256 = vsel %vm2192, 1, 0
  %v2257 = vsel %vm2193, 1, 0
  %v2258 = vsel %vm2194, 1, 0
  %v2259 = vsel %vm2195, 1, 0
  %v2260 = vsel %vm2196, 1, 0
  %v2261 = vsel %vm2197, 1, 0
  %v2262 = vsel %vm2198, 1, 0
  %v2263 = vsel %vm2199, 1, 0
  %v2264 = vsel %vm2200, 1, 0
  %v2265 = vsel %vm2201, 1, 0
  %v2266 = vsel %vm2202, 1, 0
  %v2267 = vsel %vm2203, 1, 0
  %v2268 = vsel %vm2204, 1, 0
  %v2269 = vsel %vm2205, 1, 0
  %v2270 = vsel %vm2206, 1, 0
  %v2271 = vsel %vm2207, 1, 0
  %v2272 = vsel %vm2208, 1, 0
  %v2273 = vsel %vm2209, 1, 0
  %v2274 = vsel %vm2210, 1, 0
  %v2275 = vsel %vm2211, 1, 0
  %v2276 = vsel %vm2212, 1, 0
  %v2277 = vsel %vm2213, 1, 0
  %v2278 = vsel %vm2214, 1, 0
  %v2279 = vsel %vm2215, 1, 0
  %v2280 = vsel %vm2216, 1, 0
  %v2281 = vsel %vm2217, 1, 0
  %v2282 = vsel %vm2218, 1, 0
  %v2283 = vsel %vm2219, 1, 0
  %v2284 = vsel %vm2220, 1, 0
  %v2285 = vsel %vm2221, 1, 0
  %v2286 = vsel %vm2222, 1, 0
  %v2287 = vsel %vm2223, 1, 0
  %v2288 = vsel %vm2224, 1, 0
  %v2289 = vsel %vm2225, 1, 0
  %v2290 = vsel %vm2226, 1, 0
  %v2291 = vsel %vm2227, 1, 0
  %v2292 = vsel %vm2228, 1, 0
  %v2293 = vsel %vm2229, 1, 0
  %v2294 = vsel %vm2230, 1, 0
  %v2295 = vsel %vm2231, 1, 0
  %v2296 = vsel %vm2232, 1, 0
  %v2297 = vsel %vm2233, 1, 0
  %v2298 = vsel %vm2234, 1, 0
  %v2299 = vsel %vm2235, 1, 0
  %v2300 = vsel %vm2236, 1, 0
  %v2301 = vsel %vm2237, 1, 0
  %v2302 = vsel %vm2238, 1, 0
  %v2303 = vsel %vm2239, 1, 0
  %v2304 = vsel %vm2240, 1, 0
  %v2305 = vsel %vm2241, 1, 0
  %v2306 = vsel %vm2242, 1, 0
  %v2307 = vsel %vm2243, 1, 0
  %v2308 = vsel %vm2244, 1, 0
  %v2309 = vsel %vm2245, 1, 0
  %v2310 = vsel %vm2246, 1, 0
  %v2311 = vsel %vm2247, 1, 0
  %v2312 = vsel %vm2248, 1, 0
  %v2313 = vsel %vm2249, 1, 0
  %v2314 = vsel %vm2250, 1, 0
  %v2315 = vsel %vm2251, 1, 0
  %v2316 = vsel %vm2252, 1, 0
  %v2317 = vsel %vm2253, 1, 0
  %v2318 = vsel %vm2254, 1, 0
  %v2319 = vcvt.s32.f32 %v2255
  %v2320 = vcvt.s32.f32 %v2256
  %v2321 = vcvt.s32.f32 %v2257
  %v2322 = vcvt.s32.f32 %v2258
  %v2323 = vcvt.s32.f32 %v2259
  %v2324 = vcvt.s32.f32 %v2260
  %v2325 = vcvt.s32.f32 %v2261
  %v2326 = vcvt.s32.f32 %v2262
  %v2327 = vcvt.s32.f32 %v2263
  %v2328 = vcvt.s32.f32 %v2264
  %v2329 = vcvt.s32.f32 %v2265
  %v2330 = vcvt.s32.f32 %v2266
  %v2331 = vcvt.s32.f32 %v2267
  %v2332 = vcvt.s32.f32 %v2268
  %v2333 = vcvt.s32.f32 %v2269
  %v2334 = vcvt.s32.f32 %v2270
  %v2335 = vcvt.s32.f32 %v2271
  %v2336 = vcvt.s32.f32 %v2272
  %v2337 = vcvt.s32.f32 %v2273
  %v2338 = vcvt.s32.f32 %v2274
  %v2339 = vcvt.s32.f32 %v2275
  %v2340 = vcvt.s32.f32 %v2276
  %v2341 = vcvt.s32.f32 %v2277
  %v2342 = vcvt.s32.f32 %v2278
  %v2343 = vcvt.s32.f32 %v2279
  %v2344 = vcvt.s32.f32 %v2280
  %v2345 = vcvt.s32.f32 %v2281
  %v2346 = vcvt.s32.f32 %v2282
  %v2347 = vcvt.s32.f32 %v2283
  %v2348 = vcvt.s32.f32 %v2284
  %v2349 = vcvt.s32.f32 %v2285
  %v2350 = vcvt.s32.f32 %v2286
  %v2351 = vcvt.s32.f32 %v2287
  %v2352 = vcvt.s32.f32 %v2288
  %v2353 = vcvt.s32.f32 %v2289
  %v2354 = vcvt.s32.f32 %v2290
  %v2355 = vcvt.s32.f32 %v2291
  %v2356 = vcvt.s32.f32 %v2292
  %v2357 = vcvt.s32.f32 %v2293
  %v2358 = vcvt.s32.f32 %v2294
  %v2359 = vcvt.s32.f32 %v2295
  %v2360 = vcvt.s32.f32 %v2296
  %v2361 = vcvt.s32.f32 %v2297
  %v2362 = vcvt.s32.f32 %v2298
  %v2363 = vcvt.s32.f32 %v2299
  %v2364 = vcvt.s32.f32 %v2300
  %v2365 = vcvt.s32.f32 %v2301
  %v2366 = vcvt.s32.f32 %v2302
  %v2367 = vcvt.s32.f32 %v2303
  %v2368 = vcvt.s32.f32 %v2304
  %v2369 = vcvt.s32.f32 %v2305
  %v2370 = vcvt.s32.f32 %v2306
  %v2371 = vcvt.s32.f32 %v2307
  %v2372 = vcvt.s32.f32 %v2308
  %v2373 = vcvt.s32.f32 %v2309
  %v2374 = vcvt.s32.f32 %v2310
  %v2375 = vcvt.s32.f32 %v2311
  %v2376 = vcvt.s32.f32 %v2312
  %v2377 = vcvt.s32.f32 %v2313
  %v2378 = vcvt.s32.f32 %v2314
  %v2379 = vcvt.s32.f32 %v2315
  %v2380 = vcvt.s32.f32 %v2316
  %v2381 = vcvt.s32.f32 %v2317
  %v2382 = vcvt.s32.f32 %v2318
  %vm2383 = vcmp.lt.f32.partialorder %v954, 0.0441
  %vm2384 = vcmp.lt.f32.partialorder %v955, 0.0441
  %vm2385 = vcmp.lt.f32.partialorder %v956, 0.0441
  %vm2386 = vcmp.lt.f32.partialorder %v957, 0.0441
  %vm2387 = vcmp.lt.f32.partialorder %v958, 0.0441
  %vm2388 = vcmp.lt.f32.partialorder %v959, 0.0441
  %vm2389 = vcmp.lt.f32.partialorder %v960, 0.0441
  %vm2390 = vcmp.lt.f32.partialorder %v961, 0.0441
  %vm2391 = vcmp.lt.f32.partialorder %v962, 0.0441
  %vm2392 = vcmp.lt.f32.partialorder %v963, 0.0441
  %vm2393 = vcmp.lt.f32.partialorder %v964, 0.0441
  %vm2394 = vcmp.lt.f32.partialorder %v965, 0.0441
  %vm2395 = vcmp.lt.f32.partialorder %v966, 0.0441
  %vm2396 = vcmp.lt.f32.partialorder %v967, 0.0441
  %vm2397 = vcmp.lt.f32.partialorder %v968, 0.0441
  %vm2398 = vcmp.lt.f32.partialorder %v969, 0.0441
  %vm2399 = vcmp.lt.f32.partialorder %v970, 0.0441
  %vm2400 = vcmp.lt.f32.partialorder %v971, 0.0441
  %vm2401 = vcmp.lt.f32.partialorder %v972, 0.0441
  %vm2402 = vcmp.lt.f32.partialorder %v973, 0.0441
  %vm2403 = vcmp.lt.f32.partialorder %v974, 0.0441
  %vm2404 = vcmp.lt.f32.partialorder %v975, 0.0441
  %vm2405 = vcmp.lt.f32.partialorder %v976, 0.0441
  %vm2406 = vcmp.lt.f32.partialorder %v977, 0.0441
  %vm2407 = vcmp.lt.f32.partialorder %v978, 0.0441
  %vm2408 = vcmp.lt.f32.partialorder %v979, 0.0441
  %vm2409 = vcmp.lt.f32.partialorder %v980, 0.0441
  %vm2410 = vcmp.lt.f32.partialorder %v981, 0.0441
  %vm2411 = vcmp.lt.f32.partialorder %v982, 0.0441
  %vm2412 = vcmp.lt.f32.partialorder %v983, 0.0441
  %vm2413 = vcmp.lt.f32.partialorder %v984, 0.0441
  %vm2414 = vcmp.lt.f32.partialorder %v985, 0.0441
  %vm2415 = vcmp.lt.f32.partialorder %v986, 0.0441
  %vm2416 = vcmp.lt.f32.partialorder %v987, 0.0441
  %vm2417 = vcmp.lt.f32.partialorder %v988, 0.0441
  %vm2418 = vcmp.lt.f32.partialorder %v989, 0.0441
  %vm2419 = vcmp.lt.f32.partialorder %v990, 0.0441
  %vm2420 = vcmp.lt.f32.partialorder %v991, 0.0441
  %vm2421 = vcmp.lt.f32.partialorder %v992, 0.0441
  %vm2422 = vcmp.lt.f32.partialorder %v993, 0.0441
  %vm2423 = vcmp.lt.f32.partialorder %v994, 0.0441
  %vm2424 = vcmp.lt.f32.partialorder %v995, 0.0441
  %vm2425 = vcmp.lt.f32.partialorder %v996, 0.0441
  %vm2426 = vcmp.lt.f32.partialorder %v997, 0.0441
  %vm2427 = vcmp.lt.f32.partialorder %v998, 0.0441
  %vm2428 = vcmp.lt.f32.partialorder %v999, 0.0441
  %vm2429 = vcmp.lt.f32.partialorder %v1000, 0.0441
  %vm2430 = vcmp.lt.f32.partialorder %v1001, 0.0441
  %vm2431 = vcmp.lt.f32.partialorder %v1002, 0.0441
  %vm2432 = vcmp.lt.f32.partialorder %v1003, 0.0441
  %vm2433 = vcmp.lt.f32.partialorder %v1004, 0.0441
  %vm2434 = vcmp.lt.f32.partialorder %v1005, 0.0441
  %vm2435 = vcmp.lt.f32.partialorder %v1006, 0.0441
  %vm2436 = vcmp.lt.f32.partialorder %v1007, 0.0441
  %vm2437 = vcmp.lt.f32.partialorder %v1008, 0.0441
  %vm2438 = vcmp.lt.f32.partialorder %v1009, 0.0441
  %vm2439 = vcmp.lt.f32.partialorder %v1010, 0.0441
  %vm2440 = vcmp.lt.f32.partialorder %v1011, 0.0441
  %vm2441 = vcmp.lt.f32.partialorder %v1012, 0.0441
  %vm2442 = vcmp.lt.f32.partialorder %v1013, 0.0441
  %vm2443 = vcmp.lt.f32.partialorder %v1014, 0.0441
  %vm2444 = vcmp.lt.f32.partialorder %v1015, 0.0441
  %vm2445 = vcmp.lt.f32.partialorder %v1016, 0.0441
  %vm2446 = vcmp.lt.f32.partialorder %v1017, 0.0441
  %vm2447 = vmand %vm2383, %vm2191
  %vm2448 = vmand %vm2384, %vm2192
  %vm2449 = vmand %vm2385, %vm2193
  %vm2450 = vmand %vm2386, %vm2194
  %vm2451 = vmand %vm2387, %vm2195
  %vm2452 = vmand %vm2388, %vm2196
  %vm2453 = vmand %vm2389, %vm2197
  %vm2454 = vmand %vm2390, %vm2198
  %vm2455 = vmand %vm2391, %vm2199
  %vm2456 = vmand %vm2392, %vm2200
  %vm2457 = vmand %vm2393, %vm2201
  %vm2458 = vmand %vm2394, %vm2202
  %vm2459 = vmand %vm2395, %vm2203
  %vm2460 = vmand %vm2396, %vm2204
  %vm2461 = vmand %vm2397, %vm2205
  %vm2462 = vmand %vm2398, %vm2206
  %vm2463 = vmand %vm2399, %vm2207
  %vm2464 = vmand %vm2400, %vm2208
  %vm2465 = vmand %vm2401, %vm2209
  %vm2466 = vmand %vm2402, %vm2210
  %vm2467 = vmand %vm2403, %vm2211
  %vm2468 = vmand %vm2404, %vm2212
  %vm2469 = vmand %vm2405, %vm2213
  %vm2470 = vmand %vm2406, %vm2214
  %vm2471 = vmand %vm2407, %vm2215
  %vm2472 = vmand %vm2408, %vm2216
  %vm2473 = vmand %vm2409, %vm2217
  %vm2474 = vmand %vm2410, %vm2218
  %vm2475 = vmand %vm2411, %vm2219
  %vm2476 = vmand %vm2412, %vm2220
  %vm2477 = vmand %vm2413, %vm2221
  %vm2478 = vmand %vm2414, %vm2222
  %vm2479 = vmand %vm2415, %vm2223
  %vm2480 = vmand %vm2416, %vm2224
  %vm2481 = vmand %vm2417, %vm2225
  %vm2482 = vmand %vm2418, %vm2226
  %vm2483 = vmand %vm2419, %vm2227
  %vm2484 = vmand %vm2420, %vm2228
  %vm2485 = vmand %vm2421, %vm2229
  %vm2486 = vmand %vm2422, %vm2230
  %vm2487 = vmand %vm2423, %vm2231
  %vm2488 = vmand %vm2424, %vm2232
  %vm2489 = vmand %vm2425, %vm2233
  %vm2490 = vmand %vm2426, %vm2234
  %vm2491 = vmand %vm2427, %vm2235
  %vm2492 = vmand %vm2428, %vm2236
  %vm2493 = vmand %vm2429, %vm2237
  %vm2494 = vmand %vm2430, %vm2238
  %vm2495 = vmand %vm2431, %vm2239
  %vm2496 = vmand %vm2432, %vm2240
  %vm2497 = vmand %vm2433, %vm2241
  %vm2498 = vmand %vm2434, %vm2242
  %vm2499 = vmand %vm2435, %vm2243
  %vm2500 = vmand %vm2436, %vm2244
  %vm2501 = vmand %vm2437, %vm2245
  %vm2502 = vmand %vm2438, %vm2246
  %vm2503 = vmand %vm2439, %vm2247
  %vm2504 = vmand %vm2440, %vm2248
  %vm2505 = vmand %vm2441, %vm2249
  %vm2506 = vmand %vm2442, %vm2250
  %vm2507 = vmand %vm2443, %vm2251
  %vm2508 = vmand %vm2444, %vm2252
  %vm2509 = vmand %vm2445, %vm2253
  %vm2510 = vmand %vm2446, %vm2254
  %vm2511 = vcmp.gt.f32.partialorder %v954, 0.5625
  %vm2512 = vcmp.gt.f32.partialorder %v955, 0.5625
  %vm2513 = vcmp.gt.f32.partialorder %v956, 0.5625
  %vm2514 = vcmp.gt.f32.partialorder %v957, 0.5625
  %vm2515 = vcmp.gt.f32.partialorder %v958, 0.5625
  %vm2516 = vcmp.gt.f32.partialorder %v959, 0.5625
  %vm2517 = vcmp.gt.f32.partialorder %v960, 0.5625
  %vm2518 = vcmp.gt.f32.partialorder %v961, 0.5625
  %vm2519 = vcmp.gt.f32.partialorder %v962, 0.5625
  %vm2520 = vcmp.gt.f32.partialorder %v963, 0.5625
  %vm2521 = vcmp.gt.f32.partialorder %v964, 0.5625
  %vm2522 = vcmp.gt.f32.partialorder %v965, 0.5625
  %vm2523 = vcmp.gt.f32.partialorder %v966, 0.5625
  %vm2524 = vcmp.gt.f32.partialorder %v967, 0.5625
  %vm2525 = vcmp.gt.f32.partialorder %v968, 0.5625
  %vm2526 = vcmp.gt.f32.partialorder %v969, 0.5625
  %vm2527 = vcmp.gt.f32.partialorder %v970, 0.5625
  %vm2528 = vcmp.gt.f32.partialorder %v971, 0.5625
  %vm2529 = vcmp.gt.f32.partialorder %v972, 0.5625
  %vm2530 = vcmp.gt.f32.partialorder %v973, 0.5625
  %vm2531 = vcmp.gt.f32.partialorder %v974, 0.5625
  %vm2532 = vcmp.gt.f32.partialorder %v975, 0.5625
  %vm2533 = vcmp.gt.f32.partialorder %v976, 0.5625
  %vm2534 = vcmp.gt.f32.partialorder %v977, 0.5625
  %vm2535 = vcmp.gt.f32.partialorder %v978, 0.5625
  %vm2536 = vcmp.gt.f32.partialorder %v979, 0.5625
  %vm2537 = vcmp.gt.f32.partialorder %v980, 0.5625
  %vm2538 = vcmp.gt.f32.partialorder %v981, 0.5625
  %vm2539 = vcmp.gt.f32.partialorder %v982, 0.5625
  %vm2540 = vcmp.gt.f32.partialorder %v983, 0.5625
  %vm2541 = vcmp.gt.f32.partialorder %v984, 0.5625
  %vm2542 = vcmp.gt.f32.partialorder %v985, 0.5625
  %vm2543 = vcmp.gt.f32.partialorder %v986, 0.5625
  %vm2544 = vcmp.gt.f32.partialorder %v987, 0.5625
  %vm2545 = vcmp.gt.f32.partialorder %v988, 0.5625
  %vm2546 = vcmp.gt.f32.partialorder %v989, 0.5625
  %vm2547 = vcmp.gt.f32.partialorder %v990, 0.5625
  %vm2548 = vcmp.gt.f32.partialorder %v991, 0.5625
  %vm2549 = vcmp.gt.f32.partialorder %v992, 0.5625
  %vm2550 = vcmp.gt.f32.partialorder %v993, 0.5625
  %vm2551 = vcmp.gt.f32.partialorder %v994, 0.5625
  %vm2552 = vcmp.gt.f32.partialorder %v995, 0.5625
  %vm2553 = vcmp.gt.f32.partialorder %v996, 0.5625
  %vm2554 = vcmp.gt.f32.partialorder %v997, 0.5625
  %vm2555 = vcmp.gt.f32.partialorder %v998, 0.5625
  %vm2556 = vcmp.gt.f32.partialorder %v999, 0.5625
  %vm2557 = vcmp.gt.f32.partialorder %v1000, 0.5625
  %vm2558 = vcmp.gt.f32.partialorder %v1001, 0.5625
  %vm2559 = vcmp.gt.f32.partialorder %v1002, 0.5625
  %vm2560 = vcmp.gt.f32.partialorder %v1003, 0.5625
  %vm2561 = vcmp.gt.f32.partialorder %v1004, 0.5625
  %vm2562 = vcmp.gt.f32.partialorder %v1005, 0.5625
  %vm2563 = vcmp.gt.f32.partialorder %v1006, 0.5625
  %vm2564 = vcmp.gt.f32.partialorder %v1007, 0.5625
  %vm2565 = vcmp.gt.f32.partialorder %v1008, 0.5625
  %vm2566 = vcmp.gt.f32.partialorder %v1009, 0.5625
  %vm2567 = vcmp.gt.f32.partialorder %v1010, 0.5625
  %vm2568 = vcmp.gt.f32.partialorder %v1011, 0.5625
  %vm2569 = vcmp.gt.f32.partialorder %v1012, 0.5625
  %vm2570 = vcmp.gt.f32.partialorder %v1013, 0.5625
  %vm2571 = vcmp.gt.f32.partialorder %v1014, 0.5625
  %vm2572 = vcmp.gt.f32.partialorder %v1015, 0.5625
  %vm2573 = vcmp.gt.f32.partialorder %v1016, 0.5625
  %vm2574 = vcmp.gt.f32.partialorder %v1017, 0.5625
  %vm2575 = vmand %vm2511, %vm2191
  %vm2576 = vmand %vm2512, %vm2192
  %vm2577 = vmand %vm2513, %vm2193
  %vm2578 = vmand %vm2514, %vm2194
  %vm2579 = vmand %vm2515, %vm2195
  %vm2580 = vmand %vm2516, %vm2196
  %vm2581 = vmand %vm2517, %vm2197
  %vm2582 = vmand %vm2518, %vm2198
  %vm2583 = vmand %vm2519, %vm2199
  %vm2584 = vmand %vm2520, %vm2200
  %vm2585 = vmand %vm2521, %vm2201
  %vm2586 = vmand %vm2522, %vm2202
  %vm2587 = vmand %vm2523, %vm2203
  %vm2588 = vmand %vm2524, %vm2204
  %vm2589 = vmand %vm2525, %vm2205
  %vm2590 = vmand %vm2526, %vm2206
  %vm2591 = vmand %vm2527, %vm2207
  %vm2592 = vmand %vm2528, %vm2208
  %vm2593 = vmand %vm2529, %vm2209
  %vm2594 = vmand %vm2530, %vm2210
  %vm2595 = vmand %vm2531, %vm2211
  %vm2596 = vmand %vm2532, %vm2212
  %vm2597 = vmand %vm2533, %vm2213
  %vm2598 = vmand %vm2534, %vm2214
  %vm2599 = vmand %vm2535, %vm2215
  %vm2600 = vmand %vm2536, %vm2216
  %vm2601 = vmand %vm2537, %vm2217
  %vm2602 = vmand %vm2538, %vm2218
  %vm2603 = vmand %vm2539, %vm2219
  %vm2604 = vmand %vm2540, %vm2220
  %vm2605 = vmand %vm2541, %vm2221
  %vm2606 = vmand %vm2542, %vm2222
  %vm2607 = vmand %vm2543, %vm2223
  %vm2608 = vmand %vm2544, %vm2224
  %vm2609 = vmand %vm2545, %vm2225
  %vm2610 = vmand %vm2546, %vm2226
  %vm2611 = vmand %vm2547, %vm2227
  %vm2612 = vmand %vm2548, %vm2228
  %vm2613 = vmand %vm2549, %vm2229
  %vm2614 = vmand %vm2550, %vm2230
  %vm2615 = vmand %vm2551, %vm2231
  %vm2616 = vmand %vm2552, %vm2232
  %vm2617 = vmand %vm2553, %vm2233
  %vm2618 = vmand %vm2554, %vm2234
  %vm2619 = vmand %vm2555, %vm2235
  %vm2620 = vmand %vm2556, %vm2236
  %vm2621 = vmand %vm2557, %vm2237
  %vm2622 = vmand %vm2558, %vm2238
  %vm2623 = vmand %vm2559, %vm2239
  %vm2624 = vmand %vm2560, %vm2240
  %vm2625 = vmand %vm2561, %vm2241
  %vm2626 = vmand %vm2562, %vm2242
  %vm2627 = vmand %vm2563, %vm2243
  %vm2628 = vmand %vm2564, %vm2244
  %vm2629 = vmand %vm2565, %vm2245
  %vm2630 = vmand %vm2566, %vm2246
  %vm2631 = vmand %vm2567, %vm2247
  %vm2632 = vmand %vm2568, %vm2248
  %vm2633 = vmand %vm2569, %vm2249
  %vm2634 = vmand %vm2570, %vm2250
  %vm2635 = vmand %vm2571, %vm2251
  %vm2636 = vmand %vm2572, %vm2252
  %vm2637 = vmand %vm2573, %vm2253
  %vm2638 = vmand %vm2574, %vm2254
  %v2639 = vsub.f32 %v1610, 0.1
  %v2640 = vsub.f32 %v1617, 0.1
  %v2641 = vsub.f32 %v1624, 0.1
  %v2642 = vsub.f32 %v1631, 0.1
  %v2643 = vsub.f32 %v1638, 0.1
  %v2644 = vsub.f32 %v1645, 0.1
  %v2645 = vsub.f32 %v1652, 0.1
  %v2646 = vsub.f32 %v1659, 0.1
  %v2647 = vsub.f32 %v1666, 0.1
  %v2648 = vsub.f32 %v1673, 0.1
  %v2649 = vsub.f32 %v1680, 0.1
  %v2650 = vsub.f32 %v1687, 0.1
  %v2651 = vsub.f32 %v1694, 0.1
  %v2652 = vsub.f32 %v1701, 0.1
  %v2653 = vsub.f32 %v1708, 0.1
  %v2654 = vsub.f32 %v1715, 0.1
  %v2655 = vsub.f32 %v1722, 0.1
  %v2656 = vsub.f32 %v1729, 0.1
  %v2657 = vsub.f32 %v1736, 0.1
  %v2658 = vsub.f32 %v1743, 0.1
  %v2659 = vsub.f32 %v1750, 0.1
  %v2660 = vsub.f32 %v1757, 0.1
  %v2661 = vsub.f32 %v1764, 0.1
  %v2662 = vsub.f32 %v1771, 0.1
  %v2663 = vsub.f32 %v1778, 0.1
  %v2664 = vsub.f32 %v1785, 0.1
  %v2665 = vsub.f32 %v1792, 0.1
  %v2666 = vsub.f32 %v1799, 0.1
  %v2667 = vsub.f32 %v1806, 0.1
  %v2668 = vsub.f32 %v1813, 0.1
  %v2669 = vsub.f32 %v1820, 0.1
  %v2670 = vsub.f32 %v1827, 0.1
  %v2671 = vsub.f32 %v1834, 0.1
  %v2672 = vsub.f32 %v1841, 0.1
  %v2673 = vsub.f32 %v1848, 0.1
  %v2674 = vsub.f32 %v1855, 0.1
  %v2675 = vsub.f32 %v1862, 0.1
  %v2676 = vsub.f32 %v1869, 0.1
  %v2677 = vsub.f32 %v1876, 0.1
  %v2678 = vsub.f32 %v1883, 0.1
  %v2679 = vsub.f32 %v1890, 0.1
  %v2680 = vsub.f32 %v1897, 0.1
  %v2681 = vsub.f32 %v1904, 0.1
  %v2682 = vsub.f32 %v1911, 0.1
  %v2683 = vsub.f32 %v1918, 0.1
  %v2684 = vsub.f32 %v1925, 0.1
  %v2685 = vsub.f32 %v1932, 0.1
  %v2686 = vsub.f32 %v1939, 0.1
  %v2687 = vsub.f32 %v1946, 0.1
  %v2688 = vsub.f32 %v1953, 0.1
  %v2689 = vsub.f32 %v1960, 0.1
  %v2690 = vsub.f32 %v1967, 0.1
  %v2691 = vsub.f32 %v1974, 0.1
  %v2692 = vsub.f32 %v1981, 0.1
  %v2693 = vsub.f32 %v1988, 0.1
  %v2694 = vsub.f32 %v1995, 0.1
  %v2695 = vsub.f32 %v2002, 0.1
  %v2696 = vsub.f32 %v2009, 0.1
  %v2697 = vsub.f32 %v2016, 0.1
  %v2698 = vsub.f32 %v2023, 0.1
  %v2699 = vsub.f32 %v2030, 0.1
  %v2700 = vsub.f32 %v2037, 0.1
  %v2701 = vsub.f32 %v2044, 0.1
  %v2702 = vsub.f32 %v2051, 0.1
  %v2703 = vmax.f32 %v2639, 0.0
  %v2704 = vmax.f32 %v2640, 0.0
  %v2705 = vmax.f32 %v2641, 0.0
  %v2706 = vmax.f32 %v2642, 0.0
  %v2707 = vmax.f32 %v2643, 0.0
  %v2708 = vmax.f32 %v2644, 0.0
  %v2709 = vmax.f32 %v2645, 0.0
  %v2710 = vmax.f32 %v2646, 0.0
  %v2711 = vmax.f32 %v2647, 0.0
  %v2712 = vmax.f32 %v2648, 0.0
  %v2713 = vmax.f32 %v2649, 0.0
  %v2714 = vmax.f32 %v2650, 0.0
  %v2715 = vmax.f32 %v2651, 0.0
  %v2716 = vmax.f32 %v2652, 0.0
  %v2717 = vmax.f32 %v2653, 0.0
  %v2718 = vmax.f32 %v2654, 0.0
  %v2719 = vmax.f32 %v2655, 0.0
  %v2720 = vmax.f32 %v2656, 0.0
  %v2721 = vmax.f32 %v2657, 0.0
  %v2722 = vmax.f32 %v2658, 0.0
  %v2723 = vmax.f32 %v2659, 0.0
  %v2724 = vmax.f32 %v2660, 0.0
  %v2725 = vmax.f32 %v2661, 0.0
  %v2726 = vmax.f32 %v2662, 0.0
  %v2727 = vmax.f32 %v2663, 0.0
  %v2728 = vmax.f32 %v2664, 0.0
  %v2729 = vmax.f32 %v2665, 0.0
  %v2730 = vmax.f32 %v2666, 0.0
  %v2731 = vmax.f32 %v2667, 0.0
  %v2732 = vmax.f32 %v2668, 0.0
  %v2733 = vmax.f32 %v2669, 0.0
  %v2734 = vmax.f32 %v2670, 0.0
  %v2735 = vmax.f32 %v2671, 0.0
  %v2736 = vmax.f32 %v2672, 0.0
  %v2737 = vmax.f32 %v2673, 0.0
  %v2738 = vmax.f32 %v2674, 0.0
  %v2739 = vmax.f32 %v2675, 0.0
  %v2740 = vmax.f32 %v2676, 0.0
  %v2741 = vmax.f32 %v2677, 0.0
  %v2742 = vmax.f32 %v2678, 0.0
  %v2743 = vmax.f32 %v2679, 0.0
  %v2744 = vmax.f32 %v2680, 0.0
  %v2745 = vmax.f32 %v2681, 0.0
  %v2746 = vmax.f32 %v2682, 0.0
  %v2747 = vmax.f32 %v2683, 0.0
  %v2748 = vmax.f32 %v2684, 0.0
  %v2749 = vmax.f32 %v2685, 0.0
  %v2750 = vmax.f32 %v2686, 0.0
  %v2751 = vmax.f32 %v2687, 0.0
  %v2752 = vmax.f32 %v2688, 0.0
  %v2753 = vmax.f32 %v2689, 0.0
  %v2754 = vmax.f32 %v2690, 0.0
  %v2755 = vmax.f32 %v2691, 0.0
  %v2756 = vmax.f32 %v2692, 0.0
  %v2757 = vmax.f32 %v2693, 0.0
  %v2758 = vmax.f32 %v2694, 0.0
  %v2759 = vmax.f32 %v2695, 0.0
  %v2760 = vmax.f32 %v2696, 0.0
  %v2761 = vmax.f32 %v2697, 0.0
  %v2762 = vmax.f32 %v2698, 0.0
  %v2763 = vmax.f32 %v2699, 0.0
  %v2764 = vmax.f32 %v2700, 0.0
  %v2765 = vmax.f32 %v2701, 0.0
  %v2766 = vmax.f32 %v2702, 0.0
  %v2767 = vsel %vm2447, %v2703, 0.0
  %v2768 = vsel %vm2448, %v2704, 0.0
  %v2769 = vsel %vm2449, %v2705, 0.0
  %v2770 = vsel %vm2450, %v2706, 0.0
  %v2771 = vsel %vm2451, %v2707, 0.0
  %v2772 = vsel %vm2452, %v2708, 0.0
  %v2773 = vsel %vm2453, %v2709, 0.0
  %v2774 = vsel %vm2454, %v2710, 0.0
  %v2775 = vsel %vm2455, %v2711, 0.0
  %v2776 = vsel %vm2456, %v2712, 0.0
  %v2777 = vsel %vm2457, %v2713, 0.0
  %v2778 = vsel %vm2458, %v2714, 0.0
  %v2779 = vsel %vm2459, %v2715, 0.0
  %v2780 = vsel %vm2460, %v2716, 0.0
  %v2781 = vsel %vm2461, %v2717, 0.0
  %v2782 = vsel %vm2462, %v2718, 0.0
  %v2783 = vsel %vm2463, %v2719, 0.0
  %v2784 = vsel %vm2464, %v2720, 0.0
  %v2785 = vsel %vm2465, %v2721, 0.0
  %v2786 = vsel %vm2466, %v2722, 0.0
  %v2787 = vsel %vm2467, %v2723, 0.0
  %v2788 = vsel %vm2468, %v2724, 0.0
  %v2789 = vsel %vm2469, %v2725, 0.0
  %v2790 = vsel %vm2470, %v2726, 0.0
  %v2791 = vsel %vm2471, %v2727, 0.0
  %v2792 = vsel %vm2472, %v2728, 0.0
  %v2793 = vsel %vm2473, %v2729, 0.0
  %v2794 = vsel %vm2474, %v2730, 0.0
  %v2795 = vsel %vm2475, %v2731, 0.0
  %v2796 = vsel %vm2476, %v2732, 0.0
  %v2797 = vsel %vm2477, %v2733, 0.0
  %v2798 = vsel %vm2478, %v2734, 0.0
  %v2799 = vsel %vm2479, %v2735, 0.0
  %v2800 = vsel %vm2480, %v2736, 0.0
  %v2801 = vsel %vm2481, %v2737, 0.0
  %v2802 = vsel %vm2482, %v2738, 0.0
  %v2803 = vsel %vm2483, %v2739, 0.0
  %v2804 = vsel %vm2484, %v2740, 0.0
  %v2805 = vsel %vm2485, %v2741, 0.0
  %v2806 = vsel %vm2486, %v2742, 0.0
  %v2807 = vsel %vm2487, %v2743, 0.0
  %v2808 = vsel %vm2488, %v2744, 0.0
  %v2809 = vsel %vm2489, %v2745, 0.0
  %v2810 = vsel %vm2490, %v2746, 0.0
  %v2811 = vsel %vm2491, %v2747, 0.0
  %v2812 = vsel %vm2492, %v2748, 0.0
  %v2813 = vsel %vm2493, %v2749, 0.0
  %v2814 = vsel %vm2494, %v2750, 0.0
  %v2815 = vsel %vm2495, %v2751, 0.0
  %v2816 = vsel %vm2496, %v2752, 0.0
  %v2817 = vsel %vm2497, %v2753, 0.0
  %v2818 = vsel %vm2498, %v2754, 0.0
  %v2819 = vsel %vm2499, %v2755, 0.0
  %v2820 = vsel %vm2500, %v2756, 0.0
  %v2821 = vsel %vm2501, %v2757, 0.0
  %v2822 = vsel %vm2502, %v2758, 0.0
  %v2823 = vsel %vm2503, %v2759, 0.0
  %v2824 = vsel %vm2504, %v2760, 0.0
  %v2825 = vsel %vm2505, %v2761, 0.0
  %v2826 = vsel %vm2506, %v2762, 0.0
  %v2827 = vsel %vm2507, %v2763, 0.0
  %v2828 = vsel %vm2508, %v2764, 0.0
  %v2829 = vsel %vm2509, %v2765, 0.0
  %v2830 = vsel %vm2510, %v2766, 0.0
  %v2831 = vsub.f32 1.4, %v1610
  %v2832 = vsub.f32 1.4, %v1617
  %v2833 = vsub.f32 1.4, %v1624
  %v2834 = vsub.f32 1.4, %v1631
  %v2835 = vsub.f32 1.4, %v1638
  %v2836 = vsub.f32 1.4, %v1645
  %v2837 = vsub.f32 1.4, %v1652
  %v2838 = vsub.f32 1.4, %v1659
  %v2839 = vsub.f32 1.4, %v1666
  %v2840 = vsub.f32 1.4, %v1673
  %v2841 = vsub.f32 1.4, %v1680
  %v2842 = vsub.f32 1.4, %v1687
  %v2843 = vsub.f32 1.4, %v1694
  %v2844 = vsub.f32 1.4, %v1701
  %v2845 = vsub.f32 1.4, %v1708
  %v2846 = vsub.f32 1.4, %v1715
  %v2847 = vsub.f32 1.4, %v1722
  %v2848 = vsub.f32 1.4, %v1729
  %v2849 = vsub.f32 1.4, %v1736
  %v2850 = vsub.f32 1.4, %v1743
  %v2851 = vsub.f32 1.4, %v1750
  %v2852 = vsub.f32 1.4, %v1757
  %v2853 = vsub.f32 1.4, %v1764
  %v2854 = vsub.f32 1.4, %v1771
  %v2855 = vsub.f32 1.4, %v1778
  %v2856 = vsub.f32 1.4, %v1785
  %v2857 = vsub.f32 1.4, %v1792
  %v2858 = vsub.f32 1.4, %v1799
  %v2859 = vsub.f32 1.4, %v1806
  %v2860 = vsub.f32 1.4, %v1813
  %v2861 = vsub.f32 1.4, %v1820
  %v2862 = vsub.f32 1.4, %v1827
  %v2863 = vsub.f32 1.4, %v1834
  %v2864 = vsub.f32 1.4, %v1841
  %v2865 = vsub.f32 1.4, %v1848
  %v2866 = vsub.f32 1.4, %v1855
  %v2867 = vsub.f32 1.4, %v1862
  %v2868 = vsub.f32 1.4, %v1869
  %v2869 = vsub.f32 1.4, %v1876
  %v2870 = vsub.f32 1.4, %v1883
  %v2871 = vsub.f32 1.4, %v1890
  %v2872 = vsub.f32 1.4, %v1897
  %v2873 = vsub.f32 1.4, %v1904
  %v2874 = vsub.f32 1.4, %v1911
  %v2875 = vsub.f32 1.4, %v1918
  %v2876 = vsub.f32 1.4, %v1925
  %v2877 = vsub.f32 1.4, %v1932
  %v2878 = vsub.f32 1.4, %v1939
  %v2879 = vsub.f32 1.4, %v1946
  %v2880 = vsub.f32 1.4, %v1953
  %v2881 = vsub.f32 1.4, %v1960
  %v2882 = vsub.f32 1.4, %v1967
  %v2883 = vsub.f32 1.4, %v1974
  %v2884 = vsub.f32 1.4, %v1981
  %v2885 = vsub.f32 1.4, %v1988
  %v2886 = vsub.f32 1.4, %v1995
  %v2887 = vsub.f32 1.4, %v2002
  %v2888 = vsub.f32 1.4, %v2009
  %v2889 = vsub.f32 1.4, %v2016
  %v2890 = vsub.f32 1.4, %v2023
  %v2891 = vsub.f32 1.4, %v2030
  %v2892 = vsub.f32 1.4, %v2037
  %v2893 = vsub.f32 1.4, %v2044
  %v2894 = vsub.f32 1.4, %v2051
  %v2895 = vmax.f32 %v2831, 0.0
  %v2896 = vmax.f32 %v2832, 0.0
  %v2897 = vmax.f32 %v2833, 0.0
  %v2898 = vmax.f32 %v2834, 0.0
  %v2899 = vmax.f32 %v2835, 0.0
  %v2900 = vmax.f32 %v2836, 0.0
  %v2901 = vmax.f32 %v2837, 0.0
  %v2902 = vmax.f32 %v2838, 0.0
  %v2903 = vmax.f32 %v2839, 0.0
  %v2904 = vmax.f32 %v2840, 0.0
  %v2905 = vmax.f32 %v2841, 0.0
  %v2906 = vmax.f32 %v2842, 0.0
  %v2907 = vmax.f32 %v2843, 0.0
  %v2908 = vmax.f32 %v2844, 0.0
  %v2909 = vmax.f32 %v2845, 0.0
  %v2910 = vmax.f32 %v2846, 0.0
  %v2911 = vmax.f32 %v2847, 0.0
  %v2912 = vmax.f32 %v2848, 0.0
  %v2913 = vmax.f32 %v2849, 0.0
  %v2914 = vmax.f32 %v2850, 0.0
  %v2915 = vmax.f32 %v2851, 0.0
  %v2916 = vmax.f32 %v2852, 0.0
  %v2917 = vmax.f32 %v2853, 0.0
  %v2918 = vmax.f32 %v2854, 0.0
  %v2919 = vmax.f32 %v2855, 0.0
  %v2920 = vmax.f32 %v2856, 0.0
  %v2921 = vmax.f32 %v2857, 0.0
  %v2922 = vmax.f32 %v2858, 0.0
  %v2923 = vmax.f32 %v2859, 0.0
  %v2924 = vmax.f32 %v2860, 0.0
  %v2925 = vmax.f32 %v2861, 0.0
  %v2926 = vmax.f32 %v2862, 0.0
  %v2927 = vmax.f32 %v2863, 0.0
  %v2928 = vmax.f32 %v2864, 0.0
  %v2929 = vmax.f32 %v2865, 0.0
  %v2930 = vmax.f32 %v2866, 0.0
  %v2931 = vmax.f32 %v2867, 0.0
  %v2932 = vmax.f32 %v2868, 0.0
  %v2933 = vmax.f32 %v2869, 0.0
  %v2934 = vmax.f32 %v2870, 0.0
  %v2935 = vmax.f32 %v2871, 0.0
  %v2936 = vmax.f32 %v2872, 0.0
  %v2937 = vmax.f32 %v2873, 0.0
  %v2938 = vmax.f32 %v2874, 0.0
  %v2939 = vmax.f32 %v2875, 0.0
  %v2940 = vmax.f32 %v2876, 0.0
  %v2941 = vmax.f32 %v2877, 0.0
  %v2942 = vmax.f32 %v2878, 0.0
  %v2943 = vmax.f32 %v2879, 0.0
  %v2944 = vmax.f32 %v2880, 0.0
  %v2945 = vmax.f32 %v2881, 0.0
  %v2946 = vmax.f32 %v2882, 0.0
  %v2947 = vmax.f32 %v2883, 0.0
  %v2948 = vmax.f32 %v2884, 0.0
  %v2949 = vmax.f32 %v2885, 0.0
  %v2950 = vmax.f32 %v2886, 0.0
  %v2951 = vmax.f32 %v2887, 0.0
  %v2952 = vmax.f32 %v2888, 0.0
  %v2953 = vmax.f32 %v2889, 0.0
  %v2954 = vmax.f32 %v2890, 0.0
  %v2955 = vmax.f32 %v2891, 0.0
  %v2956 = vmax.f32 %v2892, 0.0
  %v2957 = vmax.f32 %v2893, 0.0
  %v2958 = vmax.f32 %v2894, 0.0
  %v2959 = vsel %vm2575, %v2895, 0.0
  %v2960 = vsel %vm2576, %v2896, 0.0
  %v2961 = vsel %vm2577, %v2897, 0.0
  %v2962 = vsel %vm2578, %v2898, 0.0
  %v2963 = vsel %vm2579, %v2899, 0.0
  %v2964 = vsel %vm2580, %v2900, 0.0
  %v2965 = vsel %vm2581, %v2901, 0.0
  %v2966 = vsel %vm2582, %v2902, 0.0
  %v2967 = vsel %vm2583, %v2903, 0.0
  %v2968 = vsel %vm2584, %v2904, 0.0
  %v2969 = vsel %vm2585, %v2905, 0.0
  %v2970 = vsel %vm2586, %v2906, 0.0
  %v2971 = vsel %vm2587, %v2907, 0.0
  %v2972 = vsel %vm2588, %v2908, 0.0
  %v2973 = vsel %vm2589, %v2909, 0.0
  %v2974 = vsel %vm2590, %v2910, 0.0
  %v2975 = vsel %vm2591, %v2911, 0.0
  %v2976 = vsel %vm2592, %v2912, 0.0
  %v2977 = vsel %vm2593, %v2913, 0.0
  %v2978 = vsel %vm2594, %v2914, 0.0
  %v2979 = vsel %vm2595, %v2915, 0.0
  %v2980 = vsel %vm2596, %v2916, 0.0
  %v2981 = vsel %vm2597, %v2917, 0.0
  %v2982 = vsel %vm2598, %v2918, 0.0
  %v2983 = vsel %vm2599, %v2919, 0.0
  %v2984 = vsel %vm2600, %v2920, 0.0
  %v2985 = vsel %vm2601, %v2921, 0.0
  %v2986 = vsel %vm2602, %v2922, 0.0
  %v2987 = vsel %vm2603, %v2923, 0.0
  %v2988 = vsel %vm2604, %v2924, 0.0
  %v2989 = vsel %vm2605, %v2925, 0.0
  %v2990 = vsel %vm2606, %v2926, 0.0
  %v2991 = vsel %vm2607, %v2927, 0.0
  %v2992 = vsel %vm2608, %v2928, 0.0
  %v2993 = vsel %vm2609, %v2929, 0.0
  %v2994 = vsel %vm2610, %v2930, 0.0
  %v2995 = vsel %vm2611, %v2931, 0.0
  %v2996 = vsel %vm2612, %v2932, 0.0
  %v2997 = vsel %vm2613, %v2933, 0.0
  %v2998 = vsel %vm2614, %v2934, 0.0
  %v2999 = vsel %vm2615, %v2935, 0.0
  %v3000 = vsel %vm2616, %v2936, 0.0
  %v3001 = vsel %vm2617, %v2937, 0.0
  %v3002 = vsel %vm2618, %v2938, 0.0
  %v3003 = vsel %vm2619, %v2939, 0.0
  %v3004 = vsel %vm2620, %v2940, 0.0
  %v3005 = vsel %vm2621, %v2941, 0.0
  %v3006 = vsel %vm2622, %v2942, 0.0
  %v3007 = vsel %vm2623, %v2943, 0.0
  %v3008 = vsel %vm2624, %v2944, 0.0
  %v3009 = vsel %vm2625, %v2945, 0.0
  %v3010 = vsel %vm2626, %v2946, 0.0
  %v3011 = vsel %vm2627, %v2947, 0.0
  %v3012 = vsel %vm2628, %v2948, 0.0
  %v3013 = vsel %vm2629, %v2949, 0.0
  %v3014 = vsel %vm2630, %v2950, 0.0
  %v3015 = vsel %vm2631, %v2951, 0.0
  %v3016 = vsel %vm2632, %v2952, 0.0
  %v3017 = vsel %vm2633, %v2953, 0.0
  %v3018 = vsel %vm2634, %v2954, 0.0
  %v3019 = vsel %vm2635, %v2955, 0.0
  %v3020 = vsel %vm2636, %v2956, 0.0
  %v3021 = vsel %vm2637, %v2957, 0.0
  %v3022 = vsel %vm2638, %v2958, 0.0
  %v3023 = vmul.f32 %v2639, %v2767
  %v3024 = vmul.f32 %v2640, %v2768
  %v3025 = vmul.f32 %v2641, %v2769
  %v3026 = vmul.f32 %v2642, %v2770
  %v3027 = vmul.f32 %v2643, %v2771
  %v3028 = vmul.f32 %v2644, %v2772
  %v3029 = vmul.f32 %v2645, %v2773
  %v3030 = vmul.f32 %v2646, %v2774
  %v3031 = vmul.f32 %v2647, %v2775
  %v3032 = vmul.f32 %v2648, %v2776
  %v3033 = vmul.f32 %v2649, %v2777
  %v3034 = vmul.f32 %v2650, %v2778
  %v3035 = vmul.f32 %v2651, %v2779
  %v3036 = vmul.f32 %v2652, %v2780
  %v3037 = vmul.f32 %v2653, %v2781
  %v3038 = vmul.f32 %v2654, %v2782
  %v3039 = vmul.f32 %v2655, %v2783
  %v3040 = vmul.f32 %v2656, %v2784
  %v3041 = vmul.f32 %v2657, %v2785
  %v3042 = vmul.f32 %v2658, %v2786
  %v3043 = vmul.f32 %v2659, %v2787
  %v3044 = vmul.f32 %v2660, %v2788
  %v3045 = vmul.f32 %v2661, %v2789
  %v3046 = vmul.f32 %v2662, %v2790
  %v3047 = vmul.f32 %v2663, %v2791
  %v3048 = vmul.f32 %v2664, %v2792
  %v3049 = vmul.f32 %v2665, %v2793
  %v3050 = vmul.f32 %v2666, %v2794
  %v3051 = vmul.f32 %v2667, %v2795
  %v3052 = vmul.f32 %v2668, %v2796
  %v3053 = vmul.f32 %v2669, %v2797
  %v3054 = vmul.f32 %v2670, %v2798
  %v3055 = vmul.f32 %v2671, %v2799
  %v3056 = vmul.f32 %v2672, %v2800
  %v3057 = vmul.f32 %v2673, %v2801
  %v3058 = vmul.f32 %v2674, %v2802
  %v3059 = vmul.f32 %v2675, %v2803
  %v3060 = vmul.f32 %v2676, %v2804
  %v3061 = vmul.f32 %v2677, %v2805
  %v3062 = vmul.f32 %v2678, %v2806
  %v3063 = vmul.f32 %v2679, %v2807
  %v3064 = vmul.f32 %v2680, %v2808
  %v3065 = vmul.f32 %v2681, %v2809
  %v3066 = vmul.f32 %v2682, %v2810
  %v3067 = vmul.f32 %v2683, %v2811
  %v3068 = vmul.f32 %v2684, %v2812
  %v3069 = vmul.f32 %v2685, %v2813
  %v3070 = vmul.f32 %v2686, %v2814
  %v3071 = vmul.f32 %v2687, %v2815
  %v3072 = vmul.f32 %v2688, %v2816
  %v3073 = vmul.f32 %v2689, %v2817
  %v3074 = vmul.f32 %v2690, %v2818
  %v3075 = vmul.f32 %v2691, %v2819
  %v3076 = vmul.f32 %v2692, %v2820
  %v3077 = vmul.f32 %v2693, %v2821
  %v3078 = vmul.f32 %v2694, %v2822
  %v3079 = vmul.f32 %v2695, %v2823
  %v3080 = vmul.f32 %v2696, %v2824
  %v3081 = vmul.f32 %v2697, %v2825
  %v3082 = vmul.f32 %v2698, %v2826
  %v3083 = vmul.f32 %v2699, %v2827
  %v3084 = vmul.f32 %v2700, %v2828
  %v3085 = vmul.f32 %v2701, %v2829
  %v3086 = vmul.f32 %v2702, %v2830
  %v3087 = vmul.f32 %v2831, %v2959
  %v3088 = vmul.f32 %v2832, %v2960
  %v3089 = vmul.f32 %v2833, %v2961
  %v3090 = vmul.f32 %v2834, %v2962
  %v3091 = vmul.f32 %v2835, %v2963
  %v3092 = vmul.f32 %v2836, %v2964
  %v3093 = vmul.f32 %v2837, %v2965
  %v3094 = vmul.f32 %v2838, %v2966
  %v3095 = vmul.f32 %v2839, %v2967
  %v3096 = vmul.f32 %v2840, %v2968
  %v3097 = vmul.f32 %v2841, %v2969
  %v3098 = vmul.f32 %v2842, %v2970
  %v3099 = vmul.f32 %v2843, %v2971
  %v3100 = vmul.f32 %v2844, %v2972
  %v3101 = vmul.f32 %v2845, %v2973
  %v3102 = vmul.f32 %v2846, %v2974
  %v3103 = vmul.f32 %v2847, %v2975
  %v3104 = vmul.f32 %v2848, %v2976
  %v3105 = vmul.f32 %v2849, %v2977
  %v3106 = vmul.f32 %v2850, %v2978
  %v3107 = vmul.f32 %v2851, %v2979
  %v3108 = vmul.f32 %v2852, %v2980
  %v3109 = vmul.f32 %v2853, %v2981
  %v3110 = vmul.f32 %v2854, %v2982
  %v3111 = vmul.f32 %v2855, %v2983
  %v3112 = vmul.f32 %v2856, %v2984
  %v3113 = vmul.f32 %v2857, %v2985
  %v3114 = vmul.f32 %v2858, %v2986
  %v3115 = vmul.f32 %v2859, %v2987
  %v3116 = vmul.f32 %v2860, %v2988
  %v3117 = vmul.f32 %v2861, %v2989
  %v3118 = vmul.f32 %v2862, %v2990
  %v3119 = vmul.f32 %v2863, %v2991
  %v3120 = vmul.f32 %v2864, %v2992
  %v3121 = vmul.f32 %v2865, %v2993
  %v3122 = vmul.f32 %v2866, %v2994
  %v3123 = vmul.f32 %v2867, %v2995
  %v3124 = vmul.f32 %v2868, %v2996
  %v3125 = vmul.f32 %v2869, %v2997
  %v3126 = vmul.f32 %v2870, %v2998
  %v3127 = vmul.f32 %v2871, %v2999
  %v3128 = vmul.f32 %v2872, %v3000
  %v3129 = vmul.f32 %v2873, %v3001
  %v3130 = vmul.f32 %v2874, %v3002
  %v3131 = vmul.f32 %v2875, %v3003
  %v3132 = vmul.f32 %v2876, %v3004
  %v3133 = vmul.f32 %v2877, %v3005
  %v3134 = vmul.f32 %v2878, %v3006
  %v3135 = vmul.f32 %v2879, %v3007
  %v3136 = vmul.f32 %v2880, %v3008
  %v3137 = vmul.f32 %v2881, %v3009
  %v3138 = vmul.f32 %v2882, %v3010
  %v3139 = vmul.f32 %v2883, %v3011
  %v3140 = vmul.f32 %v2884, %v3012
  %v3141 = vmul.f32 %v2885, %v3013
  %v3142 = vmul.f32 %v2886, %v3014
  %v3143 = vmul.f32 %v2887, %v3015
  %v3144 = vmul.f32 %v2888, %v3016
  %v3145 = vmul.f32 %v2889, %v3017
  %v3146 = vmul.f32 %v2890, %v3018
  %v3147 = vmul.f32 %v2891, %v3019
  %v3148 = vmul.f32 %v2892, %v3020
  %v3149 = vmul.f32 %v2893, %v3021
  %v3150 = vmul.f32 %v2894, %v3022
  %v3151 = vadd.f32 %v3023, %v3087
  %v3152 = vadd.f32 %v3024, %v3088
  %v3153 = vadd.f32 %v3025, %v3089
  %v3154 = vadd.f32 %v3026, %v3090
  %v3155 = vadd.f32 %v3027, %v3091
  %v3156 = vadd.f32 %v3028, %v3092
  %v3157 = vadd.f32 %v3029, %v3093
  %v3158 = vadd.f32 %v3030, %v3094
  %v3159 = vadd.f32 %v3031, %v3095
  %v3160 = vadd.f32 %v3032, %v3096
  %v3161 = vadd.f32 %v3033, %v3097
  %v3162 = vadd.f32 %v3034, %v3098
  %v3163 = vadd.f32 %v3035, %v3099
  %v3164 = vadd.f32 %v3036, %v3100
  %v3165 = vadd.f32 %v3037, %v3101
  %v3166 = vadd.f32 %v3038, %v3102
  %v3167 = vadd.f32 %v3039, %v3103
  %v3168 = vadd.f32 %v3040, %v3104
  %v3169 = vadd.f32 %v3041, %v3105
  %v3170 = vadd.f32 %v3042, %v3106
  %v3171 = vadd.f32 %v3043, %v3107
  %v3172 = vadd.f32 %v3044, %v3108
  %v3173 = vadd.f32 %v3045, %v3109
  %v3174 = vadd.f32 %v3046, %v3110
  %v3175 = vadd.f32 %v3047, %v3111
  %v3176 = vadd.f32 %v3048, %v3112
  %v3177 = vadd.f32 %v3049, %v3113
  %v3178 = vadd.f32 %v3050, %v3114
  %v3179 = vadd.f32 %v3051, %v3115
  %v3180 = vadd.f32 %v3052, %v3116
  %v3181 = vadd.f32 %v3053, %v3117
  %v3182 = vadd.f32 %v3054, %v3118
  %v3183 = vadd.f32 %v3055, %v3119
  %v3184 = vadd.f32 %v3056, %v3120
  %v3185 = vadd.f32 %v3057, %v3121
  %v3186 = vadd.f32 %v3058, %v3122
  %v3187 = vadd.f32 %v3059, %v3123
  %v3188 = vadd.f32 %v3060, %v3124
  %v3189 = vadd.f32 %v3061, %v3125
  %v3190 = vadd.f32 %v3062, %v3126
  %v3191 = vadd.f32 %v3063, %v3127
  %v3192 = vadd.f32 %v3064, %v3128
  %v3193 = vadd.f32 %v3065, %v3129
  %v3194 = vadd.f32 %v3066, %v3130
  %v3195 = vadd.f32 %v3067, %v3131
  %v3196 = vadd.f32 %v3068, %v3132
  %v3197 = vadd.f32 %v3069, %v3133
  %v3198 = vadd.f32 %v3070, %v3134
  %v3199 = vadd.f32 %v3071, %v3135
  %v3200 = vadd.f32 %v3072, %v3136
  %v3201 = vadd.f32 %v3073, %v3137
  %v3202 = vadd.f32 %v3074, %v3138
  %v3203 = vadd.f32 %v3075, %v3139
  %v3204 = vadd.f32 %v3076, %v3140
  %v3205 = vadd.f32 %v3077, %v3141
  %v3206 = vadd.f32 %v3078, %v3142
  %v3207 = vadd.f32 %v3079, %v3143
  %v3208 = vadd.f32 %v3080, %v3144
  %v3209 = vadd.f32 %v3081, %v3145
  %v3210 = vadd.f32 %v3082, %v3146
  %v3211 = vadd.f32 %v3083, %v3147
  %v3212 = vadd.f32 %v3084, %v3148
  %v3213 = vadd.f32 %v3085, %v3149
  %v3214 = vadd.f32 %v3086, %v3150
  %v3215 = vmul.f32 %v3151, 16.0
  %v3216 = vmul.f32 %v3152, 16.0
  %v3217 = vmul.f32 %v3153, 16.0
  %v3218 = vmul.f32 %v3154, 16.0
  %v3219 = vmul.f32 %v3155, 16.0
  %v3220 = vmul.f32 %v3156, 16.0
  %v3221 = vmul.f32 %v3157, 16.0
  %v3222 = vmul.f32 %v3158, 16.0
  %v3223 = vmul.f32 %v3159, 16.0
  %v3224 = vmul.f32 %v3160, 16.0
  %v3225 = vmul.f32 %v3161, 16.0
  %v3226 = vmul.f32 %v3162, 16.0
  %v3227 = vmul.f32 %v3163, 16.0
  %v3228 = vmul.f32 %v3164, 16.0
  %v3229 = vmul.f32 %v3165, 16.0
  %v3230 = vmul.f32 %v3166, 16.0
  %v3231 = vmul.f32 %v3167, 16.0
  %v3232 = vmul.f32 %v3168, 16.0
  %v3233 = vmul.f32 %v3169, 16.0
  %v3234 = vmul.f32 %v3170, 16.0
  %v3235 = vmul.f32 %v3171, 16.0
  %v3236 = vmul.f32 %v3172, 16.0
  %v3237 = vmul.f32 %v3173, 16.0
  %v3238 = vmul.f32 %v3174, 16.0
  %v3239 = vmul.f32 %v3175, 16.0
  %v3240 = vmul.f32 %v3176, 16.0
  %v3241 = vmul.f32 %v3177, 16.0
  %v3242 = vmul.f32 %v3178, 16.0
  %v3243 = vmul.f32 %v3179, 16.0
  %v3244 = vmul.f32 %v3180, 16.0
  %v3245 = vmul.f32 %v3181, 16.0
  %v3246 = vmul.f32 %v3182, 16.0
  %v3247 = vmul.f32 %v3183, 16.0
  %v3248 = vmul.f32 %v3184, 16.0
  %v3249 = vmul.f32 %v3185, 16.0
  %v3250 = vmul.f32 %v3186, 16.0
  %v3251 = vmul.f32 %v3187, 16.0
  %v3252 = vmul.f32 %v3188, 16.0
  %v3253 = vmul.f32 %v3189, 16.0
  %v3254 = vmul.f32 %v3190, 16.0
  %v3255 = vmul.f32 %v3191, 16.0
  %v3256 = vmul.f32 %v3192, 16.0
  %v3257 = vmul.f32 %v3193, 16.0
  %v3258 = vmul.f32 %v3194, 16.0
  %v3259 = vmul.f32 %v3195, 16.0
  %v3260 = vmul.f32 %v3196, 16.0
  %v3261 = vmul.f32 %v3197, 16.0
  %v3262 = vmul.f32 %v3198, 16.0
  %v3263 = vmul.f32 %v3199, 16.0
  %v3264 = vmul.f32 %v3200, 16.0
  %v3265 = vmul.f32 %v3201, 16.0
  %v3266 = vmul.f32 %v3202, 16.0
  %v3267 = vmul.f32 %v3203, 16.0
  %v3268 = vmul.f32 %v3204, 16.0
  %v3269 = vmul.f32 %v3205, 16.0
  %v3270 = vmul.f32 %v3206, 16.0
  %v3271 = vmul.f32 %v3207, 16.0
  %v3272 = vmul.f32 %v3208, 16.0
  %v3273 = vmul.f32 %v3209, 16.0
  %v3274 = vmul.f32 %v3210, 16.0
  %v3275 = vmul.f32 %v3211, 16.0
  %v3276 = vmul.f32 %v3212, 16.0
  %v3277 = vmul.f32 %v3213, 16.0
  %v3278 = vmul.f32 %v3214, 16.0
  %v3279 = vmul.f32 %v3215, 1.442695
  %v3280 = vpow.pop %v3279
  %v3281 = vmul.f32 %v3216, 1.442695
  %v3282 = vpow.pop %v3281
  %v3283 = vmul.f32 %v3217, 1.442695
  %v3284 = vpow.pop %v3283
  %v3285 = vmul.f32 %v3218, 1.442695
  %v3286 = vpow.pop %v3285
  %v3287 = vmul.f32 %v3219, 1.442695
  %v3288 = vpow.pop %v3287
  %v3289 = vmul.f32 %v3220, 1.442695
  %v3290 = vpow.pop %v3289
  %v3291 = vmul.f32 %v3221, 1.442695
  %v3292 = vpow.pop %v3291
  %v3293 = vmul.f32 %v3222, 1.442695
  %v3294 = vpow.pop %v3293
  %v3295 = vmul.f32 %v3223, 1.442695
  %v3296 = vpow.pop %v3295
  %v3297 = vmul.f32 %v3224, 1.442695
  %v3298 = vpow.pop %v3297
  %v3299 = vmul.f32 %v3225, 1.442695
  %v3300 = vpow.pop %v3299
  %v3301 = vmul.f32 %v3226, 1.442695
  %v3302 = vpow.pop %v3301
  %v3303 = vmul.f32 %v3227, 1.442695
  %v3304 = vpow.pop %v3303
  %v3305 = vmul.f32 %v3228, 1.442695
  %v3306 = vpow.pop %v3305
  %v3307 = vmul.f32 %v3229, 1.442695
  %v3308 = vpow.pop %v3307
  %v3309 = vmul.f32 %v3230, 1.442695
  %v3310 = vpow.pop %v3309
  %v3311 = vmul.f32 %v3231, 1.442695
  %v3312 = vpow.pop %v3311
  %v3313 = vmul.f32 %v3232, 1.442695
  %v3314 = vpow.pop %v3313
  %v3315 = vmul.f32 %v3233, 1.442695
  %v3316 = vpow.pop %v3315
  %v3317 = vmul.f32 %v3234, 1.442695
  %v3318 = vpow.pop %v3317
  %v3319 = vmul.f32 %v3235, 1.442695
  %v3320 = vpow.pop %v3319
  %v3321 = vmul.f32 %v3236, 1.442695
  %v3322 = vpow.pop %v3321
  %v3323 = vmul.f32 %v3237, 1.442695
  %v3324 = vpow.pop %v3323
  %v3325 = vmul.f32 %v3238, 1.442695
  %v3326 = vpow.pop %v3325
  %v3327 = vmul.f32 %v3239, 1.442695
  %v3328 = vpow.pop %v3327
  %v3329 = vmul.f32 %v3240, 1.442695
  %v3330 = vpow.pop %v3329
  %v3331 = vmul.f32 %v3241, 1.442695
  %v3332 = vpow.pop %v3331
  %v3333 = vmul.f32 %v3242, 1.442695
  %v3334 = vpow.pop %v3333
  %v3335 = vmul.f32 %v3243, 1.442695
  %v3336 = vpow.pop %v3335
  %v3337 = vmul.f32 %v3244, 1.442695
  %v3338 = vpow.pop %v3337
  %v3339 = vmul.f32 %v3245, 1.442695
  %v3340 = vpow.pop %v3339
  %v3341 = vmul.f32 %v3246, 1.442695
  %v3342 = vpow.pop %v3341
  %v3343 = vmul.f32 %v3247, 1.442695
  %v3344 = vpow.pop %v3343
  %v3345 = vmul.f32 %v3248, 1.442695
  %v3346 = vpow.pop %v3345
  %v3347 = vmul.f32 %v3249, 1.442695
  %v3348 = vpow.pop %v3347
  %v3349 = vmul.f32 %v3250, 1.442695
  %v3350 = vpow.pop %v3349
  %v3351 = vmul.f32 %v3251, 1.442695
  %v3352 = vpow.pop %v3351
  %v3353 = vmul.f32 %v3252, 1.442695
  %v3354 = vpow.pop %v3353
  %v3355 = vmul.f32 %v3253, 1.442695
  %v3356 = vpow.pop %v3355
  %v3357 = vmul.f32 %v3254, 1.442695
  %v3358 = vpow.pop %v3357
  %v3359 = vmul.f32 %v3255, 1.442695
  %v3360 = vpow.pop %v3359
  %v3361 = vmul.f32 %v3256, 1.442695
  %v3362 = vpow.pop %v3361
  %v3363 = vmul.f32 %v3257, 1.442695
  %v3364 = vpow.pop %v3363
  %v3365 = vmul.f32 %v3258, 1.442695
  %v3366 = vpow.pop %v3365
  %v3367 = vmul.f32 %v3259, 1.442695
  %v3368 = vpow.pop %v3367
  %v3369 = vmul.f32 %v3260, 1.442695
  %v3370 = vpow.pop %v3369
  %v3371 = vmul.f32 %v3261, 1.442695
  %v3372 = vpow.pop %v3371
  %v3373 = vmul.f32 %v3262, 1.442695
  %v3374 = vpow.pop %v3373
  %v3375 = vmul.f32 %v3263, 1.442695
  %v3376 = vpow.pop %v3375
  %v3377 = vmul.f32 %v3264, 1.442695
  %v3378 = vpow.pop %v3377
  %v3379 = vmul.f32 %v3265, 1.442695
  %v3380 = vpow.pop %v3379
  %v3381 = vmul.f32 %v3266, 1.442695
  %v3382 = vpow.pop %v3381
  %v3383 = vmul.f32 %v3267, 1.442695
  %v3384 = vpow.pop %v3383
  %v3385 = vmul.f32 %v3268, 1.442695
  %v3386 = vpow.pop %v3385
  %v3387 = vmul.f32 %v3269, 1.442695
  %v3388 = vpow.pop %v3387
  %v3389 = vmul.f32 %v3270, 1.442695
  %v3390 = vpow.pop %v3389
  %v3391 = vmul.f32 %v3271, 1.442695
  %v3392 = vpow.pop %v3391
  %v3393 = vmul.f32 %v3272, 1.442695
  %v3394 = vpow.pop %v3393
  %v3395 = vmul.f32 %v3273, 1.442695
  %v3396 = vpow.pop %v3395
  %v3397 = vmul.f32 %v3274, 1.442695
  %v3398 = vpow.pop %v3397
  %v3399 = vmul.f32 %v3275, 1.442695
  %v3400 = vpow.pop %v3399
  %v3401 = vmul.f32 %v3276, 1.442695
  %v3402 = vpow.pop %v3401
  %v3403 = vmul.f32 %v3277, 1.442695
  %v3404 = vpow.pop %v3403
  %v3405 = vmul.f32 %v3278, 1.442695
  %v3406 = vpow.pop %v3405
  %v3407 = vsel %vm2447, %v3280, %v2319
  %v3408 = vsel %vm2448, %v3282, %v2320
  %v3409 = vsel %vm2449, %v3284, %v2321
  %v3410 = vsel %vm2450, %v3286, %v2322
  %v3411 = vsel %vm2451, %v3288, %v2323
  %v3412 = vsel %vm2452, %v3290, %v2324
  %v3413 = vsel %vm2453, %v3292, %v2325
  %v3414 = vsel %vm2454, %v3294, %v2326
  %v3415 = vsel %vm2455, %v3296, %v2327
  %v3416 = vsel %vm2456, %v3298, %v2328
  %v3417 = vsel %vm2457, %v3300, %v2329
  %v3418 = vsel %vm2458, %v3302, %v2330
  %v3419 = vsel %vm2459, %v3304, %v2331
  %v3420 = vsel %vm2460, %v3306, %v2332
  %v3421 = vsel %vm2461, %v3308, %v2333
  %v3422 = vsel %vm2462, %v3310, %v2334
  %v3423 = vsel %vm2463, %v3312, %v2335
  %v3424 = vsel %vm2464, %v3314, %v2336
  %v3425 = vsel %vm2465, %v3316, %v2337
  %v3426 = vsel %vm2466, %v3318, %v2338
  %v3427 = vsel %vm2467, %v3320, %v2339
  %v3428 = vsel %vm2468, %v3322, %v2340
  %v3429 = vsel %vm2469, %v3324, %v2341
  %v3430 = vsel %vm2470, %v3326, %v2342
  %v3431 = vsel %vm2471, %v3328, %v2343
  %v3432 = vsel %vm2472, %v3330, %v2344
  %v3433 = vsel %vm2473, %v3332, %v2345
  %v3434 = vsel %vm2474, %v3334, %v2346
  %v3435 = vsel %vm2475, %v3336, %v2347
  %v3436 = vsel %vm2476, %v3338, %v2348
  %v3437 = vsel %vm2477, %v3340, %v2349
  %v3438 = vsel %vm2478, %v3342, %v2350
  %v3439 = vsel %vm2479, %v3344, %v2351
  %v3440 = vsel %vm2480, %v3346, %v2352
  %v3441 = vsel %vm2481, %v3348, %v2353
  %v3442 = vsel %vm2482, %v3350, %v2354
  %v3443 = vsel %vm2483, %v3352, %v2355
  %v3444 = vsel %vm2484, %v3354, %v2356
  %v3445 = vsel %vm2485, %v3356, %v2357
  %v3446 = vsel %vm2486, %v3358, %v2358
  %v3447 = vsel %vm2487, %v3360, %v2359
  %v3448 = vsel %vm2488, %v3362, %v2360
  %v3449 = vsel %vm2489, %v3364, %v2361
  %v3450 = vsel %vm2490, %v3366, %v2362
  %v3451 = vsel %vm2491, %v3368, %v2363
  %v3452 = vsel %vm2492, %v3370, %v2364
  %v3453 = vsel %vm2493, %v3372, %v2365
  %v3454 = vsel %vm2494, %v3374, %v2366
  %v3455 = vsel %vm2495, %v3376, %v2367
  %v3456 = vsel %vm2496, %v3378, %v2368
  %v3457 = vsel %vm2497, %v3380, %v2369
  %v3458 = vsel %vm2498, %v3382, %v2370
  %v3459 = vsel %vm2499, %v3384, %v2371
  %v3460 = vsel %vm2500, %v3386, %v2372
  %v3461 = vsel %vm2501, %v3388, %v2373
  %v3462 = vsel %vm2502, %v3390, %v2374
  %v3463 = vsel %vm2503, %v3392, %v2375
  %v3464 = vsel %vm2504, %v3394, %v2376
  %v3465 = vsel %vm2505, %v3396, %v2377
  %v3466 = vsel %vm2506, %v3398, %v2378
  %v3467 = vsel %vm2507, %v3400, %v2379
  %v3468 = vsel %vm2508, %v3402, %v2380
  %v3469 = vsel %vm2509, %v3404, %v2381
  %v3470 = vsel %vm2510, %v3406, %v2382
  %v3471 = vsel %vm2575, %v3280, %v2319
  %v3472 = vsel %vm2576, %v3282, %v2320
  %v3473 = vsel %vm2577, %v3284, %v2321
  %v3474 = vsel %vm2578, %v3286, %v2322
  %v3475 = vsel %vm2579, %v3288, %v2323
  %v3476 = vsel %vm2580, %v3290, %v2324
  %v3477 = vsel %vm2581, %v3292, %v2325
  %v3478 = vsel %vm2582, %v3294, %v2326
  %v3479 = vsel %vm2583, %v3296, %v2327
  %v3480 = vsel %vm2584, %v3298, %v2328
  %v3481 = vsel %vm2585, %v3300, %v2329
  %v3482 = vsel %vm2586, %v3302, %v2330
  %v3483 = vsel %vm2587, %v3304, %v2331
  %v3484 = vsel %vm2588, %v3306, %v2332
  %v3485 = vsel %vm2589, %v3308, %v2333
  %v3486 = vsel %vm2590, %v3310, %v2334
  %v3487 = vsel %vm2591, %v3312, %v2335
  %v3488 = vsel %vm2592, %v3314, %v2336
  %v3489 = vsel %vm2593, %v3316, %v2337
  %v3490 = vsel %vm2594, %v3318, %v2338
  %v3491 = vsel %vm2595, %v3320, %v2339
  %v3492 = vsel %vm2596, %v3322, %v2340
  %v3493 = vsel %vm2597, %v3324, %v2341
  %v3494 = vsel %vm2598, %v3326, %v2342
  %v3495 = vsel %vm2599, %v3328, %v2343
  %v3496 = vsel %vm2600, %v3330, %v2344
  %v3497 = vsel %vm2601, %v3332, %v2345
  %v3498 = vsel %vm2602, %v3334, %v2346
  %v3499 = vsel %vm2603, %v3336, %v2347
  %v3500 = vsel %vm2604, %v3338, %v2348
  %v3501 = vsel %vm2605, %v3340, %v2349
  %v3502 = vsel %vm2606, %v3342, %v2350
  %v3503 = vsel %vm2607, %v3344, %v2351
  %v3504 = vsel %vm2608, %v3346, %v2352
  %v3505 = vsel %vm2609, %v3348, %v2353
  %v3506 = vsel %vm2610, %v3350, %v2354
  %v3507 = vsel %vm2611, %v3352, %v2355
  %v3508 = vsel %vm2612, %v3354, %v2356
  %v3509 = vsel %vm2613, %v3356, %v2357
  %v3510 = vsel %vm2614, %v3358, %v2358
  %v3511 = vsel %vm2615, %v3360, %v2359
  %v3512 = vsel %vm2616, %v3362, %v2360
  %v3513 = vsel %vm2617, %v3364, %v2361
  %v3514 = vsel %vm2618, %v3366, %v2362
  %v3515 = vsel %vm2619, %v3368, %v2363
  %v3516 = vsel %vm2620, %v3370, %v2364
  %v3517 = vsel %vm2621, %v3372, %v2365
  %v3518 = vsel %vm2622, %v3374, %v2366
  %v3519 = vsel %vm2623, %v3376, %v2367
  %v3520 = vsel %vm2624, %v3378, %v2368
  %v3521 = vsel %vm2625, %v3380, %v2369
  %v3522 = vsel %vm2626, %v3382, %v2370
  %v3523 = vsel %vm2627, %v3384, %v2371
  %v3524 = vsel %vm2628, %v3386, %v2372
  %v3525 = vsel %vm2629, %v3388, %v2373
  %v3526 = vsel %vm2630, %v3390, %v2374
  %v3527 = vsel %vm2631, %v3392, %v2375
  %v3528 = vsel %vm2632, %v3394, %v2376
  %v3529 = vsel %vm2633, %v3396, %v2377
  %v3530 = vsel %vm2634, %v3398, %v2378
  %v3531 = vsel %vm2635, %v3400, %v2379
  %v3532 = vsel %vm2636, %v3402, %v2380
  %v3533 = vsel %vm2637, %v3404, %v2381
  %v3534 = vsel %vm2638, %v3406, %v2382
  %3535 = vmatprep.subr.mxu0 0.0
  %3536 = vmatpush1.msra.mxu0 1.0
  %3537 = vmatprep.subr.mxu0 0.0
  %3538 = vmatpush1.msra.mxu0 1.0
  %3539 = vmatprep.subr.mxu0 0.0
  %3540 = vmatpush1.msra.mxu0 1.0
  %3541 = vmatprep.subr.mxu0 0.0
  %3542 = vmatpush1.msra.mxu0 1.0
  %3543 = vmatprep.subr.mxu0 0.0
  %3544 = vmatpush1.msra.mxu0 1.0
  %3545 = vmatprep.subr.mxu0 0.0
  %3546 = vmatpush1.msra.mxu0 1.0
  %3547 = vmatprep.subr.mxu0 0.0
  %3548 = vmatpush1.msra.mxu0 1.0
  %3549 = vmatprep.subr.mxu0 0.0
  %3550 = vmatpush1.msra.mxu0 1.0
  %3551 = vmatprep.subr.mxu0 0.0
  %3552 = vmatpush1.msra.mxu0 1.0
  %3553 = vmatprep.subr.mxu0 0.0
  %3554 = vmatpush1.msra.mxu0 1.0
  %3555 = vmatprep.subr.mxu0 0.0
  %3556 = vmatpush1.msra.mxu0 1.0
  %3557 = vmatprep.subr.mxu0 0.0
  %3558 = vmatpush1.msra.mxu0 1.0
  %3559 = vmatprep.subr.mxu0 0.0
  %3560 = vmatpush1.msra.mxu0 1.0
  %3561 = vmatprep.subr.mxu0 0.0
  %3562 = vmatpush1.msra.mxu0 1.0
  %3563 = vmatprep.subr.mxu0 0.0
  %3564 = vmatpush1.msra.mxu0 1.0
  %3565 = vmatprep.subr.mxu0 0.0
  %3566 = vmatpush1.msra.mxu0 1.0
  %3567 = vmatprep.subr.mxu0 0.0
  %3568 = vmatpush1.msra.mxu0 1.0
  %3569 = vmatprep.subr.mxu0 0.0
  %3570 = vmatpush1.msra.mxu0 1.0
  %3571 = vmatprep.subr.mxu0 0.0
  %3572 = vmatpush1.msra.mxu0 1.0
  %3573 = vmatprep.subr.mxu0 0.0
  %3574 = vmatpush1.msra.mxu0 1.0
  %3575 = vmatprep.subr.mxu0 0.0
  %3576 = vmatpush1.msra.mxu0 1.0
  %3577 = vmatprep.subr.mxu0 0.0
  %3578 = vmatpush1.msra.mxu0 1.0
  %3579 = vmatprep.subr.mxu0 0.0
  %3580 = vmatpush1.msra.mxu0 1.0
  %3581 = vmatprep.subr.mxu0 0.0
  %3582 = vmatpush1.msra.mxu0 1.0
  %3583 = vmatprep.subr.mxu0 0.0
  %3584 = vmatpush1.msra.mxu0 1.0
  %3585 = vmatprep.subr.mxu0 0.0
  %3586 = vmatpush1.msra.mxu0 1.0
  %3587 = vmatprep.subr.mxu0 0.0
  %3588 = vmatpush1.msra.mxu0 1.0
  %3589 = vmatprep.subr.mxu0 0.0
  %3590 = vmatpush1.msra.mxu0 1.0
  %3591 = vmatprep.subr.mxu0 0.0
  %3592 = vmatpush1.msra.mxu0 1.0
  %3593 = vmatprep.subr.mxu0 0.0
  %3594 = vmatpush1.msra.mxu0 1.0
  %3595 = vmatprep.subr.mxu0 0.0
  %3596 = vmatpush1.msra.mxu0 1.0
  %3597 = vmatprep.subr.mxu0 0.0
  %3598 = vmatpush1.msra.mxu0 1.0
  %3599 = vmatprep.mubr.f32.mxu0 %v3408
  %3600 = vmatmul.mubr.f32.gmra.mrb[0].mxu0 %v3407
  %v3601 = vpop.f32.mrb[0].mxu0
  %v3602 = vadd.f32 0.0, %v3601
  %v3603 = vpop.f32.mrb[0].mxu0
  %3604 = vmatprep.mubr.f32.mxu0 %v3410
  %3605 = vmatmul.mubr.f32.gmra.mrb[0].mxu0 %v3409
  %v3606 = vpop.f32.mrb[0].mxu0
  %v3607 = vadd.f32 0.0, %v3606
  %v3608 = vpop.f32.mrb[0].mxu0
  %3609 = vmatprep.mubr.f32.mxu0 %v3412
  %3610 = vmatmul.mubr.f32.gmra.mrb[0].mxu0 %v3411
  %v3611 = vpop.f32.mrb[0].mxu0
  %v3612 = vadd.f32 0.0, %v3611
  %v3613 = vpop.f32.mrb[0].mxu0
  %3614 = vmatprep.mubr.f32.mxu0 %v3414
  %3615 = vmatmul.mubr.f32.gmra.mrb[0].mxu0 %v3413
  %v3616 = vpop.f32.mrb[0].mxu0
  %v3617 = vadd.f32 0.0, %v3616
  %v3618 = vpop.f32.mrb[0].mxu0
  %3619 = vmatprep.mubr.f32.mxu0 %v3416
  %3620 = vmatmul.mubr.f32.gmra.mrb[0].mxu0 %v3415
  %v3621 = vpop.f32.mrb[0].mxu0
  %v3622 = vadd.f32 0.0, %v3621
  %v3623 = vpop.f32.mrb[0].mxu0
  %3624 = vmatprep.mubr.f32.mxu0 %v3418
  %3625 = vmatmul.mubr.f32.gmra.mrb[0].mxu0 %v3417
  %v3626 = vpop.f32.mrb[0].mxu0
  %v3627 = vadd.f32 0.0, %v3626
  %v3628 = vpop.f32.mrb[0].mxu0
  %3629 = vmatprep.mubr.f32.mxu0 %v3420
  %3630 = vmatmul.mubr.f32.gmra.mrb[0].mxu0 %v3419
  %v3631 = vpop.f32.mrb[0].mxu0
  %v3632 = vadd.f32 0.0, %v3631
  %v3633 = vpop.f32.mrb[0].mxu0
  %3634 = vmatprep.mubr.f32.mxu0 %v3422
  %3635 = vmatmul.mubr.f32.gmra.mrb[0].mxu0 %v3421
  %v3636 = vpop.f32.mrb[0].mxu0
  %v3637 = vadd.f32 0.0, %v3636
  %v3638 = vpop.f32.mrb[0].mxu0
  %3639 = vmatprep.mubr.f32.mxu0 %v3424
  %3640 = vmatmul.mubr.f32.gmra.mrb[0].mxu0 %v3423
  %v3641 = vpop.f32.mrb[0].mxu0
  %v3642 = vadd.f32 0.0, %v3641
  %v3643 = vpop.f32.mrb[0].mxu0
  %3644 = vmatprep.mubr.f32.mxu0 %v3426
  %3645 = vmatmul.mubr.f32.gmra.mrb[0].mxu0 %v3425
  %v3646 = vpop.f32.mrb[0].mxu0
  %v3647 = vadd.f32 0.0, %v3646
  %v3648 = vpop.f32.mrb[0].mxu0
  %3649 = vmatprep.mubr.f32.mxu0 %v3428
  %3650 = vmatmul.mubr.f32.gmra.mrb[0].mxu0 %v3427
  %v3651 = vpop.f32.mrb[0].mxu0
  %v3652 = vadd.f32 0.0, %v3651
  %v3653 = vpop.f32.mrb[0].mxu0
  %3654 = vmatprep.mubr.f32.mxu0 %v3430
  %3655 = vmatmul.mubr.f32.gmra.mrb[0].mxu0 %v3429
  %v3656 = vpop.f32.mrb[0].mxu0
  %v3657 = vadd.f32 0.0, %v3656
  %v3658 = vpop.f32.mrb[0].mxu0
  %3659 = vmatprep.mubr.f32.mxu0 %v3432
  %3660 = vmatmul.mubr.f32.gmra.mrb[0].mxu0 %v3431
  %v3661 = vpop.f32.mrb[0].mxu0
  %v3662 = vadd.f32 0.0, %v3661
  %v3663 = vpop.f32.mrb[0].mxu0
  %3664 = vmatprep.mubr.f32.mxu0 %v3434
  %3665 = vmatmul.mubr.f32.gmra.mrb[0].mxu0 %v3433
  %v3666 = vpop.f32.mrb[0].mxu0
  %v3667 = vadd.f32 0.0, %v3666
  %v3668 = vpop.f32.mrb[0].mxu0
  %3669 = vmatprep.mubr.f32.mxu0 %v3436
  %3670 = vmatmul.mubr.f32.gmra.mrb[0].mxu0 %v3435
  %v3671 = vpop.f32.mrb[0].mxu0
  %v3672 = vadd.f32 0.0, %v3671
  %v3673 = vpop.f32.mrb[0].mxu0
  %3674 = vmatprep.mubr.f32.mxu0 %v3438
  %3675 = vmatmul.mubr.f32.gmra.mrb[0].mxu0 %v3437
  %v3676 = vpop.f32.mrb[0].mxu0
  %v3677 = vadd.f32 0.0, %v3676
  %v3678 = vpop.f32.mrb[0].mxu0
  %3679 = vmatprep.mubr.f32.mxu0 %v3440
  %3680 = vmatmul.mubr.f32.gmra.mrb[0].mxu0 %v3439
  %v3681 = vpop.f32.mrb[0].mxu0
  %v3682 = vadd.f32 0.0, %v3681
  %v3683 = vpop.f32.mrb[0].mxu0
  %3684 = vmatprep.mubr.f32.mxu0 %v3442
  %3685 = vmatmul.mubr.f32.gmra.mrb[0].mxu0 %v3441
  %v3686 = vpop.f32.mrb[0].mxu0
  %v3687 = vadd.f32 0.0, %v3686
  %v3688 = vpop.f32.mrb[0].mxu0
  %3689 = vmatprep.mubr.f32.mxu0 %v3444
  %3690 = vmatmul.mubr.f32.gmra.mrb[0].mxu0 %v3443
  %v3691 = vpop.f32.mrb[0].mxu0
  %v3692 = vadd.f32 0.0, %v3691
  %v3693 = vpop.f32.mrb[0].mxu0
  %3694 = vmatprep.mubr.f32.mxu0 %v3446
  %3695 = vmatmul.mubr.f32.gmra.mrb[0].mxu0 %v3445
  %v3696 = vpop.f32.mrb[0].mxu0
  %v3697 = vadd.f32 0.0, %v3696
  %v3698 = vpop.f32.mrb[0].mxu0
  %3699 = vmatprep.mubr.f32.mxu0 %v3448
  %3700 = vmatmul.mubr.f32.gmra.mrb[0].mxu0 %v3447
  %v3701 = vpop.f32.mrb[0].mxu0
  %v3702 = vadd.f32 0.0, %v3701
  %v3703 = vpop.f32.mrb[0].mxu0
  %3704 = vmatprep.mubr.f32.mxu0 %v3450
  %3705 = vmatmul.mubr.f32.gmra.mrb[0].mxu0 %v3449
  %v3706 = vpop.f32.mrb[0].mxu0
  %v3707 = vadd.f32 0.0, %v3706
  %v3708 = vpop.f32.mrb[0].mxu0
  %3709 = vmatprep.mubr.f32.mxu0 %v3452
  %3710 = vmatmul.mubr.f32.gmra.mrb[0].mxu0 %v3451
  %v3711 = vpop.f32.mrb[0].mxu0
  %v3712 = vadd.f32 0.0, %v3711
  %v3713 = vpop.f32.mrb[0].mxu0
  %3714 = vmatprep.mubr.f32.mxu0 %v3454
  %3715 = vmatmul.mubr.f32.gmra.mrb[0].mxu0 %v3453
  %v3716 = vpop.f32.mrb[0].mxu0
  %v3717 = vadd.f32 0.0, %v3716
  %v3718 = vpop.f32.mrb[0].mxu0
  %3719 = vmatprep.mubr.f32.mxu0 %v3456
  %3720 = vmatmul.mubr.f32.gmra.mrb[0].mxu0 %v3455
  %v3721 = vpop.f32.mrb[0].mxu0
  %v3722 = vadd.f32 0.0, %v3721
  %v3723 = vpop.f32.mrb[0].mxu0
  %3724 = vmatprep.mubr.f32.mxu0 %v3458
  %3725 = vmatmul.mubr.f32.gmra.mrb[0].mxu0 %v3457
  %v3726 = vpop.f32.mrb[0].mxu0
  %v3727 = vadd.f32 0.0, %v3726
  %v3728 = vpop.f32.mrb[0].mxu0
  %3729 = vmatprep.mubr.f32.mxu0 %v3460
  %3730 = vmatmul.mubr.f32.gmra.mrb[0].mxu0 %v3459
  %v3731 = vpop.f32.mrb[0].mxu0
  %v3732 = vadd.f32 0.0, %v3731
  %v3733 = vpop.f32.mrb[0].mxu0
  %3734 = vmatprep.mubr.f32.mxu0 %v3462
  %3735 = vmatmul.mubr.f32.gmra.mrb[0].mxu0 %v3461
  %v3736 = vpop.f32.mrb[0].mxu0
  %v3737 = vadd.f32 0.0, %v3736
  %v3738 = vpop.f32.mrb[0].mxu0
  %3739 = vmatprep.mubr.f32.mxu0 %v3464
  %3740 = vmatmul.mubr.f32.gmra.mrb[0].mxu0 %v3463
  %v3741 = vpop.f32.mrb[0].mxu0
  %v3742 = vadd.f32 0.0, %v3741
  %v3743 = vpop.f32.mrb[0].mxu0
  %3744 = vmatprep.mubr.f32.mxu0 %v3466
  %3745 = vmatmul.mubr.f32.gmra.mrb[0].mxu0 %v3465
  %v3746 = vpop.f32.mrb[0].mxu0
  %v3747 = vadd.f32 0.0, %v3746
  %v3748 = vpop.f32.mrb[0].mxu0
  %3749 = vmatprep.mubr.f32.mxu0 %v3468
  %3750 = vmatmul.mubr.f32.gmra.mrb[0].mxu0 %v3467
  %v3751 = vpop.f32.mrb[0].mxu0
  %v3752 = vadd.f32 0.0, %v3751
  %v3753 = vpop.f32.mrb[0].mxu0
  %3754 = vmatprep.mubr.f32.mxu0 %v3470
  %3755 = vmatmul.mubr.f32.gmra.mrb[0].mxu0 %v3469
  %v3756 = vpop.f32.mrb[0].mxu0
  %v3757 = vadd.f32 0.0, %v3756
  %v3758 = vpop.f32.mrb[0].mxu0
  %3759 = vdwg.mxu0
  %3760 = vmatprep.subr.mxu0 0.0
  %3761 = vmatpush1.msra.mxu0 1.0
  %3762 = vmatprep.subr.mxu0 0.0
  %3763 = vmatpush1.msra.mxu0 1.0
  %3764 = vmatprep.subr.mxu0 0.0
  %3765 = vmatpush1.msra.mxu0 1.0
  %3766 = vmatprep.subr.mxu0 0.0
  %3767 = vmatpush1.msra.mxu0 1.0
  %3768 = vmatprep.subr.mxu0 0.0
  %3769 = vmatpush1.msra.mxu0 1.0
  %3770 = vmatprep.subr.mxu0 0.0
  %3771 = vmatpush1.msra.mxu0 1.0
  %3772 = vmatprep.subr.mxu0 0.0
  %3773 = vmatpush1.msra.mxu0 1.0
  %3774 = vmatprep.subr.mxu0 0.0
  %3775 = vmatpush1.msra.mxu0 1.0
  %3776 = vmatprep.subr.mxu0 0.0
  %3777 = vmatpush1.msra.mxu0 1.0
  %3778 = vmatprep.subr.mxu0 0.0
  %3779 = vmatpush1.msra.mxu0 1.0
  %3780 = vmatprep.subr.mxu0 0.0
  %3781 = vmatpush1.msra.mxu0 1.0
  %3782 = vmatprep.subr.mxu0 0.0
  %3783 = vmatpush1.msra.mxu0 1.0
  %3784 = vmatprep.subr.mxu0 0.0
  %3785 = vmatpush1.msra.mxu0 1.0
  %3786 = vmatprep.subr.mxu0 0.0
  %3787 = vmatpush1.msra.mxu0 1.0
  %3788 = vmatprep.subr.mxu0 0.0
  %3789 = vmatpush1.msra.mxu0 1.0
  %3790 = vmatprep.subr.mxu0 0.0
  %3791 = vmatpush1.msra.mxu0 1.0
  %3792 = vmatprep.subr.mxu0 0.0
  %3793 = vmatpush1.msra.mxu0 1.0
  %3794 = vmatprep.subr.mxu0 0.0
  %3795 = vmatpush1.msra.mxu0 1.0
  %3796 = vmatprep.subr.mxu0 0.0
  %3797 = vmatpush1.msra.mxu0 1.0
  %3798 = vmatprep.subr.mxu0 0.0
  %3799 = vmatpush1.msra.mxu0 1.0
  %3800 = vmatprep.subr.mxu0 0.0
  %3801 = vmatpush1.msra.mxu0 1.0
  %3802 = vmatprep.subr.mxu0 0.0
  %3803 = vmatpush1.msra.mxu0 1.0
  %3804 = vmatprep.subr.mxu0 0.0
  %3805 = vmatpush1.msra.mxu0 1.0
  %3806 = vmatprep.subr.mxu0 0.0
  %3807 = vmatpush1.msra.mxu0 1.0
  %3808 = vmatprep.subr.mxu0 0.0
  %3809 = vmatpush1.msra.mxu0 1.0
  %3810 = vmatprep.subr.mxu0 0.0
  %3811 = vmatpush1.msra.mxu0 1.0
  %3812 = vmatprep.subr.mxu0 0.0
  %3813 = vmatpush1.msra.mxu0 1.0
  %3814 = vmatprep.subr.mxu0 0.0
  %3815 = vmatpush1.msra.mxu0 1.0
  %3816 = vmatprep.subr.mxu0 0.0
  %3817 = vmatpush1.msra.mxu0 1.0
  %3818 = vmatprep.subr.mxu0 0.0
  %3819 = vmatpush1.msra.mxu0 1.0
  %3820 = vmatprep.subr.mxu0 0.0
  %3821 = vmatpush1.msra.mxu0 1.0
  %3822 = vmatprep.subr.mxu0 0.0
  %3823 = vmatpush1.msra.mxu0 1.0
  %3824 = vmatprep.mubr.f32.mxu0 %v3472
  %3825 = vmatmul.mubr.f32.gmra.mrb[0].mxu0 %v3471
  %v3826 = vpop.f32.mrb[0].mxu0
  %v3827 = vadd.f32 0.0, %v3826
  %v3828 = vpop.f32.mrb[0].mxu0
  %3829 = vmatprep.mubr.f32.mxu0 %v3474
  %3830 = vmatmul.mubr.f32.gmra.mrb[0].mxu0 %v3473
  %v3831 = vpop.f32.mrb[0].mxu0
  %v3832 = vadd.f32 0.0, %v3831
  %v3833 = vpop.f32.mrb[0].mxu0
  %3834 = vmatprep.mubr.f32.mxu0 %v3476
  %3835 = vmatmul.mubr.f32.gmra.mrb[0].mxu0 %v3475
  %v3836 = vpop.f32.mrb[0].mxu0
  %v3837 = vadd.f32 0.0, %v3836
  %v3838 = vpop.f32.mrb[0].mxu0
  %3839 = vmatprep.mubr.f32.mxu0 %v3478
  %3840 = vmatmul.mubr.f32.gmra.mrb[0].mxu0 %v3477
  %v3841 = vpop.f32.mrb[0].mxu0
  %v3842 = vadd.f32 0.0, %v3841
  %v3843 = vpop.f32.mrb[0].mxu0
  %3844 = vmatprep.mubr.f32.mxu0 %v3480
  %3845 = vmatmul.mubr.f32.gmra.mrb[0].mxu0 %v3479
  %v3846 = vpop.f32.mrb[0].mxu0
  %v3847 = vadd.f32 0.0, %v3846
  %v3848 = vpop.f32.mrb[0].mxu0
  %3849 = vmatprep.mubr.f32.mxu0 %v3482
  %3850 = vmatmul.mubr.f32.gmra.mrb[0].mxu0 %v3481
  %v3851 = vpop.f32.mrb[0].mxu0
  %v3852 = vadd.f32 0.0, %v3851
  %v3853 = vpop.f32.mrb[0].mxu0
  %3854 = vmatprep.mubr.f32.mxu0 %v3484
  %3855 = vmatmul.mubr.f32.gmra.mrb[0].mxu0 %v3483
  %v3856 = vpop.f32.mrb[0].mxu0
  %v3857 = vadd.f32 0.0, %v3856
  %v3858 = vpop.f32.mrb[0].mxu0
  %3859 = vmatprep.mubr.f32.mxu0 %v3486
  %3860 = vmatmul.mubr.f32.gmra.mrb[0].mxu0 %v3485
  %v3861 = vpop.f32.mrb[0].mxu0
  %v3862 = vadd.f32 0.0, %v3861
  %v3863 = vpop.f32.mrb[0].mxu0
  %3864 = vmatprep.mubr.f32.mxu0 %v3488
  %3865 = vmatmul.mubr.f32.gmra.mrb[0].mxu0 %v3487
  %v3866 = vpop.f32.mrb[0].mxu0
  %v3867 = vadd.f32 0.0, %v3866
  %v3868 = vpop.f32.mrb[0].mxu0
  %3869 = vmatprep.mubr.f32.mxu0 %v3490
  %3870 = vmatmul.mubr.f32.gmra.mrb[0].mxu0 %v3489
  %v3871 = vpop.f32.mrb[0].mxu0
  %v3872 = vadd.f32 0.0, %v3871
  %v3873 = vpop.f32.mrb[0].mxu0
  %3874 = vmatprep.mubr.f32.mxu0 %v3492
  %3875 = vmatmul.mubr.f32.gmra.mrb[0].mxu0 %v3491
  %v3876 = vpop.f32.mrb[0].mxu0
  %v3877 = vadd.f32 0.0, %v3876
  %v3878 = vpop.f32.mrb[0].mxu0
  %3879 = vmatprep.mubr.f32.mxu0 %v3494
  %3880 = vmatmul.mubr.f32.gmra.mrb[0].mxu0 %v3493
  %v3881 = vpop.f32.mrb[0].mxu0
  %v3882 = vadd.f32 0.0, %v3881
  %v3883 = vpop.f32.mrb[0].mxu0
  %3884 = vmatprep.mubr.f32.mxu0 %v3496
  %3885 = vmatmul.mubr.f32.gmra.mrb[0].mxu0 %v3495
  %v3886 = vpop.f32.mrb[0].mxu0
  %v3887 = vadd.f32 0.0, %v3886
  %v3888 = vpop.f32.mrb[0].mxu0
  %3889 = vmatprep.mubr.f32.mxu0 %v3498
  %3890 = vmatmul.mubr.f32.gmra.mrb[0].mxu0 %v3497
  %v3891 = vpop.f32.mrb[0].mxu0
  %v3892 = vadd.f32 0.0, %v3891
  %v3893 = vpop.f32.mrb[0].mxu0
  %3894 = vmatprep.mubr.f32.mxu0 %v3500
  %3895 = vmatmul.mubr.f32.gmra.mrb[0].mxu0 %v3499
  %v3896 = vpop.f32.mrb[0].mxu0
  %v3897 = vadd.f32 0.0, %v3896
  %v3898 = vpop.f32.mrb[0].mxu0
  %3899 = vmatprep.mubr.f32.mxu0 %v3502
  %3900 = vmatmul.mubr.f32.gmra.mrb[0].mxu0 %v3501
  %v3901 = vpop.f32.mrb[0].mxu0
  %v3902 = vadd.f32 0.0, %v3901
  %v3903 = vpop.f32.mrb[0].mxu0
  %3904 = vmatprep.mubr.f32.mxu0 %v3504
  %3905 = vmatmul.mubr.f32.gmra.mrb[0].mxu0 %v3503
  %v3906 = vpop.f32.mrb[0].mxu0
  %v3907 = vadd.f32 0.0, %v3906
  %v3908 = vpop.f32.mrb[0].mxu0
  %3909 = vmatprep.mubr.f32.mxu0 %v3506
  %3910 = vmatmul.mubr.f32.gmra.mrb[0].mxu0 %v3505
  %v3911 = vpop.f32.mrb[0].mxu0
  %v3912 = vadd.f32 0.0, %v3911
  %v3913 = vpop.f32.mrb[0].mxu0
  %3914 = vmatprep.mubr.f32.mxu0 %v3508
  %3915 = vmatmul.mubr.f32.gmra.mrb[0].mxu0 %v3507
  %v3916 = vpop.f32.mrb[0].mxu0
  %v3917 = vadd.f32 0.0, %v3916
  %v3918 = vpop.f32.mrb[0].mxu0
  %3919 = vmatprep.mubr.f32.mxu0 %v3510
  %3920 = vmatmul.mubr.f32.gmra.mrb[0].mxu0 %v3509
  %v3921 = vpop.f32.mrb[0].mxu0
  %v3922 = vadd.f32 0.0, %v3921
  %v3923 = vpop.f32.mrb[0].mxu0
  %3924 = vmatprep.mubr.f32.mxu0 %v3512
  %3925 = vmatmul.mubr.f32.gmra.mrb[0].mxu0 %v3511
  %v3926 = vpop.f32.mrb[0].mxu0
  %v3927 = vadd.f32 0.0, %v3926
  %v3928 = vpop.f32.mrb[0].mxu0
  %3929 = vmatprep.mubr.f32.mxu0 %v3514
  %3930 = vmatmul.mubr.f32.gmra.mrb[0].mxu0 %v3513
  %v3931 = vpop.f32.mrb[0].mxu0
  %v3932 = vadd.f32 0.0, %v3931
  %v3933 = vpop.f32.mrb[0].mxu0
  %3934 = vmatprep.mubr.f32.mxu0 %v3516
  %3935 = vmatmul.mubr.f32.gmra.mrb[0].mxu0 %v3515
  %v3936 = vpop.f32.mrb[0].mxu0
  %v3937 = vadd.f32 0.0, %v3936
  %v3938 = vpop.f32.mrb[0].mxu0
  %3939 = vmatprep.mubr.f32.mxu0 %v3518
  %3940 = vmatmul.mubr.f32.gmra.mrb[0].mxu0 %v3517
  %v3941 = vpop.f32.mrb[0].mxu0
  %v3942 = vadd.f32 0.0, %v3941
  %v3943 = vpop.f32.mrb[0].mxu0
  %3944 = vmatprep.mubr.f32.mxu0 %v3520
  %3945 = vmatmul.mubr.f32.gmra.mrb[0].mxu0 %v3519
  %v3946 = vpop.f32.mrb[0].mxu0
  %v3947 = vadd.f32 0.0, %v3946
  %v3948 = vpop.f32.mrb[0].mxu0
  %3949 = vmatprep.mubr.f32.mxu0 %v3522
  %3950 = vmatmul.mubr.f32.gmra.mrb[0].mxu0 %v3521
  %v3951 = vpop.f32.mrb[0].mxu0
  %v3952 = vadd.f32 0.0, %v3951
  %v3953 = vpop.f32.mrb[0].mxu0
  %3954 = vmatprep.mubr.f32.mxu0 %v3524
  %3955 = vmatmul.mubr.f32.gmra.mrb[0].mxu0 %v3523
  %v3956 = vpop.f32.mrb[0].mxu0
  %v3957 = vadd.f32 0.0, %v3956
  %v3958 = vpop.f32.mrb[0].mxu0
  %3959 = vmatprep.mubr.f32.mxu0 %v3526
  %3960 = vmatmul.mubr.f32.gmra.mrb[0].mxu0 %v3525
  %v3961 = vpop.f32.mrb[0].mxu0
  %v3962 = vadd.f32 0.0, %v3961
  %v3963 = vpop.f32.mrb[0].mxu0
  %3964 = vmatprep.mubr.f32.mxu0 %v3528
  %3965 = vmatmul.mubr.f32.gmra.mrb[0].mxu0 %v3527
  %v3966 = vpop.f32.mrb[0].mxu0
  %v3967 = vadd.f32 0.0, %v3966
  %v3968 = vpop.f32.mrb[0].mxu0
  %3969 = vmatprep.mubr.f32.mxu0 %v3530
  %3970 = vmatmul.mubr.f32.gmra.mrb[0].mxu0 %v3529
  %v3971 = vpop.f32.mrb[0].mxu0
  %v3972 = vadd.f32 0.0, %v3971
  %v3973 = vpop.f32.mrb[0].mxu0
  %3974 = vmatprep.mubr.f32.mxu0 %v3532
  %3975 = vmatmul.mubr.f32.gmra.mrb[0].mxu0 %v3531
  %v3976 = vpop.f32.mrb[0].mxu0
  %v3977 = vadd.f32 0.0, %v3976
  %v3978 = vpop.f32.mrb[0].mxu0
  %3979 = vmatprep.mubr.f32.mxu0 %v3534
  %3980 = vmatmul.mubr.f32.gmra.mrb[0].mxu0 %v3533
  %v3981 = vpop.f32.mrb[0].mxu0
  %v3982 = vadd.f32 0.0, %v3981
  %v3983 = vpop.f32.mrb[0].mxu0
  %3984 = vdwg.mxu0
  %3985 = vmatprep.subr.mxu0 %v3408
  %3986 = vmatpush1.msra.mxu0 %v3407
  %3987 = vmatprep.subr.mxu0 %v3410
  %3988 = vmatpush1.msra.mxu0 %v3409
  %3989 = vmatprep.subr.mxu0 %v3412
  %3990 = vmatpush1.msra.mxu0 %v3411
  %3991 = vmatprep.subr.mxu0 %v3414
  %3992 = vmatpush1.msra.mxu0 %v3413
  %3993 = vmatprep.subr.mxu0 %v3416
  %3994 = vmatpush1.msra.mxu0 %v3415
  %3995 = vmatprep.subr.mxu0 %v3418
  %3996 = vmatpush1.msra.mxu0 %v3417
  %3997 = vmatprep.subr.mxu0 %v3420
  %3998 = vmatpush1.msra.mxu0 %v3419
  %3999 = vmatprep.subr.mxu0 %v3422
  %4000 = vmatpush1.msra.mxu0 %v3421
  %4001 = vmatprep.subr.mxu0 %v3424
  %4002 = vmatpush1.msra.mxu0 %v3423
  %4003 = vmatprep.subr.mxu0 %v3426
  %4004 = vmatpush1.msra.mxu0 %v3425
  %4005 = vmatprep.subr.mxu0 %v3428
  %4006 = vmatpush1.msra.mxu0 %v3427
  %4007 = vmatprep.subr.mxu0 %v3430
  %4008 = vmatpush1.msra.mxu0 %v3429
  %4009 = vmatprep.subr.mxu0 %v3432
  %4010 = vmatpush1.msra.mxu0 %v3431
  %4011 = vmatprep.subr.mxu0 %v3434
  %4012 = vmatpush1.msra.mxu0 %v3433
  %4013 = vmatprep.subr.mxu0 %v3436
  %4014 = vmatpush1.msra.mxu0 %v3435
  %4015 = vmatprep.subr.mxu0 %v3438
  %4016 = vmatpush1.msra.mxu0 %v3437
  %4017 = vmatprep.subr.mxu0 %v3440
  %4018 = vmatpush1.msra.mxu0 %v3439
  %4019 = vmatprep.subr.mxu0 %v3442
  %4020 = vmatpush1.msra.mxu0 %v3441
  %4021 = vmatprep.subr.mxu0 %v3444
  %4022 = vmatpush1.msra.mxu0 %v3443
  %4023 = vmatprep.subr.mxu0 %v3446
  %4024 = vmatpush1.msra.mxu0 %v3445
  %4025 = vmatprep.subr.mxu0 %v3448
  %4026 = vmatpush1.msra.mxu0 %v3447
  %4027 = vmatprep.subr.mxu0 %v3450
  %4028 = vmatpush1.msra.mxu0 %v3449
  %4029 = vmatprep.subr.mxu0 %v3452
  %4030 = vmatpush1.msra.mxu0 %v3451
  %4031 = vmatprep.subr.mxu0 %v3454
  %4032 = vmatpush1.msra.mxu0 %v3453
  %4033 = vmatprep.subr.mxu0 %v3456
  %4034 = vmatpush1.msra.mxu0 %v3455
  %4035 = vmatprep.subr.mxu0 %v3458
  %4036 = vmatpush1.msra.mxu0 %v3457
  %4037 = vmatprep.subr.mxu0 %v3460
  %4038 = vmatpush1.msra.mxu0 %v3459
  %4039 = vmatprep.subr.mxu0 %v3462
  %4040 = vmatpush1.msra.mxu0 %v3461
  %4041 = vmatprep.subr.mxu0 %v3464
  %4042 = vmatpush1.msra.mxu0 %v3463
  %4043 = vmatprep.subr.mxu0 %v3466
  %4044 = vmatpush1.msra.mxu0 %v3465
  %4045 = vmatprep.subr.mxu0 %v3468
  %4046 = vmatpush1.msra.mxu0 %v3467
  %4047 = vmatprep.subr.mxu0 %v3470
  %4048 = vmatpush1.msra.mxu0 %v3469
  %4049 = vmatprep.mubr.f32.mxu0 1.0
  %4050 = vmatmul.mubr.f32.gmra.mrb[0].mxu0 1.0
  %v4051 = vpop.f32.mrb[0].mxu0
  %v4052 = vadd.f32 0.0, %v4051
  %v4053 = vpop.f32.mrb[0].mxu0
  %v4054 = vadd.f32 0.0, %v4053
  %4055 = vdwg.mxu0
  %4056 = vmatprep.subr.mxu0 %v3472
  %4057 = vmatpush1.msra.mxu0 %v3471
  %4058 = vmatprep.subr.mxu0 %v3474
  %4059 = vmatpush1.msra.mxu0 %v3473
  %4060 = vmatprep.subr.mxu0 %v3476
  %4061 = vmatpush1.msra.mxu0 %v3475
  %4062 = vmatprep.subr.mxu0 %v3478
  %4063 = vmatpush1.msra.mxu0 %v3477
  %4064 = vmatprep.subr.mxu0 %v3480
  %4065 = vmatpush1.msra.mxu0 %v3479
  %4066 = vmatprep.subr.mxu0 %v3482
  %4067 = vmatpush1.msra.mxu0 %v3481
  %4068 = vmatprep.subr.mxu0 %v3484
  %4069 = vmatpush1.msra.mxu0 %v3483
  %4070 = vmatprep.subr.mxu0 %v3486
  %4071 = vmatpush1.msra.mxu0 %v3485
  %4072 = vmatprep.subr.mxu0 %v3488
  %4073 = vmatpush1.msra.mxu0 %v3487
  %4074 = vmatprep.subr.mxu0 %v3490
  %4075 = vmatpush1.msra.mxu0 %v3489
  %4076 = vmatprep.subr.mxu0 %v3492
  %4077 = vmatpush1.msra.mxu0 %v3491
  %4078 = vmatprep.subr.mxu0 %v3494
  %4079 = vmatpush1.msra.mxu0 %v3493
  %4080 = vmatprep.subr.mxu0 %v3496
  %4081 = vmatpush1.msra.mxu0 %v3495
  %4082 = vmatprep.subr.mxu0 %v3498
  %4083 = vmatpush1.msra.mxu0 %v3497
  %4084 = vmatprep.subr.mxu0 %v3500
  %4085 = vmatpush1.msra.mxu0 %v3499
  %4086 = vmatprep.subr.mxu0 %v3502
  %4087 = vmatpush1.msra.mxu0 %v3501
  %4088 = vmatprep.subr.mxu0 %v3504
  %4089 = vmatpush1.msra.mxu0 %v3503
  %4090 = vmatprep.subr.mxu0 %v3506
  %4091 = vmatpush1.msra.mxu0 %v3505
  %4092 = vmatprep.subr.mxu0 %v3508
  %4093 = vmatpush1.msra.mxu0 %v3507
  %4094 = vmatprep.subr.mxu0 %v3510
  %4095 = vmatpush1.msra.mxu0 %v3509
  %4096 = vmatprep.subr.mxu0 %v3512
  %4097 = vmatpush1.msra.mxu0 %v3511
  %4098 = vmatprep.subr.mxu0 %v3514
  %4099 = vmatpush1.msra.mxu0 %v3513
  %4100 = vmatprep.subr.mxu0 %v3516
  %4101 = vmatpush1.msra.mxu0 %v3515
  %4102 = vmatprep.subr.mxu0 %v3518
  %4103 = vmatpush1.msra.mxu0 %v3517
  %4104 = vmatprep.subr.mxu0 %v3520
  %4105 = vmatpush1.msra.mxu0 %v3519
  %4106 = vmatprep.subr.mxu0 %v3522
  %4107 = vmatpush1.msra.mxu0 %v3521
  %4108 = vmatprep.subr.mxu0 %v3524
  %4109 = vmatpush1.msra.mxu0 %v3523
  %4110 = vmatprep.subr.mxu0 %v3526
  %4111 = vmatpush1.msra.mxu0 %v3525
  %4112 = vmatprep.subr.mxu0 %v3528
  %4113 = vmatpush1.msra.mxu0 %v3527
  %4114 = vmatprep.subr.mxu0 %v3530
  %4115 = vmatpush1.msra.mxu0 %v3529
  %4116 = vmatprep.subr.mxu0 %v3532
  %4117 = vmatpush1.msra.mxu0 %v3531
  %4118 = vmatprep.subr.mxu0 %v3534
  %4119 = vmatpush1.msra.mxu0 %v3533
  %4120 = vmatprep.mubr.f32.mxu0 1.0
  %4121 = vmatmul.mubr.f32.gmra.mrb[0].mxu0 1.0
  %v4122 = vpop.f32.mrb[0].mxu0
  %v4123 = vadd.f32 0.0, %v4122
  %v4124 = vpop.f32.mrb[0].mxu0
  %v4125 = vadd.f32 0.0, %v4124
  %4126 = vdwg.mxu0
  %v4127 = vsel %vm2191, %v954, 1e+30
  %v4128 = vsel %vm2192, %v955, 1e+30
  %v4129 = vsel %vm2193, %v956, 1e+30
  %v4130 = vsel %vm2194, %v957, 1e+30
  %v4131 = vsel %vm2195, %v958, 1e+30
  %v4132 = vsel %vm2196, %v959, 1e+30
  %v4133 = vsel %vm2197, %v960, 1e+30
  %v4134 = vsel %vm2198, %v961, 1e+30
  %v4135 = vsel %vm2199, %v962, 1e+30
  %v4136 = vsel %vm2200, %v963, 1e+30
  %v4137 = vsel %vm2201, %v964, 1e+30
  %v4138 = vsel %vm2202, %v965, 1e+30
  %v4139 = vsel %vm2203, %v966, 1e+30
  %v4140 = vsel %vm2204, %v967, 1e+30
  %v4141 = vsel %vm2205, %v968, 1e+30
  %v4142 = vsel %vm2206, %v969, 1e+30
  %v4143 = vsel %vm2207, %v970, 1e+30
  %v4144 = vsel %vm2208, %v971, 1e+30
  %v4145 = vsel %vm2209, %v972, 1e+30
  %v4146 = vsel %vm2210, %v973, 1e+30
  %v4147 = vsel %vm2211, %v974, 1e+30
  %v4148 = vsel %vm2212, %v975, 1e+30
  %v4149 = vsel %vm2213, %v976, 1e+30
  %v4150 = vsel %vm2214, %v977, 1e+30
  %v4151 = vsel %vm2215, %v978, 1e+30
  %v4152 = vsel %vm2216, %v979, 1e+30
  %v4153 = vsel %vm2217, %v980, 1e+30
  %v4154 = vsel %vm2218, %v981, 1e+30
  %v4155 = vsel %vm2219, %v982, 1e+30
  %v4156 = vsel %vm2220, %v983, 1e+30
  %v4157 = vsel %vm2221, %v984, 1e+30
  %v4158 = vsel %vm2222, %v985, 1e+30
  %v4159 = vsel %vm2223, %v986, 1e+30
  %v4160 = vsel %vm2224, %v987, 1e+30
  %v4161 = vsel %vm2225, %v988, 1e+30
  %v4162 = vsel %vm2226, %v989, 1e+30
  %v4163 = vsel %vm2227, %v990, 1e+30
  %v4164 = vsel %vm2228, %v991, 1e+30
  %v4165 = vsel %vm2229, %v992, 1e+30
  %v4166 = vsel %vm2230, %v993, 1e+30
  %v4167 = vsel %vm2231, %v994, 1e+30
  %v4168 = vsel %vm2232, %v995, 1e+30
  %v4169 = vsel %vm2233, %v996, 1e+30
  %v4170 = vsel %vm2234, %v997, 1e+30
  %v4171 = vsel %vm2235, %v998, 1e+30
  %v4172 = vsel %vm2236, %v999, 1e+30
  %v4173 = vsel %vm2237, %v1000, 1e+30
  %v4174 = vsel %vm2238, %v1001, 1e+30
  %v4175 = vsel %vm2239, %v1002, 1e+30
  %v4176 = vsel %vm2240, %v1003, 1e+30
  %v4177 = vsel %vm2241, %v1004, 1e+30
  %v4178 = vsel %vm2242, %v1005, 1e+30
  %v4179 = vsel %vm2243, %v1006, 1e+30
  %v4180 = vsel %vm2244, %v1007, 1e+30
  %v4181 = vsel %vm2245, %v1008, 1e+30
  %v4182 = vsel %vm2246, %v1009, 1e+30
  %v4183 = vsel %vm2247, %v1010, 1e+30
  %v4184 = vsel %vm2248, %v1011, 1e+30
  %v4185 = vsel %vm2249, %v1012, 1e+30
  %v4186 = vsel %vm2250, %v1013, 1e+30
  %v4187 = vsel %vm2251, %v1014, 1e+30
  %v4188 = vsel %vm2252, %v1015, 1e+30
  %v4189 = vsel %vm2253, %v1016, 1e+30
  %v4190 = vsel %vm2254, %v1017, 1e+30
  %v4191 = vsel %vm2191, %v954, -1e+30
  %v4192 = vsel %vm2192, %v955, -1e+30
  %v4193 = vsel %vm2193, %v956, -1e+30
  %v4194 = vsel %vm2194, %v957, -1e+30
  %v4195 = vsel %vm2195, %v958, -1e+30
  %v4196 = vsel %vm2196, %v959, -1e+30
  %v4197 = vsel %vm2197, %v960, -1e+30
  %v4198 = vsel %vm2198, %v961, -1e+30
  %v4199 = vsel %vm2199, %v962, -1e+30
  %v4200 = vsel %vm2200, %v963, -1e+30
  %v4201 = vsel %vm2201, %v964, -1e+30
  %v4202 = vsel %vm2202, %v965, -1e+30
  %v4203 = vsel %vm2203, %v966, -1e+30
  %v4204 = vsel %vm2204, %v967, -1e+30
  %v4205 = vsel %vm2205, %v968, -1e+30
  %v4206 = vsel %vm2206, %v969, -1e+30
  %v4207 = vsel %vm2207, %v970, -1e+30
  %v4208 = vsel %vm2208, %v971, -1e+30
  %v4209 = vsel %vm2209, %v972, -1e+30
  %v4210 = vsel %vm2210, %v973, -1e+30
  %v4211 = vsel %vm2211, %v974, -1e+30
  %v4212 = vsel %vm2212, %v975, -1e+30
  %v4213 = vsel %vm2213, %v976, -1e+30
  %v4214 = vsel %vm2214, %v977, -1e+30
  %v4215 = vsel %vm2215, %v978, -1e+30
  %v4216 = vsel %vm2216, %v979, -1e+30
  %v4217 = vsel %vm2217, %v980, -1e+30
  %v4218 = vsel %vm2218, %v981, -1e+30
  %v4219 = vsel %vm2219, %v982, -1e+30
  %v4220 = vsel %vm2220, %v983, -1e+30
  %v4221 = vsel %vm2221, %v984, -1e+30
  %v4222 = vsel %vm2222, %v985, -1e+30
  %v4223 = vsel %vm2223, %v986, -1e+30
  %v4224 = vsel %vm2224, %v987, -1e+30
  %v4225 = vsel %vm2225, %v988, -1e+30
  %v4226 = vsel %vm2226, %v989, -1e+30
  %v4227 = vsel %vm2227, %v990, -1e+30
  %v4228 = vsel %vm2228, %v991, -1e+30
  %v4229 = vsel %vm2229, %v992, -1e+30
  %v4230 = vsel %vm2230, %v993, -1e+30
  %v4231 = vsel %vm2231, %v994, -1e+30
  %v4232 = vsel %vm2232, %v995, -1e+30
  %v4233 = vsel %vm2233, %v996, -1e+30
  %v4234 = vsel %vm2234, %v997, -1e+30
  %v4235 = vsel %vm2235, %v998, -1e+30
  %v4236 = vsel %vm2236, %v999, -1e+30
  %v4237 = vsel %vm2237, %v1000, -1e+30
  %v4238 = vsel %vm2238, %v1001, -1e+30
  %v4239 = vsel %vm2239, %v1002, -1e+30
  %v4240 = vsel %vm2240, %v1003, -1e+30
  %v4241 = vsel %vm2241, %v1004, -1e+30
  %v4242 = vsel %vm2242, %v1005, -1e+30
  %v4243 = vsel %vm2243, %v1006, -1e+30
  %v4244 = vsel %vm2244, %v1007, -1e+30
  %v4245 = vsel %vm2245, %v1008, -1e+30
  %v4246 = vsel %vm2246, %v1009, -1e+30
  %v4247 = vsel %vm2247, %v1010, -1e+30
  %v4248 = vsel %vm2248, %v1011, -1e+30
  %v4249 = vsel %vm2249, %v1012, -1e+30
  %v4250 = vsel %vm2250, %v1013, -1e+30
  %v4251 = vsel %vm2251, %v1014, -1e+30
  %v4252 = vsel %vm2252, %v1015, -1e+30
  %v4253 = vsel %vm2253, %v1016, -1e+30
  %v4254 = vsel %vm2254, %v1017, -1e+30
  %v4255 = vmin.f32 %v4127, %v4128
  %4256 = vmin.xlane.f32.xlu0 %v4255
  %v4257 = vpop.xlane.xlu0 %4256
  %v4258 = vmin.f32 %v4129, %v4130
  %4259 = vmin.xlane.f32.xlu0 %v4258
  %v4260 = vpop.xlane.xlu0 %4259
  %v4261 = vmin.f32 %v4131, %v4132
  %4262 = vmin.xlane.f32.xlu0 %v4261
  %v4263 = vpop.xlane.xlu0 %4262
  %v4264 = vmin.f32 %v4133, %v4134
  %4265 = vmin.xlane.f32.xlu0 %v4264
  %v4266 = vpop.xlane.xlu0 %4265
  %v4267 = vmin.f32 %v4135, %v4136
  %4268 = vmin.xlane.f32.xlu0 %v4267
  %v4269 = vpop.xlane.xlu0 %4268
  %v4270 = vmin.f32 %v4137, %v4138
  %4271 = vmin.xlane.f32.xlu0 %v4270
  %v4272 = vpop.xlane.xlu0 %4271
  %v4273 = vmin.f32 %v4139, %v4140
  %4274 = vmin.xlane.f32.xlu0 %v4273
  %v4275 = vpop.xlane.xlu0 %4274
  %v4276 = vmin.f32 %v4141, %v4142
  %4277 = vmin.xlane.f32.xlu0 %v4276
  %v4278 = vpop.xlane.xlu0 %4277
  %v4279 = vmin.f32 %v4143, %v4144
  %4280 = vmin.xlane.f32.xlu0 %v4279
  %v4281 = vpop.xlane.xlu0 %4280
  %v4282 = vmin.f32 %v4145, %v4146
  %4283 = vmin.xlane.f32.xlu0 %v4282
  %v4284 = vpop.xlane.xlu0 %4283
  %v4285 = vmin.f32 %v4147, %v4148
  %4286 = vmin.xlane.f32.xlu0 %v4285
  %v4287 = vpop.xlane.xlu0 %4286
  %v4288 = vmin.f32 %v4149, %v4150
  %4289 = vmin.xlane.f32.xlu0 %v4288
  %v4290 = vpop.xlane.xlu0 %4289
  %v4291 = vmin.f32 %v4151, %v4152
  %4292 = vmin.xlane.f32.xlu0 %v4291
  %v4293 = vpop.xlane.xlu0 %4292
  %v4294 = vmin.f32 %v4153, %v4154
  %4295 = vmin.xlane.f32.xlu0 %v4294
  %v4296 = vpop.xlane.xlu0 %4295
  %v4297 = vmin.f32 %v4155, %v4156
  %4298 = vmin.xlane.f32.xlu0 %v4297
  %v4299 = vpop.xlane.xlu0 %4298
  %v4300 = vmin.f32 %v4157, %v4158
  %4301 = vmin.xlane.f32.xlu0 %v4300
  %v4302 = vpop.xlane.xlu0 %4301
  %v4303 = vmin.f32 %v4159, %v4160
  %4304 = vmin.xlane.f32.xlu0 %v4303
  %v4305 = vpop.xlane.xlu0 %4304
  %v4306 = vmin.f32 %v4161, %v4162
  %4307 = vmin.xlane.f32.xlu0 %v4306
  %v4308 = vpop.xlane.xlu0 %4307
  %v4309 = vmin.f32 %v4163, %v4164
  %4310 = vmin.xlane.f32.xlu0 %v4309
  %v4311 = vpop.xlane.xlu0 %4310
  %v4312 = vmin.f32 %v4165, %v4166
  %4313 = vmin.xlane.f32.xlu0 %v4312
  %v4314 = vpop.xlane.xlu0 %4313
  %v4315 = vmin.f32 %v4167, %v4168
  %4316 = vmin.xlane.f32.xlu0 %v4315
  %v4317 = vpop.xlane.xlu0 %4316
  %v4318 = vmin.f32 %v4169, %v4170
  %4319 = vmin.xlane.f32.xlu0 %v4318
  %v4320 = vpop.xlane.xlu0 %4319
  %v4321 = vmin.f32 %v4171, %v4172
  %4322 = vmin.xlane.f32.xlu0 %v4321
  %v4323 = vpop.xlane.xlu0 %4322
  %v4324 = vmin.f32 %v4173, %v4174
  %4325 = vmin.xlane.f32.xlu0 %v4324
  %v4326 = vpop.xlane.xlu0 %4325
  %v4327 = vmin.f32 %v4175, %v4176
  %4328 = vmin.xlane.f32.xlu0 %v4327
  %v4329 = vpop.xlane.xlu0 %4328
  %v4330 = vmin.f32 %v4177, %v4178
  %4331 = vmin.xlane.f32.xlu0 %v4330
  %v4332 = vpop.xlane.xlu0 %4331
  %v4333 = vmin.f32 %v4179, %v4180
  %4334 = vmin.xlane.f32.xlu0 %v4333
  %v4335 = vpop.xlane.xlu0 %4334
  %v4336 = vmin.f32 %v4181, %v4182
  %4337 = vmin.xlane.f32.xlu0 %v4336
  %v4338 = vpop.xlane.xlu0 %4337
  %v4339 = vmin.f32 %v4183, %v4184
  %4340 = vmin.xlane.f32.xlu0 %v4339
  %v4341 = vpop.xlane.xlu0 %4340
  %v4342 = vmin.f32 %v4185, %v4186
  %4343 = vmin.xlane.f32.xlu0 %v4342
  %v4344 = vpop.xlane.xlu0 %4343
  %v4345 = vmin.f32 %v4187, %v4188
  %4346 = vmin.xlane.f32.xlu0 %v4345
  %v4347 = vpop.xlane.xlu0 %4346
  %v4348 = vmin.f32 %v4189, %v4190
  %4349 = vmin.xlane.f32.xlu0 %v4348
  %v4350 = vpop.xlane.xlu0 %4349
  %vm4351 = vcmp.lt.f32.partialorder %v4257, 0.0441
  %vm4352 = vcmp.lt.f32.partialorder %v4260, 0.0441
  %vm4353 = vcmp.lt.f32.partialorder %v4263, 0.0441
  %vm4354 = vcmp.lt.f32.partialorder %v4266, 0.0441
  %vm4355 = vcmp.lt.f32.partialorder %v4269, 0.0441
  %vm4356 = vcmp.lt.f32.partialorder %v4272, 0.0441
  %vm4357 = vcmp.lt.f32.partialorder %v4275, 0.0441
  %vm4358 = vcmp.lt.f32.partialorder %v4278, 0.0441
  %vm4359 = vcmp.lt.f32.partialorder %v4281, 0.0441
  %vm4360 = vcmp.lt.f32.partialorder %v4284, 0.0441
  %vm4361 = vcmp.lt.f32.partialorder %v4287, 0.0441
  %vm4362 = vcmp.lt.f32.partialorder %v4290, 0.0441
  %vm4363 = vcmp.lt.f32.partialorder %v4293, 0.0441
  %vm4364 = vcmp.lt.f32.partialorder %v4296, 0.0441
  %vm4365 = vcmp.lt.f32.partialorder %v4299, 0.0441
  %vm4366 = vcmp.lt.f32.partialorder %v4302, 0.0441
  %vm4367 = vcmp.lt.f32.partialorder %v4305, 0.0441
  %vm4368 = vcmp.lt.f32.partialorder %v4308, 0.0441
  %vm4369 = vcmp.lt.f32.partialorder %v4311, 0.0441
  %vm4370 = vcmp.lt.f32.partialorder %v4314, 0.0441
  %vm4371 = vcmp.lt.f32.partialorder %v4317, 0.0441
  %vm4372 = vcmp.lt.f32.partialorder %v4320, 0.0441
  %vm4373 = vcmp.lt.f32.partialorder %v4323, 0.0441
  %vm4374 = vcmp.lt.f32.partialorder %v4326, 0.0441
  %vm4375 = vcmp.lt.f32.partialorder %v4329, 0.0441
  %vm4376 = vcmp.lt.f32.partialorder %v4332, 0.0441
  %vm4377 = vcmp.lt.f32.partialorder %v4335, 0.0441
  %vm4378 = vcmp.lt.f32.partialorder %v4338, 0.0441
  %vm4379 = vcmp.lt.f32.partialorder %v4341, 0.0441
  %vm4380 = vcmp.lt.f32.partialorder %v4344, 0.0441
  %vm4381 = vcmp.lt.f32.partialorder %v4347, 0.0441
  %vm4382 = vcmp.lt.f32.partialorder %v4350, 0.0441
  %v4383 = vmax.f32 %v4191, %v4192
  %4384 = vmax.xlane.f32.xlu0 %v4383
  %v4385 = vpop.xlane.xlu0 %4384
  %v4386 = vmax.f32 %v4193, %v4194
  %4387 = vmax.xlane.f32.xlu0 %v4386
  %v4388 = vpop.xlane.xlu0 %4387
  %v4389 = vmax.f32 %v4195, %v4196
  %4390 = vmax.xlane.f32.xlu0 %v4389
  %v4391 = vpop.xlane.xlu0 %4390
  %v4392 = vmax.f32 %v4197, %v4198
  %4393 = vmax.xlane.f32.xlu0 %v4392
  %v4394 = vpop.xlane.xlu0 %4393
  %v4395 = vmax.f32 %v4199, %v4200
  %4396 = vmax.xlane.f32.xlu0 %v4395
  %v4397 = vpop.xlane.xlu0 %4396
  %v4398 = vmax.f32 %v4201, %v4202
  %4399 = vmax.xlane.f32.xlu0 %v4398
  %v4400 = vpop.xlane.xlu0 %4399
  %v4401 = vmax.f32 %v4203, %v4204
  %4402 = vmax.xlane.f32.xlu0 %v4401
  %v4403 = vpop.xlane.xlu0 %4402
  %v4404 = vmax.f32 %v4205, %v4206
  %4405 = vmax.xlane.f32.xlu0 %v4404
  %v4406 = vpop.xlane.xlu0 %4405
  %v4407 = vmax.f32 %v4207, %v4208
  %4408 = vmax.xlane.f32.xlu0 %v4407
  %v4409 = vpop.xlane.xlu0 %4408
  %v4410 = vmax.f32 %v4209, %v4210
  %4411 = vmax.xlane.f32.xlu0 %v4410
  %v4412 = vpop.xlane.xlu0 %4411
  %v4413 = vmax.f32 %v4211, %v4212
  %4414 = vmax.xlane.f32.xlu0 %v4413
  %v4415 = vpop.xlane.xlu0 %4414
  %v4416 = vmax.f32 %v4213, %v4214
  %4417 = vmax.xlane.f32.xlu0 %v4416
  %v4418 = vpop.xlane.xlu0 %4417
  %v4419 = vmax.f32 %v4215, %v4216
  %4420 = vmax.xlane.f32.xlu0 %v4419
  %v4421 = vpop.xlane.xlu0 %4420
  %v4422 = vmax.f32 %v4217, %v4218
  %4423 = vmax.xlane.f32.xlu0 %v4422
  %v4424 = vpop.xlane.xlu0 %4423
  %v4425 = vmax.f32 %v4219, %v4220
  %4426 = vmax.xlane.f32.xlu0 %v4425
  %v4427 = vpop.xlane.xlu0 %4426
  %v4428 = vmax.f32 %v4221, %v4222
  %4429 = vmax.xlane.f32.xlu0 %v4428
  %v4430 = vpop.xlane.xlu0 %4429
  %v4431 = vmax.f32 %v4223, %v4224
  %4432 = vmax.xlane.f32.xlu0 %v4431
  %v4433 = vpop.xlane.xlu0 %4432
  %v4434 = vmax.f32 %v4225, %v4226
  %4435 = vmax.xlane.f32.xlu0 %v4434
  %v4436 = vpop.xlane.xlu0 %4435
  %v4437 = vmax.f32 %v4227, %v4228
  %4438 = vmax.xlane.f32.xlu0 %v4437
  %v4439 = vpop.xlane.xlu0 %4438
  %v4440 = vmax.f32 %v4229, %v4230
  %4441 = vmax.xlane.f32.xlu0 %v4440
  %v4442 = vpop.xlane.xlu0 %4441
  %v4443 = vmax.f32 %v4231, %v4232
  %4444 = vmax.xlane.f32.xlu0 %v4443
  %v4445 = vpop.xlane.xlu0 %4444
  %v4446 = vmax.f32 %v4233, %v4234
  %4447 = vmax.xlane.f32.xlu0 %v4446
  %v4448 = vpop.xlane.xlu0 %4447
  %v4449 = vmax.f32 %v4235, %v4236
  %4450 = vmax.xlane.f32.xlu0 %v4449
  %v4451 = vpop.xlane.xlu0 %4450
  %v4452 = vmax.f32 %v4237, %v4238
  %4453 = vmax.xlane.f32.xlu0 %v4452
  %v4454 = vpop.xlane.xlu0 %4453
  %v4455 = vmax.f32 %v4239, %v4240
  %4456 = vmax.xlane.f32.xlu0 %v4455
  %v4457 = vpop.xlane.xlu0 %4456
  %v4458 = vmax.f32 %v4241, %v4242
  %4459 = vmax.xlane.f32.xlu0 %v4458
  %v4460 = vpop.xlane.xlu0 %4459
  %v4461 = vmax.f32 %v4243, %v4244
  %4462 = vmax.xlane.f32.xlu0 %v4461
  %v4463 = vpop.xlane.xlu0 %4462
  %v4464 = vmax.f32 %v4245, %v4246
  %4465 = vmax.xlane.f32.xlu0 %v4464
  %v4466 = vpop.xlane.xlu0 %4465
  %v4467 = vmax.f32 %v4247, %v4248
  %4468 = vmax.xlane.f32.xlu0 %v4467
  %v4469 = vpop.xlane.xlu0 %4468
  %v4470 = vmax.f32 %v4249, %v4250
  %4471 = vmax.xlane.f32.xlu0 %v4470
  %v4472 = vpop.xlane.xlu0 %4471
  %v4473 = vmax.f32 %v4251, %v4252
  %4474 = vmax.xlane.f32.xlu0 %v4473
  %v4475 = vpop.xlane.xlu0 %4474
  %v4476 = vmax.f32 %v4253, %v4254
  %4477 = vmax.xlane.f32.xlu0 %v4476
  %v4478 = vpop.xlane.xlu0 %4477
  %vm4479 = vcmp.gt.f32.partialorder %v4385, 0.5625
  %vm4480 = vcmp.gt.f32.partialorder %v4388, 0.5625
  %vm4481 = vcmp.gt.f32.partialorder %v4391, 0.5625
  %vm4482 = vcmp.gt.f32.partialorder %v4394, 0.5625
  %vm4483 = vcmp.gt.f32.partialorder %v4397, 0.5625
  %vm4484 = vcmp.gt.f32.partialorder %v4400, 0.5625
  %vm4485 = vcmp.gt.f32.partialorder %v4403, 0.5625
  %vm4486 = vcmp.gt.f32.partialorder %v4406, 0.5625
  %vm4487 = vcmp.gt.f32.partialorder %v4409, 0.5625
  %vm4488 = vcmp.gt.f32.partialorder %v4412, 0.5625
  %vm4489 = vcmp.gt.f32.partialorder %v4415, 0.5625
  %vm4490 = vcmp.gt.f32.partialorder %v4418, 0.5625
  %vm4491 = vcmp.gt.f32.partialorder %v4421, 0.5625
  %vm4492 = vcmp.gt.f32.partialorder %v4424, 0.5625
  %vm4493 = vcmp.gt.f32.partialorder %v4427, 0.5625
  %vm4494 = vcmp.gt.f32.partialorder %v4430, 0.5625
  %vm4495 = vcmp.gt.f32.partialorder %v4433, 0.5625
  %vm4496 = vcmp.gt.f32.partialorder %v4436, 0.5625
  %vm4497 = vcmp.gt.f32.partialorder %v4439, 0.5625
  %vm4498 = vcmp.gt.f32.partialorder %v4442, 0.5625
  %vm4499 = vcmp.gt.f32.partialorder %v4445, 0.5625
  %vm4500 = vcmp.gt.f32.partialorder %v4448, 0.5625
  %vm4501 = vcmp.gt.f32.partialorder %v4451, 0.5625
  %vm4502 = vcmp.gt.f32.partialorder %v4454, 0.5625
  %vm4503 = vcmp.gt.f32.partialorder %v4457, 0.5625
  %vm4504 = vcmp.gt.f32.partialorder %v4460, 0.5625
  %vm4505 = vcmp.gt.f32.partialorder %v4463, 0.5625
  %vm4506 = vcmp.gt.f32.partialorder %v4466, 0.5625
  %vm4507 = vcmp.gt.f32.partialorder %v4469, 0.5625
  %vm4508 = vcmp.gt.f32.partialorder %v4472, 0.5625
  %vm4509 = vcmp.gt.f32.partialorder %v4475, 0.5625
  %vm4510 = vcmp.gt.f32.partialorder %v4478, 0.5625
  %v4511 = vmin.f32 %v4127, %v4131
  %v4512 = vmin.f32 %v4129, %v4133
  %v4513 = vmin.f32 %v4511, %v4135
  %v4514 = vmin.f32 %v4512, %v4137
  %v4515 = vmin.f32 %v4513, %v4139
  %v4516 = vmin.f32 %v4514, %v4141
  %v4517 = vmin.f32 %v4515, %v4143
  %v4518 = vmin.f32 %v4516, %v4145
  %v4519 = vmin.f32 %v4517, %v4147
  %v4520 = vmin.f32 %v4518, %v4149
  %v4521 = vmin.f32 %v4519, %v4151
  %v4522 = vmin.f32 %v4520, %v4153
  %v4523 = vmin.f32 %v4521, %v4155
  %v4524 = vmin.f32 %v4522, %v4157
  %v4525 = vmin.f32 %v4523, %v4159
  %v4526 = vmin.f32 %v4524, %v4161
  %v4527 = vmin.f32 %v4525, %v4163
  %v4528 = vmin.f32 %v4526, %v4165
  %v4529 = vmin.f32 %v4527, %v4167
  %v4530 = vmin.f32 %v4528, %v4169
  %v4531 = vmin.f32 %v4529, %v4171
  %v4532 = vmin.f32 %v4530, %v4173
  %v4533 = vmin.f32 %v4531, %v4175
  %v4534 = vmin.f32 %v4532, %v4177
  %v4535 = vmin.f32 %v4533, %v4179
  %v4536 = vmin.f32 %v4534, %v4181
  %v4537 = vmin.f32 %v4535, %v4183
  %v4538 = vmin.f32 %v4536, %v4185
  %v4539 = vmin.f32 %v4537, %v4187
  %v4540 = vmin.f32 %v4538, %v4189
  %v4541 = vmin.f32 %v4539, %v4540
  %v4542 = vrot.slane %v4541, 4
  %v4543 = vmin.f32 %v4541, %v4542
  %v4544 = vrot.slane %v4543, 2
  %v4545 = vmin.f32 %v4543, %v4544
  %v4546 = vrot.slane %v4545, 1
  %v4547 = vmin.f32 %v4545, %v4546
  %v4548 = vmin.f32 %v4128, %v4132
  %v4549 = vmin.f32 %v4130, %v4134
  %v4550 = vmin.f32 %v4548, %v4136
  %v4551 = vmin.f32 %v4549, %v4138
  %v4552 = vmin.f32 %v4550, %v4140
  %v4553 = vmin.f32 %v4551, %v4142
  %v4554 = vmin.f32 %v4552, %v4144
  %v4555 = vmin.f32 %v4553, %v4146
  %v4556 = vmin.f32 %v4554, %v4148
  %v4557 = vmin.f32 %v4555, %v4150
  %v4558 = vmin.f32 %v4556, %v4152
  %v4559 = vmin.f32 %v4557, %v4154
  %v4560 = vmin.f32 %v4558, %v4156
  %v4561 = vmin.f32 %v4559, %v4158
  %v4562 = vmin.f32 %v4560, %v4160
  %v4563 = vmin.f32 %v4561, %v4162
  %v4564 = vmin.f32 %v4562, %v4164
  %v4565 = vmin.f32 %v4563, %v4166
  %v4566 = vmin.f32 %v4564, %v4168
  %v4567 = vmin.f32 %v4565, %v4170
  %v4568 = vmin.f32 %v4566, %v4172
  %v4569 = vmin.f32 %v4567, %v4174
  %v4570 = vmin.f32 %v4568, %v4176
  %v4571 = vmin.f32 %v4569, %v4178
  %v4572 = vmin.f32 %v4570, %v4180
  %v4573 = vmin.f32 %v4571, %v4182
  %v4574 = vmin.f32 %v4572, %v4184
  %v4575 = vmin.f32 %v4573, %v4186
  %v4576 = vmin.f32 %v4574, %v4188
  %v4577 = vmin.f32 %v4575, %v4190
  %v4578 = vmin.f32 %v4576, %v4577
  %v4579 = vrot.slane %v4578, 4
  %v4580 = vmin.f32 %v4578, %v4579
  %v4581 = vrot.slane %v4580, 2
  %v4582 = vmin.f32 %v4580, %v4581
  %v4583 = vrot.slane %v4582, 1
  %v4584 = vmin.f32 %v4582, %v4583
  %vm4585 = vcmp.lt.f32.partialorder %v4547, 0.0441
  %vm4586 = vcmp.lt.f32.partialorder %v4584, 0.0441
  %v4587 = vmax.f32 %v4191, %v4195
  %v4588 = vmax.f32 %v4193, %v4197
  %v4589 = vmax.f32 %v4587, %v4199
  %v4590 = vmax.f32 %v4588, %v4201
  %v4591 = vmax.f32 %v4589, %v4203
  %v4592 = vmax.f32 %v4590, %v4205
  %v4593 = vmax.f32 %v4591, %v4207
  %v4594 = vmax.f32 %v4592, %v4209
  %v4595 = vmax.f32 %v4593, %v4211
  %v4596 = vmax.f32 %v4594, %v4213
  %v4597 = vmax.f32 %v4595, %v4215
  %v4598 = vmax.f32 %v4596, %v4217
  %v4599 = vmax.f32 %v4597, %v4219
  %v4600 = vmax.f32 %v4598, %v4221
  %v4601 = vmax.f32 %v4599, %v4223
  %v4602 = vmax.f32 %v4600, %v4225
  %v4603 = vmax.f32 %v4601, %v4227
  %v4604 = vmax.f32 %v4602, %v4229
  %v4605 = vmax.f32 %v4603, %v4231
  %v4606 = vmax.f32 %v4604, %v4233
  %v4607 = vmax.f32 %v4605, %v4235
  %v4608 = vmax.f32 %v4606, %v4237
  %v4609 = vmax.f32 %v4607, %v4239
  %v4610 = vmax.f32 %v4608, %v4241
  %v4611 = vmax.f32 %v4609, %v4243
  %v4612 = vmax.f32 %v4610, %v4245
  %v4613 = vmax.f32 %v4611, %v4247
  %v4614 = vmax.f32 %v4612, %v4249
  %v4615 = vmax.f32 %v4613, %v4251
  %v4616 = vmax.f32 %v4614, %v4253
  %v4617 = vmax.f32 %v4615, %v4616
  %v4618 = vrot.slane %v4617, 4
  %v4619 = vmax.f32 %v4617, %v4618
  %v4620 = vrot.slane %v4619, 2
  %v4621 = vmax.f32 %v4619, %v4620
  %v4622 = vrot.slane %v4621, 1
  %v4623 = vmax.f32 %v4621, %v4622
  %v4624 = vmax.f32 %v4192, %v4196
  %v4625 = vmax.f32 %v4194, %v4198
  %v4626 = vmax.f32 %v4624, %v4200
  %v4627 = vmax.f32 %v4625, %v4202
  %v4628 = vmax.f32 %v4626, %v4204
  %v4629 = vmax.f32 %v4627, %v4206
  %v4630 = vmax.f32 %v4628, %v4208
  %v4631 = vmax.f32 %v4629, %v4210
  %v4632 = vmax.f32 %v4630, %v4212
  %v4633 = vmax.f32 %v4631, %v4214
  %v4634 = vmax.f32 %v4632, %v4216
  %v4635 = vmax.f32 %v4633, %v4218
  %v4636 = vmax.f32 %v4634, %v4220
  %v4637 = vmax.f32 %v4635, %v4222
  %v4638 = vmax.f32 %v4636, %v4224
  %v4639 = vmax.f32 %v4637, %v4226
  %v4640 = vmax.f32 %v4638, %v4228
  %v4641 = vmax.f32 %v4639, %v4230
  %v4642 = vmax.f32 %v4640, %v4232
  %v4643 = vmax.f32 %v4641, %v4234
  %v4644 = vmax.f32 %v4642, %v4236
  %v4645 = vmax.f32 %v4643, %v4238
  %v4646 = vmax.f32 %v4644, %v4240
  %v4647 = vmax.f32 %v4645, %v4242
  %v4648 = vmax.f32 %v4646, %v4244
  %v4649 = vmax.f32 %v4647, %v4246
  %v4650 = vmax.f32 %v4648, %v4248
  %v4651 = vmax.f32 %v4649, %v4250
  %v4652 = vmax.f32 %v4650, %v4252
  %v4653 = vmax.f32 %v4651, %v4254
  %v4654 = vmax.f32 %v4652, %v4653
  %v4655 = vrot.slane %v4654, 4
  %v4656 = vmax.f32 %v4654, %v4655
  %v4657 = vrot.slane %v4656, 2
  %v4658 = vmax.f32 %v4656, %v4657
  %v4659 = vrot.slane %v4658, 1
  %v4660 = vmax.f32 %v4658, %v4659
  %vm4661 = vcmp.gt.f32.partialorder %v4623, 0.5625
  %vm4662 = vcmp.gt.f32.partialorder %v4660, 0.5625
  %vm4663 = vmand %vm4351, %vm4479
  %vm4664 = vmand %vm4352, %vm4480
  %vm4665 = vmand %vm4353, %vm4481
  %vm4666 = vmand %vm4354, %vm4482
  %vm4667 = vmand %vm4355, %vm4483
  %vm4668 = vmand %vm4356, %vm4484
  %vm4669 = vmand %vm4357, %vm4485
  %vm4670 = vmand %vm4358, %vm4486
  %vm4671 = vmand %vm4359, %vm4487
  %vm4672 = vmand %vm4360, %vm4488
  %vm4673 = vmand %vm4361, %vm4489
  %vm4674 = vmand %vm4362, %vm4490
  %vm4675 = vmand %vm4363, %vm4491
  %vm4676 = vmand %vm4364, %vm4492
  %vm4677 = vmand %vm4365, %vm4493
  %vm4678 = vmand %vm4366, %vm4494
  %vm4679 = vmand %vm4367, %vm4495
  %vm4680 = vmand %vm4368, %vm4496
  %vm4681 = vmand %vm4369, %vm4497
  %vm4682 = vmand %vm4370, %vm4498
  %vm4683 = vmand %vm4371, %vm4499
  %vm4684 = vmand %vm4372, %vm4500
  %vm4685 = vmand %vm4373, %vm4501
  %vm4686 = vmand %vm4374, %vm4502
  %vm4687 = vmand %vm4375, %vm4503
  %vm4688 = vmand %vm4376, %vm4504
  %vm4689 = vmand %vm4377, %vm4505
  %vm4690 = vmand %vm4378, %vm4506
  %vm4691 = vmand %vm4379, %vm4507
  %vm4692 = vmand %vm4380, %vm4508
  %vm4693 = vmand %vm4381, %vm4509
  %vm4694 = vmand %vm4382, %vm4510
  %vm4695 = vmand %vm4585, %vm4661
  %vm4696 = vmand %vm4586, %vm4662
  %v4697 = vlog2.pop %v3602
  %v4698 = vmul.f32 %v4697, 0.6931472
  %v4699 = vlog2.pop %v3607
  %v4700 = vmul.f32 %v4699, 0.6931472
  %v4701 = vlog2.pop %v3612
  %v4702 = vmul.f32 %v4701, 0.6931472
  %v4703 = vlog2.pop %v3617
  %v4704 = vmul.f32 %v4703, 0.6931472
  %v4705 = vlog2.pop %v3622
  %v4706 = vmul.f32 %v4705, 0.6931472
  %v4707 = vlog2.pop %v3627
  %v4708 = vmul.f32 %v4707, 0.6931472
  %v4709 = vlog2.pop %v3632
  %v4710 = vmul.f32 %v4709, 0.6931472
  %v4711 = vlog2.pop %v3637
  %v4712 = vmul.f32 %v4711, 0.6931472
  %v4713 = vlog2.pop %v3642
  %v4714 = vmul.f32 %v4713, 0.6931472
  %v4715 = vlog2.pop %v3647
  %v4716 = vmul.f32 %v4715, 0.6931472
  %v4717 = vlog2.pop %v3652
  %v4718 = vmul.f32 %v4717, 0.6931472
  %v4719 = vlog2.pop %v3657
  %v4720 = vmul.f32 %v4719, 0.6931472
  %v4721 = vlog2.pop %v3662
  %v4722 = vmul.f32 %v4721, 0.6931472
  %v4723 = vlog2.pop %v3667
  %v4724 = vmul.f32 %v4723, 0.6931472
  %v4725 = vlog2.pop %v3672
  %v4726 = vmul.f32 %v4725, 0.6931472
  %v4727 = vlog2.pop %v3677
  %v4728 = vmul.f32 %v4727, 0.6931472
  %v4729 = vlog2.pop %v3682
  %v4730 = vmul.f32 %v4729, 0.6931472
  %v4731 = vlog2.pop %v3687
  %v4732 = vmul.f32 %v4731, 0.6931472
  %v4733 = vlog2.pop %v3692
  %v4734 = vmul.f32 %v4733, 0.6931472
  %v4735 = vlog2.pop %v3697
  %v4736 = vmul.f32 %v4735, 0.6931472
  %v4737 = vlog2.pop %v3702
  %v4738 = vmul.f32 %v4737, 0.6931472
  %v4739 = vlog2.pop %v3707
  %v4740 = vmul.f32 %v4739, 0.6931472
  %v4741 = vlog2.pop %v3712
  %v4742 = vmul.f32 %v4741, 0.6931472
  %v4743 = vlog2.pop %v3717
  %v4744 = vmul.f32 %v4743, 0.6931472
  %v4745 = vlog2.pop %v3722
  %v4746 = vmul.f32 %v4745, 0.6931472
  %v4747 = vlog2.pop %v3727
  %v4748 = vmul.f32 %v4747, 0.6931472
  %v4749 = vlog2.pop %v3732
  %v4750 = vmul.f32 %v4749, 0.6931472
  %v4751 = vlog2.pop %v3737
  %v4752 = vmul.f32 %v4751, 0.6931472
  %v4753 = vlog2.pop %v3742
  %v4754 = vmul.f32 %v4753, 0.6931472
  %v4755 = vlog2.pop %v3747
  %v4756 = vmul.f32 %v4755, 0.6931472
  %v4757 = vlog2.pop %v3752
  %v4758 = vmul.f32 %v4757, 0.6931472
  %v4759 = vlog2.pop %v3757
  %v4760 = vmul.f32 %v4759, 0.6931472
  %v4761 = vlog2.pop %v3827
  %v4762 = vmul.f32 %v4761, 0.6931472
  %v4763 = vlog2.pop %v3832
  %v4764 = vmul.f32 %v4763, 0.6931472
  %v4765 = vlog2.pop %v3837
  %v4766 = vmul.f32 %v4765, 0.6931472
  %v4767 = vlog2.pop %v3842
  %v4768 = vmul.f32 %v4767, 0.6931472
  %v4769 = vlog2.pop %v3847
  %v4770 = vmul.f32 %v4769, 0.6931472
  %v4771 = vlog2.pop %v3852
  %v4772 = vmul.f32 %v4771, 0.6931472
  %v4773 = vlog2.pop %v3857
  %v4774 = vmul.f32 %v4773, 0.6931472
  %v4775 = vlog2.pop %v3862
  %v4776 = vmul.f32 %v4775, 0.6931472
  %v4777 = vlog2.pop %v3867
  %v4778 = vmul.f32 %v4777, 0.6931472
  %v4779 = vlog2.pop %v3872
  %v4780 = vmul.f32 %v4779, 0.6931472
  %v4781 = vlog2.pop %v3877
  %v4782 = vmul.f32 %v4781, 0.6931472
  %v4783 = vlog2.pop %v3882
  %v4784 = vmul.f32 %v4783, 0.6931472
  %v4785 = vlog2.pop %v3887
  %v4786 = vmul.f32 %v4785, 0.6931472
  %v4787 = vlog2.pop %v3892
  %v4788 = vmul.f32 %v4787, 0.6931472
  %v4789 = vlog2.pop %v3897
  %v4790 = vmul.f32 %v4789, 0.6931472
  %v4791 = vlog2.pop %v3902
  %v4792 = vmul.f32 %v4791, 0.6931472
  %v4793 = vlog2.pop %v3907
  %v4794 = vmul.f32 %v4793, 0.6931472
  %v4795 = vlog2.pop %v3912
  %v4796 = vmul.f32 %v4795, 0.6931472
  %v4797 = vlog2.pop %v3917
  %v4798 = vmul.f32 %v4797, 0.6931472
  %v4799 = vlog2.pop %v3922
  %v4800 = vmul.f32 %v4799, 0.6931472
  %v4801 = vlog2.pop %v3927
  %v4802 = vmul.f32 %v4801, 0.6931472
  %v4803 = vlog2.pop %v3932
  %v4804 = vmul.f32 %v4803, 0.6931472
  %v4805 = vlog2.pop %v3937
  %v4806 = vmul.f32 %v4805, 0.6931472
  %v4807 = vlog2.pop %v3942
  %v4808 = vmul.f32 %v4807, 0.6931472
  %v4809 = vlog2.pop %v3947
  %v4810 = vmul.f32 %v4809, 0.6931472
  %v4811 = vlog2.pop %v3952
  %v4812 = vmul.f32 %v4811, 0.6931472
  %v4813 = vlog2.pop %v3957
  %v4814 = vmul.f32 %v4813, 0.6931472
  %v4815 = vlog2.pop %v3962
  %v4816 = vmul.f32 %v4815, 0.6931472
  %v4817 = vlog2.pop %v3967
  %v4818 = vmul.f32 %v4817, 0.6931472
  %v4819 = vlog2.pop %v3972
  %v4820 = vmul.f32 %v4819, 0.6931472
  %v4821 = vlog2.pop %v3977
  %v4822 = vmul.f32 %v4821, 0.6931472
  %v4823 = vlog2.pop %v3982
  %v4824 = vmul.f32 %v4823, 0.6931472
  %v4825 = vadd.f32 %v4698, %v4762
  %v4826 = vadd.f32 %v4700, %v4764
  %v4827 = vadd.f32 %v4702, %v4766
  %v4828 = vadd.f32 %v4704, %v4768
  %v4829 = vadd.f32 %v4706, %v4770
  %v4830 = vadd.f32 %v4708, %v4772
  %v4831 = vadd.f32 %v4710, %v4774
  %v4832 = vadd.f32 %v4712, %v4776
  %v4833 = vadd.f32 %v4714, %v4778
  %v4834 = vadd.f32 %v4716, %v4780
  %v4835 = vadd.f32 %v4718, %v4782
  %v4836 = vadd.f32 %v4720, %v4784
  %v4837 = vadd.f32 %v4722, %v4786
  %v4838 = vadd.f32 %v4724, %v4788
  %v4839 = vadd.f32 %v4726, %v4790
  %v4840 = vadd.f32 %v4728, %v4792
  %v4841 = vadd.f32 %v4730, %v4794
  %v4842 = vadd.f32 %v4732, %v4796
  %v4843 = vadd.f32 %v4734, %v4798
  %v4844 = vadd.f32 %v4736, %v4800
  %v4845 = vadd.f32 %v4738, %v4802
  %v4846 = vadd.f32 %v4740, %v4804
  %v4847 = vadd.f32 %v4742, %v4806
  %v4848 = vadd.f32 %v4744, %v4808
  %v4849 = vadd.f32 %v4746, %v4810
  %v4850 = vadd.f32 %v4748, %v4812
  %v4851 = vadd.f32 %v4750, %v4814
  %v4852 = vadd.f32 %v4752, %v4816
  %v4853 = vadd.f32 %v4754, %v4818
  %v4854 = vadd.f32 %v4756, %v4820
  %v4855 = vadd.f32 %v4758, %v4822
  %v4856 = vadd.f32 %v4760, %v4824
  %v4857 = vmax.f32 %v4825, 0.0
  %v4858 = vmax.f32 %v4826, 0.0
  %v4859 = vmax.f32 %v4827, 0.0
  %v4860 = vmax.f32 %v4828, 0.0
  %v4861 = vmax.f32 %v4829, 0.0
  %v4862 = vmax.f32 %v4830, 0.0
  %v4863 = vmax.f32 %v4831, 0.0
  %v4864 = vmax.f32 %v4832, 0.0
  %v4865 = vmax.f32 %v4833, 0.0
  %v4866 = vmax.f32 %v4834, 0.0
  %v4867 = vmax.f32 %v4835, 0.0
  %v4868 = vmax.f32 %v4836, 0.0
  %v4869 = vmax.f32 %v4837, 0.0
  %v4870 = vmax.f32 %v4838, 0.0
  %v4871 = vmax.f32 %v4839, 0.0
  %v4872 = vmax.f32 %v4840, 0.0
  %v4873 = vmax.f32 %v4841, 0.0
  %v4874 = vmax.f32 %v4842, 0.0
  %v4875 = vmax.f32 %v4843, 0.0
  %v4876 = vmax.f32 %v4844, 0.0
  %v4877 = vmax.f32 %v4845, 0.0
  %v4878 = vmax.f32 %v4846, 0.0
  %v4879 = vmax.f32 %v4847, 0.0
  %v4880 = vmax.f32 %v4848, 0.0
  %v4881 = vmax.f32 %v4849, 0.0
  %v4882 = vmax.f32 %v4850, 0.0
  %v4883 = vmax.f32 %v4851, 0.0
  %v4884 = vmax.f32 %v4852, 0.0
  %v4885 = vmax.f32 %v4853, 0.0
  %v4886 = vmax.f32 %v4854, 0.0
  %v4887 = vmax.f32 %v4855, 0.0
  %v4888 = vmax.f32 %v4856, 0.0
  %v4889 = vand.u32 2147483647, %v4825
  %v4890 = vand.u32 2147483647, %v4826
  %v4891 = vand.u32 2147483647, %v4827
  %v4892 = vand.u32 2147483647, %v4828
  %v4893 = vand.u32 2147483647, %v4829
  %v4894 = vand.u32 2147483647, %v4830
  %v4895 = vand.u32 2147483647, %v4831
  %v4896 = vand.u32 2147483647, %v4832
  %v4897 = vand.u32 2147483647, %v4833
  %v4898 = vand.u32 2147483647, %v4834
  %v4899 = vand.u32 2147483647, %v4835
  %v4900 = vand.u32 2147483647, %v4836
  %v4901 = vand.u32 2147483647, %v4837
  %v4902 = vand.u32 2147483647, %v4838
  %v4903 = vand.u32 2147483647, %v4839
  %v4904 = vand.u32 2147483647, %v4840
  %v4905 = vand.u32 2147483647, %v4841
  %v4906 = vand.u32 2147483647, %v4842
  %v4907 = vand.u32 2147483647, %v4843
  %v4908 = vand.u32 2147483647, %v4844
  %v4909 = vand.u32 2147483647, %v4845
  %v4910 = vand.u32 2147483647, %v4846
  %v4911 = vand.u32 2147483647, %v4847
  %v4912 = vand.u32 2147483647, %v4848
  %v4913 = vand.u32 2147483647, %v4849
  %v4914 = vand.u32 2147483647, %v4850
  %v4915 = vand.u32 2147483647, %v4851
  %v4916 = vand.u32 2147483647, %v4852
  %v4917 = vand.u32 2147483647, %v4853
  %v4918 = vand.u32 2147483647, %v4854
  %v4919 = vand.u32 2147483647, %v4855
  %v4920 = vand.u32 2147483647, %v4856
  %v4921 = vsub.f32 0.0, %v4889
  %v4922 = vsub.f32 0.0, %v4890
  %v4923 = vsub.f32 0.0, %v4891
  %v4924 = vsub.f32 0.0, %v4892
  %v4925 = vsub.f32 0.0, %v4893
  %v4926 = vsub.f32 0.0, %v4894
  %v4927 = vsub.f32 0.0, %v4895
  %v4928 = vsub.f32 0.0, %v4896
  %v4929 = vsub.f32 0.0, %v4897
  %v4930 = vsub.f32 0.0, %v4898
  %v4931 = vsub.f32 0.0, %v4899
  %v4932 = vsub.f32 0.0, %v4900
  %v4933 = vsub.f32 0.0, %v4901
  %v4934 = vsub.f32 0.0, %v4902
  %v4935 = vsub.f32 0.0, %v4903
  %v4936 = vsub.f32 0.0, %v4904
  %v4937 = vsub.f32 0.0, %v4905
  %v4938 = vsub.f32 0.0, %v4906
  %v4939 = vsub.f32 0.0, %v4907
  %v4940 = vsub.f32 0.0, %v4908
  %v4941 = vsub.f32 0.0, %v4909
  %v4942 = vsub.f32 0.0, %v4910
  %v4943 = vsub.f32 0.0, %v4911
  %v4944 = vsub.f32 0.0, %v4912
  %v4945 = vsub.f32 0.0, %v4913
  %v4946 = vsub.f32 0.0, %v4914
  %v4947 = vsub.f32 0.0, %v4915
  %v4948 = vsub.f32 0.0, %v4916
  %v4949 = vsub.f32 0.0, %v4917
  %v4950 = vsub.f32 0.0, %v4918
  %v4951 = vsub.f32 0.0, %v4919
  %v4952 = vsub.f32 0.0, %v4920
  %v4953 = vmul.f32 %v4921, 1.442695
  %v4954 = vpow.pop %v4953
  %v4955 = vmul.f32 %v4922, 1.442695
  %v4956 = vpow.pop %v4955
  %v4957 = vmul.f32 %v4923, 1.442695
  %v4958 = vpow.pop %v4957
  %v4959 = vmul.f32 %v4924, 1.442695
  %v4960 = vpow.pop %v4959
  %v4961 = vmul.f32 %v4925, 1.442695
  %v4962 = vpow.pop %v4961
  %v4963 = vmul.f32 %v4926, 1.442695
  %v4964 = vpow.pop %v4963
  %v4965 = vmul.f32 %v4927, 1.442695
  %v4966 = vpow.pop %v4965
  %v4967 = vmul.f32 %v4928, 1.442695
  %v4968 = vpow.pop %v4967
  %v4969 = vmul.f32 %v4929, 1.442695
  %v4970 = vpow.pop %v4969
  %v4971 = vmul.f32 %v4930, 1.442695
  %v4972 = vpow.pop %v4971
  %v4973 = vmul.f32 %v4931, 1.442695
  %v4974 = vpow.pop %v4973
  %v4975 = vmul.f32 %v4932, 1.442695
  %v4976 = vpow.pop %v4975
  %v4977 = vmul.f32 %v4933, 1.442695
  %v4978 = vpow.pop %v4977
  %v4979 = vmul.f32 %v4934, 1.442695
  %v4980 = vpow.pop %v4979
  %v4981 = vmul.f32 %v4935, 1.442695
  %v4982 = vpow.pop %v4981
  %v4983 = vmul.f32 %v4936, 1.442695
  %v4984 = vpow.pop %v4983
  %v4985 = vmul.f32 %v4937, 1.442695
  %v4986 = vpow.pop %v4985
  %v4987 = vmul.f32 %v4938, 1.442695
  %v4988 = vpow.pop %v4987
  %v4989 = vmul.f32 %v4939, 1.442695
  %v4990 = vpow.pop %v4989
  %v4991 = vmul.f32 %v4940, 1.442695
  %v4992 = vpow.pop %v4991
  %v4993 = vmul.f32 %v4941, 1.442695
  %v4994 = vpow.pop %v4993
  %v4995 = vmul.f32 %v4942, 1.442695
  %v4996 = vpow.pop %v4995
  %v4997 = vmul.f32 %v4943, 1.442695
  %v4998 = vpow.pop %v4997
  %v4999 = vmul.f32 %v4944, 1.442695
  %v5000 = vpow.pop %v4999
  %v5001 = vmul.f32 %v4945, 1.442695
  %v5002 = vpow.pop %v5001
  %v5003 = vmul.f32 %v4946, 1.442695
  %v5004 = vpow.pop %v5003
  %v5005 = vmul.f32 %v4947, 1.442695
  %v5006 = vpow.pop %v5005
  %v5007 = vmul.f32 %v4948, 1.442695
  %v5008 = vpow.pop %v5007
  %v5009 = vmul.f32 %v4949, 1.442695
  %v5010 = vpow.pop %v5009
  %v5011 = vmul.f32 %v4950, 1.442695
  %v5012 = vpow.pop %v5011
  %v5013 = vmul.f32 %v4951, 1.442695
  %v5014 = vpow.pop %v5013
  %v5015 = vmul.f32 %v4952, 1.442695
  %v5016 = vpow.pop %v5015
  %v5017 = vadd.f32 %v4954, 1.0
  %v5018 = vadd.f32 %v4956, 1.0
  %v5019 = vadd.f32 %v4958, 1.0
  %v5020 = vadd.f32 %v4960, 1.0
  %v5021 = vadd.f32 %v4962, 1.0
  %v5022 = vadd.f32 %v4964, 1.0
  %v5023 = vadd.f32 %v4966, 1.0
  %v5024 = vadd.f32 %v4968, 1.0
  %v5025 = vadd.f32 %v4970, 1.0
  %v5026 = vadd.f32 %v4972, 1.0
  %v5027 = vadd.f32 %v4974, 1.0
  %v5028 = vadd.f32 %v4976, 1.0
  %v5029 = vadd.f32 %v4978, 1.0
  %v5030 = vadd.f32 %v4980, 1.0
  %v5031 = vadd.f32 %v4982, 1.0
  %v5032 = vadd.f32 %v4984, 1.0
  %v5033 = vadd.f32 %v4986, 1.0
  %v5034 = vadd.f32 %v4988, 1.0
  %v5035 = vadd.f32 %v4990, 1.0
  %v5036 = vadd.f32 %v4992, 1.0
  %v5037 = vadd.f32 %v4994, 1.0
  %v5038 = vadd.f32 %v4996, 1.0
  %v5039 = vadd.f32 %v4998, 1.0
  %v5040 = vadd.f32 %v5000, 1.0
  %v5041 = vadd.f32 %v5002, 1.0
  %v5042 = vadd.f32 %v5004, 1.0
  %v5043 = vadd.f32 %v5006, 1.0
  %v5044 = vadd.f32 %v5008, 1.0
  %v5045 = vadd.f32 %v5010, 1.0
  %v5046 = vadd.f32 %v5012, 1.0
  %v5047 = vadd.f32 %v5014, 1.0
  %v5048 = vadd.f32 %v5016, 1.0
  %v5049 = vlog2.pop %v5017
  %v5050 = vmul.f32 %v5049, 0.6931472
  %v5051 = vlog2.pop %v5018
  %v5052 = vmul.f32 %v5051, 0.6931472
  %v5053 = vlog2.pop %v5019
  %v5054 = vmul.f32 %v5053, 0.6931472
  %v5055 = vlog2.pop %v5020
  %v5056 = vmul.f32 %v5055, 0.6931472
  %v5057 = vlog2.pop %v5021
  %v5058 = vmul.f32 %v5057, 0.6931472
  %v5059 = vlog2.pop %v5022
  %v5060 = vmul.f32 %v5059, 0.6931472
  %v5061 = vlog2.pop %v5023
  %v5062 = vmul.f32 %v5061, 0.6931472
  %v5063 = vlog2.pop %v5024
  %v5064 = vmul.f32 %v5063, 0.6931472
  %v5065 = vlog2.pop %v5025
  %v5066 = vmul.f32 %v5065, 0.6931472
  %v5067 = vlog2.pop %v5026
  %v5068 = vmul.f32 %v5067, 0.6931472
  %v5069 = vlog2.pop %v5027
  %v5070 = vmul.f32 %v5069, 0.6931472
  %v5071 = vlog2.pop %v5028
  %v5072 = vmul.f32 %v5071, 0.6931472
  %v5073 = vlog2.pop %v5029
  %v5074 = vmul.f32 %v5073, 0.6931472
  %v5075 = vlog2.pop %v5030
  %v5076 = vmul.f32 %v5075, 0.6931472
  %v5077 = vlog2.pop %v5031
  %v5078 = vmul.f32 %v5077, 0.6931472
  %v5079 = vlog2.pop %v5032
  %v5080 = vmul.f32 %v5079, 0.6931472
  %v5081 = vlog2.pop %v5033
  %v5082 = vmul.f32 %v5081, 0.6931472
  %v5083 = vlog2.pop %v5034
  %v5084 = vmul.f32 %v5083, 0.6931472
  %v5085 = vlog2.pop %v5035
  %v5086 = vmul.f32 %v5085, 0.6931472
  %v5087 = vlog2.pop %v5036
  %v5088 = vmul.f32 %v5087, 0.6931472
  %v5089 = vlog2.pop %v5037
  %v5090 = vmul.f32 %v5089, 0.6931472
  %v5091 = vlog2.pop %v5038
  %v5092 = vmul.f32 %v5091, 0.6931472
  %v5093 = vlog2.pop %v5039
  %v5094 = vmul.f32 %v5093, 0.6931472
  %v5095 = vlog2.pop %v5040
  %v5096 = vmul.f32 %v5095, 0.6931472
  %v5097 = vlog2.pop %v5041
  %v5098 = vmul.f32 %v5097, 0.6931472
  %v5099 = vlog2.pop %v5042
  %v5100 = vmul.f32 %v5099, 0.6931472
  %v5101 = vlog2.pop %v5043
  %v5102 = vmul.f32 %v5101, 0.6931472
  %v5103 = vlog2.pop %v5044
  %v5104 = vmul.f32 %v5103, 0.6931472
  %v5105 = vlog2.pop %v5045
  %v5106 = vmul.f32 %v5105, 0.6931472
  %v5107 = vlog2.pop %v5046
  %v5108 = vmul.f32 %v5107, 0.6931472
  %v5109 = vlog2.pop %v5047
  %v5110 = vmul.f32 %v5109, 0.6931472
  %v5111 = vlog2.pop %v5048
  %v5112 = vmul.f32 %v5111, 0.6931472
  %v5113 = vadd.f32 %v4857, %v5050
  %v5114 = vadd.f32 %v4858, %v5052
  %v5115 = vadd.f32 %v4859, %v5054
  %v5116 = vadd.f32 %v4860, %v5056
  %v5117 = vadd.f32 %v4861, %v5058
  %v5118 = vadd.f32 %v4862, %v5060
  %v5119 = vadd.f32 %v4863, %v5062
  %v5120 = vadd.f32 %v4864, %v5064
  %v5121 = vadd.f32 %v4865, %v5066
  %v5122 = vadd.f32 %v4866, %v5068
  %v5123 = vadd.f32 %v4867, %v5070
  %v5124 = vadd.f32 %v4868, %v5072
  %v5125 = vadd.f32 %v4869, %v5074
  %v5126 = vadd.f32 %v4870, %v5076
  %v5127 = vadd.f32 %v4871, %v5078
  %v5128 = vadd.f32 %v4872, %v5080
  %v5129 = vadd.f32 %v4873, %v5082
  %v5130 = vadd.f32 %v4874, %v5084
  %v5131 = vadd.f32 %v4875, %v5086
  %v5132 = vadd.f32 %v4876, %v5088
  %v5133 = vadd.f32 %v4877, %v5090
  %v5134 = vadd.f32 %v4878, %v5092
  %v5135 = vadd.f32 %v4879, %v5094
  %v5136 = vadd.f32 %v4880, %v5096
  %v5137 = vadd.f32 %v4881, %v5098
  %v5138 = vadd.f32 %v4882, %v5100
  %v5139 = vadd.f32 %v4883, %v5102
  %v5140 = vadd.f32 %v4884, %v5104
  %v5141 = vadd.f32 %v4885, %v5106
  %v5142 = vadd.f32 %v4886, %v5108
  %v5143 = vadd.f32 %v4887, %v5110
  %v5144 = vadd.f32 %v4888, %v5112
  %v5145 = vrcp.pop 16.0
  %v5146 = vmul.f32 %v5113, %v5145
  %v5147 = vmul.f32 %v5114, %v5145
  %v5148 = vmul.f32 %v5115, %v5145
  %v5149 = vmul.f32 %v5116, %v5145
  %v5150 = vmul.f32 %v5117, %v5145
  %v5151 = vmul.f32 %v5118, %v5145
  %v5152 = vmul.f32 %v5119, %v5145
  %v5153 = vmul.f32 %v5120, %v5145
  %v5154 = vmul.f32 %v5121, %v5145
  %v5155 = vmul.f32 %v5122, %v5145
  %v5156 = vmul.f32 %v5123, %v5145
  %v5157 = vmul.f32 %v5124, %v5145
  %v5158 = vmul.f32 %v5125, %v5145
  %v5159 = vmul.f32 %v5126, %v5145
  %v5160 = vmul.f32 %v5127, %v5145
  %v5161 = vmul.f32 %v5128, %v5145
  %v5162 = vmul.f32 %v5129, %v5145
  %v5163 = vmul.f32 %v5130, %v5145
  %v5164 = vmul.f32 %v5131, %v5145
  %v5165 = vmul.f32 %v5132, %v5145
  %v5166 = vmul.f32 %v5133, %v5145
  %v5167 = vmul.f32 %v5134, %v5145
  %v5168 = vmul.f32 %v5135, %v5145
  %v5169 = vmul.f32 %v5136, %v5145
  %v5170 = vmul.f32 %v5137, %v5145
  %v5171 = vmul.f32 %v5138, %v5145
  %v5172 = vmul.f32 %v5139, %v5145
  %v5173 = vmul.f32 %v5140, %v5145
  %v5174 = vmul.f32 %v5141, %v5145
  %v5175 = vmul.f32 %v5142, %v5145
  %v5176 = vmul.f32 %v5143, %v5145
  %v5177 = vmul.f32 %v5144, %v5145
  %v5178 = vlog2.pop %v4052
  %v5179 = vmul.f32 %v5178, 0.6931472
  %v5180 = vlog2.pop %v4054
  %v5181 = vmul.f32 %v5180, 0.6931472
  %v5182 = vlog2.pop %v4123
  %v5183 = vmul.f32 %v5182, 0.6931472
  %v5184 = vlog2.pop %v4125
  %v5185 = vmul.f32 %v5184, 0.6931472
  %v5186 = vadd.f32 %v5179, %v5183
  %v5187 = vadd.f32 %v5181, %v5185
  %v5188 = vmax.f32 %v5186, 0.0
  %v5189 = vmax.f32 %v5187, 0.0
  %v5190 = vand.u32 2147483647, %v5186
  %v5191 = vand.u32 2147483647, %v5187
  %v5192 = vsub.f32 0.0, %v5190
  %v5193 = vsub.f32 0.0, %v5191
  %v5194 = vmul.f32 %v5192, 1.442695
  %v5195 = vpow.pop %v5194
  %v5196 = vmul.f32 %v5193, 1.442695
  %v5197 = vpow.pop %v5196
  %v5198 = vadd.f32 %v5195, 1.0
  %v5199 = vadd.f32 %v5197, 1.0
  %v5200 = vlog2.pop %v5198
  %v5201 = vmul.f32 %v5200, 0.6931472
  %v5202 = vlog2.pop %v5199
  %v5203 = vmul.f32 %v5202, 0.6931472
  %v5204 = vadd.f32 %v5188, %v5201
  %v5205 = vadd.f32 %v5189, %v5203
  %v5206 = vmul.f32 %v5204, %v5145
  %v5207 = vmul.f32 %v5205, %v5145
  %v5208 = vsel %vm4663, %v5146, 0.0
  %v5209 = vsel %vm4664, %v5147, 0.0
  %v5210 = vsel %vm4665, %v5148, 0.0
  %v5211 = vsel %vm4666, %v5149, 0.0
  %v5212 = vsel %vm4667, %v5150, 0.0
  %v5213 = vsel %vm4668, %v5151, 0.0
  %v5214 = vsel %vm4669, %v5152, 0.0
  %v5215 = vsel %vm4670, %v5153, 0.0
  %v5216 = vsel %vm4671, %v5154, 0.0
  %v5217 = vsel %vm4672, %v5155, 0.0
  %v5218 = vsel %vm4673, %v5156, 0.0
  %v5219 = vsel %vm4674, %v5157, 0.0
  %v5220 = vsel %vm4675, %v5158, 0.0
  %v5221 = vsel %vm4676, %v5159, 0.0
  %v5222 = vsel %vm4677, %v5160, 0.0
  %v5223 = vsel %vm4678, %v5161, 0.0
  %v5224 = vsel %vm4679, %v5162, 0.0
  %v5225 = vsel %vm4680, %v5163, 0.0
  %v5226 = vsel %vm4681, %v5164, 0.0
  %v5227 = vsel %vm4682, %v5165, 0.0
  %v5228 = vsel %vm4683, %v5166, 0.0
  %v5229 = vsel %vm4684, %v5167, 0.0
  %v5230 = vsel %vm4685, %v5168, 0.0
  %v5231 = vsel %vm4686, %v5169, 0.0
  %v5232 = vsel %vm4687, %v5170, 0.0
  %v5233 = vsel %vm4688, %v5171, 0.0
  %v5234 = vsel %vm4689, %v5172, 0.0
  %v5235 = vsel %vm4690, %v5173, 0.0
  %v5236 = vsel %vm4691, %v5174, 0.0
  %v5237 = vsel %vm4692, %v5175, 0.0
  %v5238 = vsel %vm4693, %v5176, 0.0
  %v5239 = vsel %vm4694, %v5177, 0.0
  %vm5240 = vcmask 7168
  %v5241 = vsel %vm5240, %v5208, 0.0
  %v5242 = vsel %vm5240, %v5209, 0.0
  %v5243 = vadd.f32 %v5241, %v5242
  %v5244 = vsel %vm5240, %v5210, 0.0
  %v5245 = vadd.f32 %v5243, %v5244
  %v5246 = vsel %vm5240, %v5211, 0.0
  %v5247 = vadd.f32 %v5245, %v5246
  %v5248 = vsel %vm5240, %v5212, 0.0
  %v5249 = vadd.f32 %v5247, %v5248
  %v5250 = vsel %vm5240, %v5213, 0.0
  %v5251 = vadd.f32 %v5249, %v5250
  %v5252 = vsel %vm5240, %v5214, 0.0
  %v5253 = vadd.f32 %v5251, %v5252
  %v5254 = vsel %vm5240, %v5215, 0.0
  %v5255 = vadd.f32 %v5253, %v5254
  %v5256 = vsel %vm5240, %v5216, 0.0
  %v5257 = vadd.f32 %v5255, %v5256
  %v5258 = vsel %vm5240, %v5217, 0.0
  %v5259 = vadd.f32 %v5257, %v5258
  %v5260 = vsel %vm5240, %v5218, 0.0
  %v5261 = vadd.f32 %v5259, %v5260
  %v5262 = vsel %vm5240, %v5219, 0.0
  %v5263 = vadd.f32 %v5261, %v5262
  %v5264 = vsel %vm5240, %v5220, 0.0
  %v5265 = vadd.f32 %v5263, %v5264
  %v5266 = vsel %vm5240, %v5221, 0.0
  %v5267 = vadd.f32 %v5265, %v5266
  %v5268 = vsel %vm5240, %v5222, 0.0
  %v5269 = vadd.f32 %v5267, %v5268
  %v5270 = vsel %vm5240, %v5223, 0.0
  %v5271 = vadd.f32 %v5269, %v5270
  %v5272 = vsel %vm5240, %v5224, 0.0
  %v5273 = vadd.f32 %v5271, %v5272
  %v5274 = vsel %vm5240, %v5225, 0.0
  %v5275 = vadd.f32 %v5273, %v5274
  %v5276 = vsel %vm5240, %v5226, 0.0
  %v5277 = vadd.f32 %v5275, %v5276
  %v5278 = vsel %vm5240, %v5227, 0.0
  %v5279 = vadd.f32 %v5277, %v5278
  %v5280 = vsel %vm5240, %v5228, 0.0
  %v5281 = vadd.f32 %v5279, %v5280
  %v5282 = vsel %vm5240, %v5229, 0.0
  %v5283 = vadd.f32 %v5281, %v5282
  %v5284 = vsel %vm5240, %v5230, 0.0
  %v5285 = vadd.f32 %v5283, %v5284
  %v5286 = vsel %vm5240, %v5231, 0.0
  %v5287 = vadd.f32 %v5285, %v5286
  %v5288 = vsel %vm5240, %v5232, 0.0
  %v5289 = vadd.f32 %v5287, %v5288
  %v5290 = vsel %vm5240, %v5233, 0.0
  %v5291 = vadd.f32 %v5289, %v5290
  %v5292 = vsel %vm5240, %v5234, 0.0
  %v5293 = vadd.f32 %v5291, %v5292
  %v5294 = vsel %vm5240, %v5235, 0.0
  %v5295 = vadd.f32 %v5293, %v5294
  %v5296 = vsel %vm5240, %v5236, 0.0
  %v5297 = vadd.f32 %v5295, %v5296
  %v5298 = vsel %vm5240, %v5237, 0.0
  %v5299 = vadd.f32 %v5297, %v5298
  %v5300 = vsel %vm5240, %v5238, 0.0
  %v5301 = vadd.f32 %v5299, %v5300
  %v5302 = vsel %vm5240, %v5239, 0.0
  %v5303 = vadd.f32 %v5301, %v5302
  %v5304 = vrot.slane %v5303, 4
  %v5305 = vadd.f32 %v5303, %v5304
  %v5306 = vrot.slane %v5305, 2
  %v5307 = vadd.f32 %v5305, %v5306
  %v5308 = vrot.slane %v5307, 1
  %v5309 = vadd.f32 %v5307, %v5308
  %v5310 = vsel %vm4663, 1, 0
  %v5311 = vsel %vm4664, 1, 0
  %v5312 = vsel %vm4665, 1, 0
  %v5313 = vsel %vm4666, 1, 0
  %v5314 = vsel %vm4667, 1, 0
  %v5315 = vsel %vm4668, 1, 0
  %v5316 = vsel %vm4669, 1, 0
  %v5317 = vsel %vm4670, 1, 0
  %v5318 = vsel %vm4671, 1, 0
  %v5319 = vsel %vm4672, 1, 0
  %v5320 = vsel %vm4673, 1, 0
  %v5321 = vsel %vm4674, 1, 0
  %v5322 = vsel %vm4675, 1, 0
  %v5323 = vsel %vm4676, 1, 0
  %v5324 = vsel %vm4677, 1, 0
  %v5325 = vsel %vm4678, 1, 0
  %v5326 = vsel %vm4679, 1, 0
  %v5327 = vsel %vm4680, 1, 0
  %v5328 = vsel %vm4681, 1, 0
  %v5329 = vsel %vm4682, 1, 0
  %v5330 = vsel %vm4683, 1, 0
  %v5331 = vsel %vm4684, 1, 0
  %v5332 = vsel %vm4685, 1, 0
  %v5333 = vsel %vm4686, 1, 0
  %v5334 = vsel %vm4687, 1, 0
  %v5335 = vsel %vm4688, 1, 0
  %v5336 = vsel %vm4689, 1, 0
  %v5337 = vsel %vm4690, 1, 0
  %v5338 = vsel %vm4691, 1, 0
  %v5339 = vsel %vm4692, 1, 0
  %v5340 = vsel %vm4693, 1, 0
  %v5341 = vsel %vm4694, 1, 0
  %v5342 = vcvt.s32.f32 %v5310
  %v5343 = vcvt.s32.f32 %v5311
  %v5344 = vcvt.s32.f32 %v5312
  %v5345 = vcvt.s32.f32 %v5313
  %v5346 = vcvt.s32.f32 %v5314
  %v5347 = vcvt.s32.f32 %v5315
  %v5348 = vcvt.s32.f32 %v5316
  %v5349 = vcvt.s32.f32 %v5317
  %v5350 = vcvt.s32.f32 %v5318
  %v5351 = vcvt.s32.f32 %v5319
  %v5352 = vcvt.s32.f32 %v5320
  %v5353 = vcvt.s32.f32 %v5321
  %v5354 = vcvt.s32.f32 %v5322
  %v5355 = vcvt.s32.f32 %v5323
  %v5356 = vcvt.s32.f32 %v5324
  %v5357 = vcvt.s32.f32 %v5325
  %v5358 = vcvt.s32.f32 %v5326
  %v5359 = vcvt.s32.f32 %v5327
  %v5360 = vcvt.s32.f32 %v5328
  %v5361 = vcvt.s32.f32 %v5329
  %v5362 = vcvt.s32.f32 %v5330
  %v5363 = vcvt.s32.f32 %v5331
  %v5364 = vcvt.s32.f32 %v5332
  %v5365 = vcvt.s32.f32 %v5333
  %v5366 = vcvt.s32.f32 %v5334
  %v5367 = vcvt.s32.f32 %v5335
  %v5368 = vcvt.s32.f32 %v5336
  %v5369 = vcvt.s32.f32 %v5337
  %v5370 = vcvt.s32.f32 %v5338
  %v5371 = vcvt.s32.f32 %v5339
  %v5372 = vcvt.s32.f32 %v5340
  %v5373 = vcvt.s32.f32 %v5341
  %v5374 = vadd.f32 %v5342, %v5343
  %v5375 = vadd.f32 %v5374, %v5344
  %v5376 = vadd.f32 %v5375, %v5345
  %v5377 = vadd.f32 %v5376, %v5346
  %v5378 = vadd.f32 %v5377, %v5347
  %v5379 = vadd.f32 %v5378, %v5348
  %v5380 = vadd.f32 %v5379, %v5349
  %v5381 = vadd.f32 %v5380, %v5350
  %v5382 = vadd.f32 %v5381, %v5351
  %v5383 = vadd.f32 %v5382, %v5352
  %v5384 = vadd.f32 %v5383, %v5353
  %v5385 = vadd.f32 %v5384, %v5354
  %v5386 = vadd.f32 %v5385, %v5355
  %v5387 = vadd.f32 %v5386, %v5356
  %v5388 = vadd.f32 %v5387, %v5357
  %v5389 = vadd.f32 %v5388, %v5358
  %v5390 = vadd.f32 %v5389, %v5359
  %v5391 = vadd.f32 %v5390, %v5360
  %v5392 = vadd.f32 %v5391, %v5361
  %v5393 = vadd.f32 %v5392, %v5362
  %v5394 = vadd.f32 %v5393, %v5363
  %v5395 = vadd.f32 %v5394, %v5364
  %v5396 = vadd.f32 %v5395, %v5365
  %v5397 = vadd.f32 %v5396, %v5366
  %v5398 = vadd.f32 %v5397, %v5367
  %v5399 = vadd.f32 %v5398, %v5368
  %v5400 = vadd.f32 %v5399, %v5369
  %v5401 = vadd.f32 %v5400, %v5370
  %v5402 = vadd.f32 %v5401, %v5371
  %v5403 = vadd.f32 %v5402, %v5372
  %v5404 = vadd.f32 %v5403, %v5373
  %v5405 = vrot.slane %v5404, 4
  %v5406 = vadd.f32 %v5404, %v5405
  %v5407 = vrot.slane %v5406, 2
  %v5408 = vadd.f32 %v5406, %v5407
  %v5409 = vrot.slane %v5408, 1
  %v5410 = vadd.f32 %v5408, %v5409
  %v5411 = vsel %vm4695, %v5206, 0.0
  %v5412 = vsel %vm4696, %v5207, 0.0
  %vm5413 = vcmask 1040384
  %v5414 = vsel %vm5413, %v5411, 0.0
  %v5415 = vsel %vm5413, %v5412, 0.0
  %v5416 = vadd.f32 %v5414, %v5415
  %5417 = vadd.xlane.f32.xlu0 %v5416
  %v5418 = vpop.xlane.xlu0 %5417
  %v5419 = vsel %vm4695, 1, 0
  %v5420 = vsel %vm4696, 1, 0
  %v5421 = vcvt.s32.f32 %v5419
  %v5422 = vcvt.s32.f32 %v5420
  %v5423 = vadd.f32 %v5421, %v5422
  %5424 = vadd.xlane.f32.xlu0 %v5423
  %v5425 = vpop.xlane.xlu0 %5424
  %v5426 = vmax.f32 %v5410, 1.0
  %v5427 = vrcp.pop %v5426
  %v5428 = vmul.f32 %v5309, %v5427
  %v5429 = vmax.f32 %v5425, 1.0
  %v5430 = vrcp.pop %v5429
  %v5431 = vmul.f32 %v5418, %v5430
  %v5432 = vadd.f32 %v5428, %v5431
  %v5433 = vmul.f32 %v5432, 0.5
  %v5434 = vsel %vm2191, %v1610, 1e+30
  %v5435 = vsel %vm2192, %v1617, 1e+30
  %v5436 = vsel %vm2193, %v1624, 1e+30
  %v5437 = vsel %vm2194, %v1631, 1e+30
  %v5438 = vsel %vm2195, %v1638, 1e+30
  %v5439 = vsel %vm2196, %v1645, 1e+30
  %v5440 = vsel %vm2197, %v1652, 1e+30
  %v5441 = vsel %vm2198, %v1659, 1e+30
  %v5442 = vsel %vm2199, %v1666, 1e+30
  %v5443 = vsel %vm2200, %v1673, 1e+30
  %v5444 = vsel %vm2201, %v1680, 1e+30
  %v5445 = vsel %vm2202, %v1687, 1e+30
  %v5446 = vsel %vm2203, %v1694, 1e+30
  %v5447 = vsel %vm2204, %v1701, 1e+30
  %v5448 = vsel %vm2205, %v1708, 1e+30
  %v5449 = vsel %vm2206, %v1715, 1e+30
  %v5450 = vsel %vm2207, %v1722, 1e+30
  %v5451 = vsel %vm2208, %v1729, 1e+30
  %v5452 = vsel %vm2209, %v1736, 1e+30
  %v5453 = vsel %vm2210, %v1743, 1e+30
  %v5454 = vsel %vm2211, %v1750, 1e+30
  %v5455 = vsel %vm2212, %v1757, 1e+30
  %v5456 = vsel %vm2213, %v1764, 1e+30
  %v5457 = vsel %vm2214, %v1771, 1e+30
  %v5458 = vsel %vm2215, %v1778, 1e+30
  %v5459 = vsel %vm2216, %v1785, 1e+30
  %v5460 = vsel %vm2217, %v1792, 1e+30
  %v5461 = vsel %vm2218, %v1799, 1e+30
  %v5462 = vsel %vm2219, %v1806, 1e+30
  %v5463 = vsel %vm2220, %v1813, 1e+30
  %v5464 = vsel %vm2221, %v1820, 1e+30
  %v5465 = vsel %vm2222, %v1827, 1e+30
  %v5466 = vsel %vm2223, %v1834, 1e+30
  %v5467 = vsel %vm2224, %v1841, 1e+30
  %v5468 = vsel %vm2225, %v1848, 1e+30
  %v5469 = vsel %vm2226, %v1855, 1e+30
  %v5470 = vsel %vm2227, %v1862, 1e+30
  %v5471 = vsel %vm2228, %v1869, 1e+30
  %v5472 = vsel %vm2229, %v1876, 1e+30
  %v5473 = vsel %vm2230, %v1883, 1e+30
  %v5474 = vsel %vm2231, %v1890, 1e+30
  %v5475 = vsel %vm2232, %v1897, 1e+30
  %v5476 = vsel %vm2233, %v1904, 1e+30
  %v5477 = vsel %vm2234, %v1911, 1e+30
  %v5478 = vsel %vm2235, %v1918, 1e+30
  %v5479 = vsel %vm2236, %v1925, 1e+30
  %v5480 = vsel %vm2237, %v1932, 1e+30
  %v5481 = vsel %vm2238, %v1939, 1e+30
  %v5482 = vsel %vm2239, %v1946, 1e+30
  %v5483 = vsel %vm2240, %v1953, 1e+30
  %v5484 = vsel %vm2241, %v1960, 1e+30
  %v5485 = vsel %vm2242, %v1967, 1e+30
  %v5486 = vsel %vm2243, %v1974, 1e+30
  %v5487 = vsel %vm2244, %v1981, 1e+30
  %v5488 = vsel %vm2245, %v1988, 1e+30
  %v5489 = vsel %vm2246, %v1995, 1e+30
  %v5490 = vsel %vm2247, %v2002, 1e+30
  %v5491 = vsel %vm2248, %v2009, 1e+30
  %v5492 = vsel %vm2249, %v2016, 1e+30
  %v5493 = vsel %vm2250, %v2023, 1e+30
  %v5494 = vsel %vm2251, %v2030, 1e+30
  %v5495 = vsel %vm2252, %v2037, 1e+30
  %v5496 = vsel %vm2253, %v2044, 1e+30
  %v5497 = vsel %vm2254, %v2051, 1e+30
  %v5498 = vsel %vm2447, %v1610, 1e+30
  %v5499 = vsel %vm2448, %v1617, 1e+30
  %v5500 = vsel %vm2449, %v1624, 1e+30
  %v5501 = vsel %vm2450, %v1631, 1e+30
  %v5502 = vsel %vm2451, %v1638, 1e+30
  %v5503 = vsel %vm2452, %v1645, 1e+30
  %v5504 = vsel %vm2453, %v1652, 1e+30
  %v5505 = vsel %vm2454, %v1659, 1e+30
  %v5506 = vsel %vm2455, %v1666, 1e+30
  %v5507 = vsel %vm2456, %v1673, 1e+30
  %v5508 = vsel %vm2457, %v1680, 1e+30
  %v5509 = vsel %vm2458, %v1687, 1e+30
  %v5510 = vsel %vm2459, %v1694, 1e+30
  %v5511 = vsel %vm2460, %v1701, 1e+30
  %v5512 = vsel %vm2461, %v1708, 1e+30
  %v5513 = vsel %vm2462, %v1715, 1e+30
  %v5514 = vsel %vm2463, %v1722, 1e+30
  %v5515 = vsel %vm2464, %v1729, 1e+30
  %v5516 = vsel %vm2465, %v1736, 1e+30
  %v5517 = vsel %vm2466, %v1743, 1e+30
  %v5518 = vsel %vm2467, %v1750, 1e+30
  %v5519 = vsel %vm2468, %v1757, 1e+30
  %v5520 = vsel %vm2469, %v1764, 1e+30
  %v5521 = vsel %vm2470, %v1771, 1e+30
  %v5522 = vsel %vm2471, %v1778, 1e+30
  %v5523 = vsel %vm2472, %v1785, 1e+30
  %v5524 = vsel %vm2473, %v1792, 1e+30
  %v5525 = vsel %vm2474, %v1799, 1e+30
  %v5526 = vsel %vm2475, %v1806, 1e+30
  %v5527 = vsel %vm2476, %v1813, 1e+30
  %v5528 = vsel %vm2477, %v1820, 1e+30
  %v5529 = vsel %vm2478, %v1827, 1e+30
  %v5530 = vsel %vm2479, %v1834, 1e+30
  %v5531 = vsel %vm2480, %v1841, 1e+30
  %v5532 = vsel %vm2481, %v1848, 1e+30
  %v5533 = vsel %vm2482, %v1855, 1e+30
  %v5534 = vsel %vm2483, %v1862, 1e+30
  %v5535 = vsel %vm2484, %v1869, 1e+30
  %v5536 = vsel %vm2485, %v1876, 1e+30
  %v5537 = vsel %vm2486, %v1883, 1e+30
  %v5538 = vsel %vm2487, %v1890, 1e+30
  %v5539 = vsel %vm2488, %v1897, 1e+30
  %v5540 = vsel %vm2489, %v1904, 1e+30
  %v5541 = vsel %vm2490, %v1911, 1e+30
  %v5542 = vsel %vm2491, %v1918, 1e+30
  %v5543 = vsel %vm2492, %v1925, 1e+30
  %v5544 = vsel %vm2493, %v1932, 1e+30
  %v5545 = vsel %vm2494, %v1939, 1e+30
  %v5546 = vsel %vm2495, %v1946, 1e+30
  %v5547 = vsel %vm2496, %v1953, 1e+30
  %v5548 = vsel %vm2497, %v1960, 1e+30
  %v5549 = vsel %vm2498, %v1967, 1e+30
  %v5550 = vsel %vm2499, %v1974, 1e+30
  %v5551 = vsel %vm2500, %v1981, 1e+30
  %v5552 = vsel %vm2501, %v1988, 1e+30
  %v5553 = vsel %vm2502, %v1995, 1e+30
  %v5554 = vsel %vm2503, %v2002, 1e+30
  %v5555 = vsel %vm2504, %v2009, 1e+30
  %v5556 = vsel %vm2505, %v2016, 1e+30
  %v5557 = vsel %vm2506, %v2023, 1e+30
  %v5558 = vsel %vm2507, %v2030, 1e+30
  %v5559 = vsel %vm2508, %v2037, 1e+30
  %v5560 = vsel %vm2509, %v2044, 1e+30
  %v5561 = vsel %vm2510, %v2051, 1e+30
  %v5562 = vmin.f32 %v5434, %v5435
  %5563 = vmin.xlane.f32.xlu0 %v5562
  %v5564 = vpop.xlane.xlu0 %5563
  %v5565 = vmin.f32 %v5436, %v5437
  %5566 = vmin.xlane.f32.xlu0 %v5565
  %v5567 = vpop.xlane.xlu0 %5566
  %v5568 = vmin.f32 %v5438, %v5439
  %5569 = vmin.xlane.f32.xlu0 %v5568
  %v5570 = vpop.xlane.xlu0 %5569
  %v5571 = vmin.f32 %v5440, %v5441
  %5572 = vmin.xlane.f32.xlu0 %v5571
  %v5573 = vpop.xlane.xlu0 %5572
  %v5574 = vmin.f32 %v5442, %v5443
  %5575 = vmin.xlane.f32.xlu0 %v5574
  %v5576 = vpop.xlane.xlu0 %5575
  %v5577 = vmin.f32 %v5444, %v5445
  %5578 = vmin.xlane.f32.xlu0 %v5577
  %v5579 = vpop.xlane.xlu0 %5578
  %v5580 = vmin.f32 %v5446, %v5447
  %5581 = vmin.xlane.f32.xlu0 %v5580
  %v5582 = vpop.xlane.xlu0 %5581
  %v5583 = vmin.f32 %v5448, %v5449
  %5584 = vmin.xlane.f32.xlu0 %v5583
  %v5585 = vpop.xlane.xlu0 %5584
  %v5586 = vmin.f32 %v5450, %v5451
  %5587 = vmin.xlane.f32.xlu0 %v5586
  %v5588 = vpop.xlane.xlu0 %5587
  %v5589 = vmin.f32 %v5452, %v5453
  %5590 = vmin.xlane.f32.xlu0 %v5589
  %v5591 = vpop.xlane.xlu0 %5590
  %v5592 = vmin.f32 %v5454, %v5455
  %5593 = vmin.xlane.f32.xlu0 %v5592
  %v5594 = vpop.xlane.xlu0 %5593
  %v5595 = vmin.f32 %v5456, %v5457
  %5596 = vmin.xlane.f32.xlu0 %v5595
  %v5597 = vpop.xlane.xlu0 %5596
  %v5598 = vmin.f32 %v5458, %v5459
  %5599 = vmin.xlane.f32.xlu0 %v5598
  %v5600 = vpop.xlane.xlu0 %5599
  %v5601 = vmin.f32 %v5460, %v5461
  %5602 = vmin.xlane.f32.xlu0 %v5601
  %v5603 = vpop.xlane.xlu0 %5602
  %v5604 = vmin.f32 %v5462, %v5463
  %5605 = vmin.xlane.f32.xlu0 %v5604
  %v5606 = vpop.xlane.xlu0 %5605
  %v5607 = vmin.f32 %v5464, %v5465
  %5608 = vmin.xlane.f32.xlu0 %v5607
  %v5609 = vpop.xlane.xlu0 %5608
  %v5610 = vmin.f32 %v5466, %v5467
  %5611 = vmin.xlane.f32.xlu0 %v5610
  %v5612 = vpop.xlane.xlu0 %5611
  %v5613 = vmin.f32 %v5468, %v5469
  %5614 = vmin.xlane.f32.xlu0 %v5613
  %v5615 = vpop.xlane.xlu0 %5614
  %v5616 = vmin.f32 %v5470, %v5471
  %5617 = vmin.xlane.f32.xlu0 %v5616
  %v5618 = vpop.xlane.xlu0 %5617
  %v5619 = vmin.f32 %v5472, %v5473
  %5620 = vmin.xlane.f32.xlu0 %v5619
  %v5621 = vpop.xlane.xlu0 %5620
  %v5622 = vmin.f32 %v5474, %v5475
  %5623 = vmin.xlane.f32.xlu0 %v5622
  %v5624 = vpop.xlane.xlu0 %5623
  %v5625 = vmin.f32 %v5476, %v5477
  %5626 = vmin.xlane.f32.xlu0 %v5625
  %v5627 = vpop.xlane.xlu0 %5626
  %v5628 = vmin.f32 %v5478, %v5479
  %5629 = vmin.xlane.f32.xlu0 %v5628
  %v5630 = vpop.xlane.xlu0 %5629
  %v5631 = vmin.f32 %v5480, %v5481
  %5632 = vmin.xlane.f32.xlu0 %v5631
  %v5633 = vpop.xlane.xlu0 %5632
  %v5634 = vmin.f32 %v5482, %v5483
  %5635 = vmin.xlane.f32.xlu0 %v5634
  %v5636 = vpop.xlane.xlu0 %5635
  %v5637 = vmin.f32 %v5484, %v5485
  %5638 = vmin.xlane.f32.xlu0 %v5637
  %v5639 = vpop.xlane.xlu0 %5638
  %v5640 = vmin.f32 %v5486, %v5487
  %5641 = vmin.xlane.f32.xlu0 %v5640
  %v5642 = vpop.xlane.xlu0 %5641
  %v5643 = vmin.f32 %v5488, %v5489
  %5644 = vmin.xlane.f32.xlu0 %v5643
  %v5645 = vpop.xlane.xlu0 %5644
  %v5646 = vmin.f32 %v5490, %v5491
  %5647 = vmin.xlane.f32.xlu0 %v5646
  %v5648 = vpop.xlane.xlu0 %5647
  %v5649 = vmin.f32 %v5492, %v5493
  %5650 = vmin.xlane.f32.xlu0 %v5649
  %v5651 = vpop.xlane.xlu0 %5650
  %v5652 = vmin.f32 %v5494, %v5495
  %5653 = vmin.xlane.f32.xlu0 %v5652
  %v5654 = vpop.xlane.xlu0 %5653
  %v5655 = vmin.f32 %v5496, %v5497
  %5656 = vmin.xlane.f32.xlu0 %v5655
  %v5657 = vpop.xlane.xlu0 %5656
  %v5658 = vmin.f32 %v5498, %v5499
  %5659 = vmin.xlane.f32.xlu0 %v5658
  %v5660 = vpop.xlane.xlu0 %5659
  %v5661 = vmin.f32 %v5500, %v5501
  %5662 = vmin.xlane.f32.xlu0 %v5661
  %v5663 = vpop.xlane.xlu0 %5662
  %v5664 = vmin.f32 %v5502, %v5503
  %5665 = vmin.xlane.f32.xlu0 %v5664
  %v5666 = vpop.xlane.xlu0 %5665
  %v5667 = vmin.f32 %v5504, %v5505
  %5668 = vmin.xlane.f32.xlu0 %v5667
  %v5669 = vpop.xlane.xlu0 %5668
  %v5670 = vmin.f32 %v5506, %v5507
  %5671 = vmin.xlane.f32.xlu0 %v5670
  %v5672 = vpop.xlane.xlu0 %5671
  %v5673 = vmin.f32 %v5508, %v5509
  %5674 = vmin.xlane.f32.xlu0 %v5673
  %v5675 = vpop.xlane.xlu0 %5674
  %v5676 = vmin.f32 %v5510, %v5511
  %5677 = vmin.xlane.f32.xlu0 %v5676
  %v5678 = vpop.xlane.xlu0 %5677
  %v5679 = vmin.f32 %v5512, %v5513
  %5680 = vmin.xlane.f32.xlu0 %v5679
  %v5681 = vpop.xlane.xlu0 %5680
  %v5682 = vmin.f32 %v5514, %v5515
  %5683 = vmin.xlane.f32.xlu0 %v5682
  %v5684 = vpop.xlane.xlu0 %5683
  %v5685 = vmin.f32 %v5516, %v5517
  %5686 = vmin.xlane.f32.xlu0 %v5685
  %v5687 = vpop.xlane.xlu0 %5686
  %v5688 = vmin.f32 %v5518, %v5519
  %5689 = vmin.xlane.f32.xlu0 %v5688
  %v5690 = vpop.xlane.xlu0 %5689
  %v5691 = vmin.f32 %v5520, %v5521
  %5692 = vmin.xlane.f32.xlu0 %v5691
  %v5693 = vpop.xlane.xlu0 %5692
  %v5694 = vmin.f32 %v5522, %v5523
  %5695 = vmin.xlane.f32.xlu0 %v5694
  %v5696 = vpop.xlane.xlu0 %5695
  %v5697 = vmin.f32 %v5524, %v5525
  %5698 = vmin.xlane.f32.xlu0 %v5697
  %v5699 = vpop.xlane.xlu0 %5698
  %v5700 = vmin.f32 %v5526, %v5527
  %5701 = vmin.xlane.f32.xlu0 %v5700
  %v5702 = vpop.xlane.xlu0 %5701
  %v5703 = vmin.f32 %v5528, %v5529
  %5704 = vmin.xlane.f32.xlu0 %v5703
  %v5705 = vpop.xlane.xlu0 %5704
  %v5706 = vmin.f32 %v5530, %v5531
  %5707 = vmin.xlane.f32.xlu0 %v5706
  %v5708 = vpop.xlane.xlu0 %5707
  %v5709 = vmin.f32 %v5532, %v5533
  %5710 = vmin.xlane.f32.xlu0 %v5709
  %v5711 = vpop.xlane.xlu0 %5710
  %v5712 = vmin.f32 %v5534, %v5535
  %5713 = vmin.xlane.f32.xlu0 %v5712
  %v5714 = vpop.xlane.xlu0 %5713
  %v5715 = vmin.f32 %v5536, %v5537
  %5716 = vmin.xlane.f32.xlu0 %v5715
  %v5717 = vpop.xlane.xlu0 %5716
  %v5718 = vmin.f32 %v5538, %v5539
  %5719 = vmin.xlane.f32.xlu0 %v5718
  %v5720 = vpop.xlane.xlu0 %5719
  %v5721 = vmin.f32 %v5540, %v5541
  %5722 = vmin.xlane.f32.xlu0 %v5721
  %v5723 = vpop.xlane.xlu0 %5722
  %v5724 = vmin.f32 %v5542, %v5543
  %5725 = vmin.xlane.f32.xlu0 %v5724
  %v5726 = vpop.xlane.xlu0 %5725
  %v5727 = vmin.f32 %v5544, %v5545
  %5728 = vmin.xlane.f32.xlu0 %v5727
  %v5729 = vpop.xlane.xlu0 %5728
  %v5730 = vmin.f32 %v5546, %v5547
  %5731 = vmin.xlane.f32.xlu0 %v5730
  %v5732 = vpop.xlane.xlu0 %5731
  %v5733 = vmin.f32 %v5548, %v5549
  %5734 = vmin.xlane.f32.xlu0 %v5733
  %v5735 = vpop.xlane.xlu0 %5734
  %v5736 = vmin.f32 %v5550, %v5551
  %5737 = vmin.xlane.f32.xlu0 %v5736
  %v5738 = vpop.xlane.xlu0 %5737
  %v5739 = vmin.f32 %v5552, %v5553
  %5740 = vmin.xlane.f32.xlu0 %v5739
  %v5741 = vpop.xlane.xlu0 %5740
  %v5742 = vmin.f32 %v5554, %v5555
  %5743 = vmin.xlane.f32.xlu0 %v5742
  %v5744 = vpop.xlane.xlu0 %5743
  %v5745 = vmin.f32 %v5556, %v5557
  %5746 = vmin.xlane.f32.xlu0 %v5745
  %v5747 = vpop.xlane.xlu0 %5746
  %v5748 = vmin.f32 %v5558, %v5559
  %5749 = vmin.xlane.f32.xlu0 %v5748
  %v5750 = vpop.xlane.xlu0 %5749
  %v5751 = vmin.f32 %v5560, %v5561
  %5752 = vmin.xlane.f32.xlu0 %v5751
  %v5753 = vpop.xlane.xlu0 %5752
  %vm5754 = vcmp.le.f32.partialorder %v5660, %v5564
  %vm5755 = vcmp.le.f32.partialorder %v5663, %v5567
  %vm5756 = vcmp.le.f32.partialorder %v5666, %v5570
  %vm5757 = vcmp.le.f32.partialorder %v5669, %v5573
  %vm5758 = vcmp.le.f32.partialorder %v5672, %v5576
  %vm5759 = vcmp.le.f32.partialorder %v5675, %v5579
  %vm5760 = vcmp.le.f32.partialorder %v5678, %v5582
  %vm5761 = vcmp.le.f32.partialorder %v5681, %v5585
  %vm5762 = vcmp.le.f32.partialorder %v5684, %v5588
  %vm5763 = vcmp.le.f32.partialorder %v5687, %v5591
  %vm5764 = vcmp.le.f32.partialorder %v5690, %v5594
  %vm5765 = vcmp.le.f32.partialorder %v5693, %v5597
  %vm5766 = vcmp.le.f32.partialorder %v5696, %v5600
  %vm5767 = vcmp.le.f32.partialorder %v5699, %v5603
  %vm5768 = vcmp.le.f32.partialorder %v5702, %v5606
  %vm5769 = vcmp.le.f32.partialorder %v5705, %v5609
  %vm5770 = vcmp.le.f32.partialorder %v5708, %v5612
  %vm5771 = vcmp.le.f32.partialorder %v5711, %v5615
  %vm5772 = vcmp.le.f32.partialorder %v5714, %v5618
  %vm5773 = vcmp.le.f32.partialorder %v5717, %v5621
  %vm5774 = vcmp.le.f32.partialorder %v5720, %v5624
  %vm5775 = vcmp.le.f32.partialorder %v5723, %v5627
  %vm5776 = vcmp.le.f32.partialorder %v5726, %v5630
  %vm5777 = vcmp.le.f32.partialorder %v5729, %v5633
  %vm5778 = vcmp.le.f32.partialorder %v5732, %v5636
  %vm5779 = vcmp.le.f32.partialorder %v5735, %v5639
  %vm5780 = vcmp.le.f32.partialorder %v5738, %v5642
  %vm5781 = vcmp.le.f32.partialorder %v5741, %v5645
  %vm5782 = vcmp.le.f32.partialorder %v5744, %v5648
  %vm5783 = vcmp.le.f32.partialorder %v5747, %v5651
  %vm5784 = vcmp.le.f32.partialorder %v5750, %v5654
  %vm5785 = vcmp.le.f32.partialorder %v5753, %v5657
  %vm5786 = vmand %vm5754, %vm4351
  %vm5787 = vmand %vm5755, %vm4352
  %vm5788 = vmand %vm5756, %vm4353
  %vm5789 = vmand %vm5757, %vm4354
  %vm5790 = vmand %vm5758, %vm4355
  %vm5791 = vmand %vm5759, %vm4356
  %vm5792 = vmand %vm5760, %vm4357
  %vm5793 = vmand %vm5761, %vm4358
  %vm5794 = vmand %vm5762, %vm4359
  %vm5795 = vmand %vm5763, %vm4360
  %vm5796 = vmand %vm5764, %vm4361
  %vm5797 = vmand %vm5765, %vm4362
  %vm5798 = vmand %vm5766, %vm4363
  %vm5799 = vmand %vm5767, %vm4364
  %vm5800 = vmand %vm5768, %vm4365
  %vm5801 = vmand %vm5769, %vm4366
  %vm5802 = vmand %vm5770, %vm4367
  %vm5803 = vmand %vm5771, %vm4368
  %vm5804 = vmand %vm5772, %vm4369
  %vm5805 = vmand %vm5773, %vm4370
  %vm5806 = vmand %vm5774, %vm4371
  %vm5807 = vmand %vm5775, %vm4372
  %vm5808 = vmand %vm5776, %vm4373
  %vm5809 = vmand %vm5777, %vm4374
  %vm5810 = vmand %vm5778, %vm4375
  %vm5811 = vmand %vm5779, %vm4376
  %vm5812 = vmand %vm5780, %vm4377
  %vm5813 = vmand %vm5781, %vm4378
  %vm5814 = vmand %vm5782, %vm4379
  %vm5815 = vmand %vm5783, %vm4380
  %vm5816 = vmand %vm5784, %vm4381
  %vm5817 = vmand %vm5785, %vm4382
  %v5818 = vsel %vm4351, 1, 0
  %v5819 = vsel %vm4352, 1, 0
  %v5820 = vsel %vm4353, 1, 0
  %v5821 = vsel %vm4354, 1, 0
  %v5822 = vsel %vm4355, 1, 0
  %v5823 = vsel %vm4356, 1, 0
  %v5824 = vsel %vm4357, 1, 0
  %v5825 = vsel %vm4358, 1, 0
  %v5826 = vsel %vm4359, 1, 0
  %v5827 = vsel %vm4360, 1, 0
  %v5828 = vsel %vm4361, 1, 0
  %v5829 = vsel %vm4362, 1, 0
  %v5830 = vsel %vm4363, 1, 0
  %v5831 = vsel %vm4364, 1, 0
  %v5832 = vsel %vm4365, 1, 0
  %v5833 = vsel %vm4366, 1, 0
  %v5834 = vsel %vm4367, 1, 0
  %v5835 = vsel %vm4368, 1, 0
  %v5836 = vsel %vm4369, 1, 0
  %v5837 = vsel %vm4370, 1, 0
  %v5838 = vsel %vm4371, 1, 0
  %v5839 = vsel %vm4372, 1, 0
  %v5840 = vsel %vm4373, 1, 0
  %v5841 = vsel %vm4374, 1, 0
  %v5842 = vsel %vm4375, 1, 0
  %v5843 = vsel %vm4376, 1, 0
  %v5844 = vsel %vm4377, 1, 0
  %v5845 = vsel %vm4378, 1, 0
  %v5846 = vsel %vm4379, 1, 0
  %v5847 = vsel %vm4380, 1, 0
  %v5848 = vsel %vm4381, 1, 0
  %v5849 = vsel %vm4382, 1, 0
  %v5850 = vcvt.s32.f32 %v5818
  %v5851 = vcvt.s32.f32 %v5819
  %v5852 = vcvt.s32.f32 %v5820
  %v5853 = vcvt.s32.f32 %v5821
  %v5854 = vcvt.s32.f32 %v5822
  %v5855 = vcvt.s32.f32 %v5823
  %v5856 = vcvt.s32.f32 %v5824
  %v5857 = vcvt.s32.f32 %v5825
  %v5858 = vcvt.s32.f32 %v5826
  %v5859 = vcvt.s32.f32 %v5827
  %v5860 = vcvt.s32.f32 %v5828
  %v5861 = vcvt.s32.f32 %v5829
  %v5862 = vcvt.s32.f32 %v5830
  %v5863 = vcvt.s32.f32 %v5831
  %v5864 = vcvt.s32.f32 %v5832
  %v5865 = vcvt.s32.f32 %v5833
  %v5866 = vcvt.s32.f32 %v5834
  %v5867 = vcvt.s32.f32 %v5835
  %v5868 = vcvt.s32.f32 %v5836
  %v5869 = vcvt.s32.f32 %v5837
  %v5870 = vcvt.s32.f32 %v5838
  %v5871 = vcvt.s32.f32 %v5839
  %v5872 = vcvt.s32.f32 %v5840
  %v5873 = vcvt.s32.f32 %v5841
  %v5874 = vcvt.s32.f32 %v5842
  %v5875 = vcvt.s32.f32 %v5843
  %v5876 = vcvt.s32.f32 %v5844
  %v5877 = vcvt.s32.f32 %v5845
  %v5878 = vcvt.s32.f32 %v5846
  %v5879 = vcvt.s32.f32 %v5847
  %v5880 = vcvt.s32.f32 %v5848
  %v5881 = vcvt.s32.f32 %v5849
  %v5882 = vadd.f32 %v5850, %v5851
  %v5883 = vadd.f32 %v5882, %v5852
  %v5884 = vadd.f32 %v5883, %v5853
  %v5885 = vadd.f32 %v5884, %v5854
  %v5886 = vadd.f32 %v5885, %v5855
  %v5887 = vadd.f32 %v5886, %v5856
  %v5888 = vadd.f32 %v5887, %v5857
  %v5889 = vadd.f32 %v5888, %v5858
  %v5890 = vadd.f32 %v5889, %v5859
  %v5891 = vadd.f32 %v5890, %v5860
  %v5892 = vadd.f32 %v5891, %v5861
  %v5893 = vadd.f32 %v5892, %v5862
  %v5894 = vadd.f32 %v5893, %v5863
  %v5895 = vadd.f32 %v5894, %v5864
  %v5896 = vadd.f32 %v5895, %v5865
  %v5897 = vadd.f32 %v5896, %v5866
  %v5898 = vadd.f32 %v5897, %v5867
  %v5899 = vadd.f32 %v5898, %v5868
  %v5900 = vadd.f32 %v5899, %v5869
  %v5901 = vadd.f32 %v5900, %v5870
  %v5902 = vadd.f32 %v5901, %v5871
  %v5903 = vadd.f32 %v5902, %v5872
  %v5904 = vadd.f32 %v5903, %v5873
  %v5905 = vadd.f32 %v5904, %v5874
  %v5906 = vadd.f32 %v5905, %v5875
  %v5907 = vadd.f32 %v5906, %v5876
  %v5908 = vadd.f32 %v5907, %v5877
  %v5909 = vadd.f32 %v5908, %v5878
  %v5910 = vadd.f32 %v5909, %v5879
  %v5911 = vadd.f32 %v5910, %v5880
  %v5912 = vadd.f32 %v5911, %v5881
  %v5913 = vrot.slane %v5912, 4
  %v5914 = vadd.f32 %v5912, %v5913
  %v5915 = vrot.slane %v5914, 2
  %v5916 = vadd.f32 %v5914, %v5915
  %v5917 = vrot.slane %v5916, 1
  %v5918 = vadd.f32 %v5916, %v5917
  %v5919 = vsel %vm5786, 1, 0
  %v5920 = vsel %vm5787, 1, 0
  %v5921 = vsel %vm5788, 1, 0
  %v5922 = vsel %vm5789, 1, 0
  %v5923 = vsel %vm5790, 1, 0
  %v5924 = vsel %vm5791, 1, 0
  %v5925 = vsel %vm5792, 1, 0
  %v5926 = vsel %vm5793, 1, 0
  %v5927 = vsel %vm5794, 1, 0
  %v5928 = vsel %vm5795, 1, 0
  %v5929 = vsel %vm5796, 1, 0
  %v5930 = vsel %vm5797, 1, 0
  %v5931 = vsel %vm5798, 1, 0
  %v5932 = vsel %vm5799, 1, 0
  %v5933 = vsel %vm5800, 1, 0
  %v5934 = vsel %vm5801, 1, 0
  %v5935 = vsel %vm5802, 1, 0
  %v5936 = vsel %vm5803, 1, 0
  %v5937 = vsel %vm5804, 1, 0
  %v5938 = vsel %vm5805, 1, 0
  %v5939 = vsel %vm5806, 1, 0
  %v5940 = vsel %vm5807, 1, 0
  %v5941 = vsel %vm5808, 1, 0
  %v5942 = vsel %vm5809, 1, 0
  %v5943 = vsel %vm5810, 1, 0
  %v5944 = vsel %vm5811, 1, 0
  %v5945 = vsel %vm5812, 1, 0
  %v5946 = vsel %vm5813, 1, 0
  %v5947 = vsel %vm5814, 1, 0
  %v5948 = vsel %vm5815, 1, 0
  %v5949 = vsel %vm5816, 1, 0
  %v5950 = vsel %vm5817, 1, 0
  %v5951 = vcvt.s32.f32 %v5919
  %v5952 = vcvt.s32.f32 %v5920
  %v5953 = vcvt.s32.f32 %v5921
  %v5954 = vcvt.s32.f32 %v5922
  %v5955 = vcvt.s32.f32 %v5923
  %v5956 = vcvt.s32.f32 %v5924
  %v5957 = vcvt.s32.f32 %v5925
  %v5958 = vcvt.s32.f32 %v5926
  %v5959 = vcvt.s32.f32 %v5927
  %v5960 = vcvt.s32.f32 %v5928
  %v5961 = vcvt.s32.f32 %v5929
  %v5962 = vcvt.s32.f32 %v5930
  %v5963 = vcvt.s32.f32 %v5931
  %v5964 = vcvt.s32.f32 %v5932
  %v5965 = vcvt.s32.f32 %v5933
  %v5966 = vcvt.s32.f32 %v5934
  %v5967 = vcvt.s32.f32 %v5935
  %v5968 = vcvt.s32.f32 %v5936
  %v5969 = vcvt.s32.f32 %v5937
  %v5970 = vcvt.s32.f32 %v5938
  %v5971 = vcvt.s32.f32 %v5939
  %v5972 = vcvt.s32.f32 %v5940
  %v5973 = vcvt.s32.f32 %v5941
  %v5974 = vcvt.s32.f32 %v5942
  %v5975 = vcvt.s32.f32 %v5943
  %v5976 = vcvt.s32.f32 %v5944
  %v5977 = vcvt.s32.f32 %v5945
  %v5978 = vcvt.s32.f32 %v5946
  %v5979 = vcvt.s32.f32 %v5947
  %v5980 = vcvt.s32.f32 %v5948
  %v5981 = vcvt.s32.f32 %v5949
  %v5982 = vcvt.s32.f32 %v5950
  %v5983 = vadd.f32 %v5951, %v5952
  %v5984 = vadd.f32 %v5983, %v5953
  %v5985 = vadd.f32 %v5984, %v5954
  %v5986 = vadd.f32 %v5985, %v5955
  %v5987 = vadd.f32 %v5986, %v5956
  %v5988 = vadd.f32 %v5987, %v5957
  %v5989 = vadd.f32 %v5988, %v5958
  %v5990 = vadd.f32 %v5989, %v5959
  %v5991 = vadd.f32 %v5990, %v5960
  %v5992 = vadd.f32 %v5991, %v5961
  %v5993 = vadd.f32 %v5992, %v5962
  %v5994 = vadd.f32 %v5993, %v5963
  %v5995 = vadd.f32 %v5994, %v5964
  %v5996 = vadd.f32 %v5995, %v5965
  %v5997 = vadd.f32 %v5996, %v5966
  %v5998 = vadd.f32 %v5997, %v5967
  %v5999 = vadd.f32 %v5998, %v5968
  %v6000 = vadd.f32 %v5999, %v5969
  %v6001 = vadd.f32 %v6000, %v5970
  %v6002 = vadd.f32 %v6001, %v5971
  %v6003 = vadd.f32 %v6002, %v5972
  %v6004 = vadd.f32 %v6003, %v5973
  %v6005 = vadd.f32 %v6004, %v5974
  %v6006 = vadd.f32 %v6005, %v5975
  %v6007 = vadd.f32 %v6006, %v5976
  %v6008 = vadd.f32 %v6007, %v5977
  %v6009 = vadd.f32 %v6008, %v5978
  %v6010 = vadd.f32 %v6009, %v5979
  %v6011 = vadd.f32 %v6010, %v5980
  %v6012 = vadd.f32 %v6011, %v5981
  %v6013 = vadd.f32 %v6012, %v5982
  %v6014 = vrot.slane %v6013, 4
  %v6015 = vadd.f32 %v6013, %v6014
  %v6016 = vrot.slane %v6015, 2
  %v6017 = vadd.f32 %v6015, %v6016
  %v6018 = vrot.slane %v6017, 1
  %v6019 = vadd.f32 %v6017, %v6018
  %v6020 = vadd.f32 %v5918, 1e-12
  %v6021 = vrcp.pop %v6020
  %v6022 = vmul.f32 %v6019, %v6021
  %vm6023 = vcmp.eq.s32.totalorder %v2086, 0
  %vm6024 = vcmp.eq.s32.totalorder %v2086, 1
  %v6025 = vsel %vm6024, %v6022, 0.0
  %6027 = vset.pattern.permute.xlu0 0
  %6028 = vperm.xlu0 %6027, %v5433
  %v6029 = vpop.permute.xlu0 %6028
  %v6031 = vsel %vm6023, %v6029, %v6025
  %6032 = vst [vmem:[%s5] sm:$0x1] %v6031
  // Predicated region
  $region18: #{metric_loss_forward.1} parent=0 // pred_check
    _
  $region19: #{metric_loss_forward.1} parent=0 // pred_check_branch
    %6034 = sbr.rel (0) target = $region21
  $region20: #{metric_loss_forward.1} parent=0 // pred_region
    _
  $region21: #{metric_loss_forward.1} parent=0 // pred_fallthru
    _
  // Predicated region
  $region22: #{metric_loss_forward.1} parent=0 // pred_check
    _
  $region23: #{metric_loss_forward.1} parent=0 // pred_check_branch
    %6036 = sbr.rel (0) target = $region25
  $region24: #{metric_loss_forward.1} parent=0 // pred_region
    _
  $region25: #{metric_loss_forward.1} parent=0 // pred_fallthru
    _

</llo_original>
